<compile_context>
chip_gen: v5e
topology: v5e:2x2
jax: 0.10.0
libtpu: 0.0.40
codegen_flags: <defaults>
</compile_context>

<pallas_src>
import jax
import jax.numpy as jnp
from jax.experimental import pallas as pl
from jax.experimental.pallas import tpu as pltpu

Z_DIM = 100
AGE_DIM = 1
IN_DIM = Z_DIM + AGE_DIM      # 101
IN_PAD = 128                  # lane-aligned K for the first dot
H1 = 128
H2 = 256
OUT = 3 * 64 * 64             # 12288
TN = 6144                     # final-layer output tile -> 12288/6144 = 2 tiles
N_TILES = OUT // TN


def _generator_kernel(x_ref, w1_ref, b1_ref, w2_ref, b2_ref, w3_ref, b3_ref, o_ref):
    # h1/h2 are <0.2 MFLOP; recompute every grid step so there is no
    # cross-step state and both grid axes stay truly parallel.
    h1 = jnp.dot(x_ref[...], w1_ref[...], preferred_element_type=jnp.float32)
    h1 = jnp.maximum(h1 + b1_ref[...], 0.0)
    h2 = jnp.dot(h1, w2_ref[...], preferred_element_type=jnp.float32)
    h2 = jnp.maximum(h2 + b2_ref[...], 0.0)

    # bf16 x bf16 MXU dot with f32 accumulation; no f32 materialization of W3.
    y = jnp.dot(h2.astype(jnp.bfloat16), w3_ref[0],
                preferred_element_type=jnp.float32)
    o_ref[...] = jnp.tanh(y + b3_ref[...])


def generator_forward(z, age, params):
    """z: (B, Z_DIM) f32, age: (B, AGE_DIM) f32 -> (B, 3, 64, 64) f32 (NCHW)."""
    w1, b1, w2, b2, w3, b3 = params
    x = jnp.concatenate([z, age], axis=1).astype(jnp.float32)    # (B, 101)
    B = x.shape[0]

    # Batch tiling: pad to a sublane multiple and pick a batch block size.
    if B <= 128:
        Bp = max(8, ((B + 7) // 8) * 8)
        TB = Bp
    else:
        TB = 128
        Bp = ((B + TB - 1) // TB) * TB
    NB = Bp // TB

    # Pad K (101 -> 128, zero columns; W1 has matching zero rows) and batch.
    x = jnp.pad(x, ((0, Bp - B), (0, IN_PAD - IN_DIM)))

    grid = (N_TILES, NB)

    flat = pl.pallas_call(
        _generator_kernel,
        out_shape=jax.ShapeDtypeStruct((Bp, OUT), jnp.float32),
        grid_spec=pltpu.PrefetchScalarGridSpec(
            num_scalar_prefetch=0,
            grid=grid,
            in_specs=[
                pl.BlockSpec((TB, IN_PAD), lambda j, b: (b, 0)),    # x block
                pl.BlockSpec((IN_PAD, H1), lambda j, b: (0, 0)),    # W1
                pl.BlockSpec((1, H1), lambda j, b: (0, 0)),         # b1
                pl.BlockSpec((H1, H2), lambda j, b: (0, 0)),        # W2
                pl.BlockSpec((1, H2), lambda j, b: (0, 0)),         # b2
                pl.BlockSpec((1, H2, TN), lambda j, b: (j, 0, 0)),  # W3 tile (bf16, contiguous)
                pl.BlockSpec((1, TN), lambda j, b: (0, j)),         # b3 tile
            ],
            out_specs=pl.BlockSpec((TB, TN), lambda j, b: (b, j)),
        ),
        compiler_params=pltpu.CompilerParams(
            dimension_semantics=("parallel", "parallel"),
        ),
    )(x, w1, b1, w2, b2, w3, b3)

    # TODO(synk): for very large batches, emit bf16 output tiles to halve
    # writeback traffic (output starts to rival the W3 stream past B~128).

    # Drop batch padding; matches torch .view(-1, 3, 64, 64) on row-major (B, 12288).
    return flat[:B].reshape(B, 3, 64, 64)


def init_params(key):
    """Init mimicking PyTorch Linear defaults (U[-1/sqrt(fan_in), +1/sqrt(fan_in)]).

    W1 is stored K-padded to 128 (extra rows are zero).  W3 is stored in
    bfloat16 and pre-tiled into the kernel layout (N_TILES, H2, TN) so each
    grid step's weight DMA is a single contiguous slab.
    """
    def uniform(k, shape, bound):
        return jax.random.uniform(k, shape, jnp.float32, -bound, bound)

    k1w, k1b, k2w, k2b, k3w, k3b = jax.random.split(key, 6)

    bound = 1.0 / (IN_DIM ** 0.5)
    w1 = uniform(k1w, (IN_DIM, H1), bound)
    w1 = jnp.pad(w1, ((0, IN_PAD - IN_DIM), (0, 0)))            # (128, 128)
    b1 = uniform(k1b, (1, H1), bound)

    bound = 1.0 / (H1 ** 0.5)
    w2 = uniform(k2w, (H1, H2), bound)
    b2 = uniform(k2b, (1, H2), bound)

    bound = 1.0 / (H2 ** 0.5)
    w3 = uniform(k3w, (H2, OUT), bound).astype(jnp.bfloat16)    # (256, 12288) bf16
    # Pre-tile: column tile j lives at w3_tiled[j] as a contiguous (H2, TN) slab.
    w3 = jnp.transpose(w3.reshape(H2, N_TILES, TN), (1, 0, 2))  # (N_TILES, 256, TN)
    b3 = uniform(k3b, (1, OUT), bound)

    return (w1, b1, w2, b2, w3, b3)


def _reference_forward(z, age, params):
    """Pure-JAX reference using the same stored weights (bf16 W3, bf16 h2 dot)."""
    w1, b1, w2, b2, w3, b3 = params
    x = jnp.concatenate([z, age], axis=1).astype(jnp.float32)
    x = jnp.pad(x, ((0, 0), (0, IN_PAD - IN_DIM)))
    h1 = jnp.maximum(x @ w1 + b1, 0.0)
    h2 = jnp.maximum(h1 @ w2 + b2, 0.0)
    w3_flat = jnp.transpose(w3, (1, 0, 2)).reshape(H2, OUT)     # undo kernel tiling
    y = jnp.dot(h2.astype(jnp.bfloat16), w3_flat,
                preferred_element_type=jnp.float32) + b3
    return jnp.tanh(y).reshape(-1, 3, 64, 64)


if __name__ == "__main__":
    key = jax.random.PRNGKey(0)
    kp, kz, ka = jax.random.split(key, 3)

    B = 2
    params = init_params(kp)
    z = jax.random.normal(kz, (B, Z_DIM), jnp.float32)
    age = jax.random.uniform(ka, (B, AGE_DIM), jnp.float32)

    out = generator_forward(z, age, params)
    out = jax.block_until_ready(out)

    assert out.shape == (B, 3, 64, 64), out.shape
    ref = jax.block_until_ready(_reference_forward(z, age, params))
    err = float(jnp.max(jnp.abs(out - ref)))
    assert jnp.allclose(out, ref, atol=2e-3, rtol=2e-3), err

    print("KERNEL_OK")
</pallas_src>

<mosaic_0001>
module attributes {stable_mosaic.version = 11 : i64} {
  func.func @_generator_kernel(%arg0: i32, %arg1: i32, %arg2: memref<8x128xf32, #tpu.memory_space<vmem>>, %arg3: memref<128x128xf32, #tpu.memory_space<vmem>>, %arg4: memref<1x128xf32, #tpu.memory_space<vmem>>, %arg5: memref<128x256xf32, #tpu.memory_space<vmem>>, %arg6: memref<1x256xf32, #tpu.memory_space<vmem>>, %arg7: memref<1x256x6144xbf16, #tpu.memory_space<vmem>>, %arg8: memref<1x6144xf32, #tpu.memory_space<vmem>>, %arg9: memref<8x6144xf32, #tpu.memory_space<vmem>>) attributes {dimension_semantics = [#tpu.dimension_semantics<parallel>, #tpu.dimension_semantics<parallel>], iteration_bounds = array<i64: 2, 1>, scalar_prefetch = 0 : i64, scratch_operands = 0 : i64, tpu.core_type = #tpu.core_type<tc>, window_params = [{transform_indices = @transform_0, window_bounds = array<i64: 8, 128>}, {pipeline_mode = #tpu.pipeline_mode<synchronous>, transform_indices = @transform_1, window_bounds = array<i64: 128, 128>}, {pipeline_mode = #tpu.pipeline_mode<synchronous>, transform_indices = @transform_2, window_bounds = array<i64: 1, 128>}, {pipeline_mode = #tpu.pipeline_mode<synchronous>, transform_indices = @transform_3, window_bounds = array<i64: 128, 256>}, {pipeline_mode = #tpu.pipeline_mode<synchronous>, transform_indices = @transform_4, window_bounds = array<i64: 1, 256>}, {transform_indices = @transform_5, window_bounds = array<i64: 1, 256, 6144>}, {transform_indices = @transform_6, window_bounds = array<i64: 1, 6144>}, {transform_indices = @transform_7, window_bounds = array<i64: 8, 6144>}]} {
    %c0 = arith.constant 0 : index
    %c0_0 = arith.constant 0 : index
    %0 = vector.load %arg2[%c0, %c0_0] : memref<8x128xf32, #tpu.memory_space<vmem>>, vector<8x128xf32>
    %c0_1 = arith.constant 0 : index
    %c0_2 = arith.constant 0 : index
    %1 = vector.load %arg3[%c0_1, %c0_2] : memref<128x128xf32, #tpu.memory_space<vmem>>, vector<128x128xf32>
    %cst = arith.constant dense<0.000000e+00> : vector<8x128xf32>
    %2 = tpu.matmul %0, %1, %cst {dimension_numbers = #tpu.dot_dimension_numbers<[1], [0], [0], [1], [0, 0, 1, 1], [], []>} : vector<8x128xf32>, vector<128x128xf32>, vector<8x128xf32> -> vector<8x128xf32>
    %c0_3 = arith.constant 0 : index
    %c0_4 = arith.constant 0 : index
    %3 = vector.load %arg4[%c0_3, %c0_4] : memref<1x128xf32, #tpu.memory_space<vmem>>, vector<1x128xf32>
    %4 = vector.broadcast %3 : vector<1x128xf32> to vector<8x128xf32>
    %5 = arith.addf %2, %4 : vector<8x128xf32>
    %cst_5 = arith.constant 0.000000e+00 : f32
    %6 = vector.broadcast %cst_5 : f32 to vector<8x128xf32>
    %7 = arith.maximumf %5, %6 : vector<8x128xf32>
    %c0_6 = arith.constant 0 : index
    %c0_7 = arith.constant 0 : index
    %8 = vector.load %arg5[%c0_6, %c0_7] : memref<128x256xf32, #tpu.memory_space<vmem>>, vector<128x256xf32>
    %cst_8 = arith.constant dense<0.000000e+00> : vector<8x256xf32>
    %9 = tpu.matmul %7, %8, %cst_8 {dimension_numbers = #tpu.dot_dimension_numbers<[1], [0], [0], [1], [0, 0, 1, 1], [], []>} : vector<8x128xf32>, vector<128x256xf32>, vector<8x256xf32> -> vector<8x256xf32>
    %c0_9 = arith.constant 0 : index
    %c0_10 = arith.constant 0 : index
    %10 = vector.load %arg6[%c0_9, %c0_10] : memref<1x256xf32, #tpu.memory_space<vmem>>, vector<1x256xf32>
    %11 = vector.broadcast %10 : vector<1x256xf32> to vector<8x256xf32>
    %12 = arith.addf %9, %11 : vector<8x256xf32>
    %cst_11 = arith.constant 0.000000e+00 : f32
    %13 = vector.broadcast %cst_11 : f32 to vector<8x256xf32>
    %14 = arith.maximumf %12, %13 : vector<8x256xf32>
    %15 = arith.truncf %14 : vector<8x256xf32> to vector<8x256xbf16>
    %c0_12 = arith.constant 0 : index
    %c0_13 = arith.constant 0 : index
    %c0_14 = arith.constant 0 : index
    %16 = vector.load %arg7[%c0_12, %c0_13, %c0_14] : memref<1x256x6144xbf16, #tpu.memory_space<vmem>>, vector<1x256x6144xbf16>
    %17 = vector.shape_cast %16 : vector<1x256x6144xbf16> to vector<256x6144xbf16>
    %cst_15 = arith.constant dense<0.000000e+00> : vector<8x6144xf32>
    %18 = tpu.matmul %15, %17, %cst_15 {dimension_numbers = #tpu.dot_dimension_numbers<[1], [0], [0], [1], [0, 0, 1, 1], [], []>} : vector<8x256xbf16>, vector<256x6144xbf16>, vector<8x6144xf32> -> vector<8x6144xf32>
    %c0_16 = arith.constant 0 : index
    %c0_17 = arith.constant 0 : index
    %19 = vector.load %arg8[%c0_16, %c0_17] : memref<1x6144xf32, #tpu.memory_space<vmem>>, vector<1x6144xf32>
    %20 = vector.broadcast %19 : vector<1x6144xf32> to vector<8x6144xf32>
    %21 = arith.addf %18, %20 : vector<8x6144xf32>
    %22 = math.tanh %21 : vector<8x6144xf32>
    %c0_18 = arith.constant 0 : index
    %c0_19 = arith.constant 0 : index
    %23 = vector.load %arg9[%c0_18, %c0_19] : memref<8x6144xf32, #tpu.memory_space<vmem>>, vector<8x6144xf32>
    tpu.vector_store %arg9[%c0_18, %c0_19], %22 {strides = array<i32>} : memref<8x6144xf32, #tpu.memory_space<vmem>>, vector<8x6144xf32>,
    return
  }
  func.func @transform_0(%arg0: i32, %arg1: i32) -> (i32, i32) {
    %c0_i32 = arith.constant 0 : i32
    %c0_i32_0 = arith.constant 0 : i32
    return %arg1, %c0_i32 : i32, i32
  }
  func.func @transform_1(%arg0: i32, %arg1: i32) -> (i32, i32) {
    %c0_i32 = arith.constant 0 : i32
    %c0_i32_0 = arith.constant 0 : i32
    %c0_i32_1 = arith.constant 0 : i32
    return %c0_i32, %c0_i32_0 : i32, i32
  }
  func.func @transform_2(%arg0: i32, %arg1: i32) -> (i32, i32) {
    %c0_i32 = arith.constant 0 : i32
    %c0_i32_0 = arith.constant 0 : i32
    %c0_i32_1 = arith.constant 0 : i32
    return %c0_i32, %c0_i32_0 : i32, i32
  }
  func.func @transform_3(%arg0: i32, %arg1: i32) -> (i32, i32) {
    %c0_i32 = arith.constant 0 : i32
    %c0_i32_0 = arith.constant 0 : i32
    %c0_i32_1 = arith.constant 0 : i32
    return %c0_i32, %c0_i32_0 : i32, i32
  }
  func.func @transform_4(%arg0: i32, %arg1: i32) -> (i32, i32) {
    %c0_i32 = arith.constant 0 : i32
    %c0_i32_0 = arith.constant 0 : i32
    %c0_i32_1 = arith.constant 0 : i32
    return %c0_i32, %c0_i32_0 : i32, i32
  }
  func.func @transform_5(%arg0: i32, %arg1: i32) -> (i32, i32, i32) {
    %c0_i32 = arith.constant 0 : i32
    %c0_i32_0 = arith.constant 0 : i32
    %c0_i32_1 = arith.constant 0 : i32
    return %arg0, %c0_i32, %c0_i32_0 : i32, i32, i32
  }
  func.func @transform_6(%arg0: i32, %arg1: i32) -> (i32, i32) {
    %c0_i32 = arith.constant 0 : i32
    %c0_i32_0 = arith.constant 0 : i32
    return %c0_i32, %arg0 : i32, i32
  }
  func.func @transform_7(%arg0: i32, %arg1: i32) -> (i32, i32) {
    %c0_i32 = arith.constant 0 : i32
    return %arg1, %arg0 : i32, i32
  }
}

</mosaic_0001>

<llo_original>
// kernel: tpu_custom_call.1
$region0: #{tpu_custom_call.1}
  #allocation0 [shape = 'u32[]', space=smem, size = 0x4, offset = 0x4, fixed_abs, tag = 'smem constant byte address 0x4 - core index']
  #allocation1 [shape = 'u32[72,128]{1,0:T(1,128)}', space=vmem, size = 0x9000, scoped, tag = 'internal scratch']
  %s0 = inlined_call_operand.hbm [shape: f32[8,128], index: 0, kind: input, shape index: {}]
  %s1 = inlined_call_operand.hbm [shape: f32[128,128], index: 1, kind: input, shape index: {}]
  %s2 = inlined_call_operand.hbm [shape: f32[1,128], index: 2, kind: input, shape index: {}]
  %s3 = inlined_call_operand.hbm [shape: f32[128,256], index: 3, kind: input, shape index: {}]
  %s4 = inlined_call_operand.hbm [shape: f32[1,256], index: 4, kind: input, shape index: {}]
  %s5 = inlined_call_operand.hbm [shape: bf16[2,256,6144], index: 5, kind: input, shape index: {}]
  %s6 = inlined_call_operand.hbm [shape: f32[1,12288], index: 6, kind: input, shape index: {}]
  %s7 = inlined_call_operand.hbm [shape: f32[8,12288], index: 7, kind: output, shape index: {}]
  %s8 = sld [smem:[#allocation0]]
  $region89: #{tpu_custom_call.1} parent=0
    _
  %s10 = ssub.s32 1, %s8
  %s11 = scalar_select 0, %s10, %s8
  $region1: #{tpu_custom_call.1} parent=0
    #allocation2 [shape = 'u8[4096]{0}', space=vmem, size = 0x1000, scoped, tag = 'input window, operand 0, single buffered']
    #allocation3 [shape = 's32[2]{0}', space=sflag, size = 0x8, scoped, tag = 'scoped memory for tpu_custom_call.1']
    #allocation4 [shape = 's32[2]{0}', space=sflag, size = 0x8, scoped, tag = 'scoped memory for tpu_custom_call.1']
    #allocation5 [shape = 'u8[65536]{0}', space=vmem, size = 0x10000, scoped, tag = 'input window, operand 1, single buffered']
    #allocation6 [shape = 's32[1]{0}', space=sflag, size = 0x4, scoped, tag = 'scoped memory for tpu_custom_call.1']
    #allocation7 [shape = 'u8[512]{0}', space=vmem, size = 0x400, scoped, tag = 'input window, operand 2, single buffered']
    #allocation8 [shape = 'u8[131072]{0}', space=vmem, size = 0x20000, scoped, tag = 'input window, operand 3, single buffered']
    #allocation9 [shape = 's32[1]{0}', space=sflag, size = 0x4, scoped, tag = 'scoped memory for tpu_custom_call.1']
    #allocation10 [shape = 'u8[1024]{0}', space=vmem, size = 0x400, scoped, tag = 'input window, operand 4, single buffered']
    #allocation11 [shape = 'u8[6291456]{0}', space=vmem, size = 0x600000, scoped, tag = 'input window, operand 5']
    #allocation12 [shape = 's32[2]{0}', space=sflag, size = 0x8, scoped, tag = 'scoped memory for tpu_custom_call.1']
    #allocation13 [shape = 'u8[49152]{0}', space=vmem, size = 0xc000, scoped, tag = 'input window, operand 6']
    #allocation14 [shape = 'u8[393216]{0}', space=vmem, size = 0x60000, scoped, tag = 'output window, operand 0']
    %12 = vsyncpa [#allocation3], 0
    %13 = vsyncpa [#allocation6], 0
    %14 = vsyncpa [#allocation9], 0
    %15 = vsyncpa [#allocation12], 0
    %s16 = scalar_lea.sflag [#allocation12], 1
    %17 = vsyncpa %s16, 0
    %18 = vsyncpa [#allocation4], 0
    %s19 = scalar_lea.sflag [#allocation4], 1
    %20 = vsyncpa %s19, 0
    loop: start=0, step=1, limit=4
    $region2: #{tpu_custom_call.1} parent=1 // loop_pre_header
      _
    $region3: #{tpu_custom_call.1} parent=1 // loop_header
      %s22 = sphi 0, %s26
      %p23 = scmp.ge.s32.totalorder %s22, 4
      %s29 = sphi 0, %s41
      %s30 = sphi 0, %s37
      %s31 = sphi 0, %s29
      %s32 = sphi 0, %s30
      %s33 = sphi 0, %s31
      %s34 = sphi 0, %s32
      %s44 = sphi 0, %s46
      %s47 = sphi 0, %s44
      %s48 = sphi 0, %s47
      %s64 = sphi 0, %s48
      %s68 = sphi 0, %s68
      %s70 = sphi 0, %s68
      %s71 = sphi 0, %s70
      %s85 = sphi 0, %s71
      %s89 = sphi 0, %s89
      %s91 = sphi 0, %s89
      %s92 = sphi 0, %s91
      %s106 = sphi 0, %s92
      %s110 = sphi 0, %s110
      %s112 = sphi 0, %s110
      %s113 = sphi 0, %s112
      %s127 = sphi 0, %s113
      %s131 = sphi 0, %s131
      %s133 = sphi 0, %s131
      %s134 = sphi 0, %s133
      %s148 = sphi 0, %s134
      %s154 = sphi 0, %s156
      %s157 = sphi 0, %s154
      %s158 = sphi 0, %s157
      %s174 = sphi 0, %s158
      %s180 = sphi 0, %s182
      %s183 = sphi 0, %s180
      %s184 = sphi 0, %s183
      %s200 = sphi 0, %s184
      %s208 = sphi 0, %s210
      %s211 = sphi 0, %s208
      %s212 = sphi 0, %s211
      %s228 = sphi 0, %s212
    $region4: #{tpu_custom_call.1} parent=1 // loop_header_branch
      %25 = sbr.rel (%p23) target = $region8
    $region5: #{tpu_custom_call.1} parent=1 // loop_body
      %s27 = ssub.s32 %s22, 1
      %s28 = ssub.s32 %s22, 2
      %s35 = sadd.s32 1, %s30
      %p36 = scmp.ge.s32.totalorder %s35, 1
      %s37 = scalar_select %p36, 0, %s35
      %s38 = sadd.s32 1, %s29
      %s39 = scalar_select %p36, %s38, %s29
      %p40 = scmp.ge.s32.totalorder %s39, 2
      %s41 = scalar_select %p40, 0, %s39
      %s42 = ssub.s32 %s30, %s37
      %p43 = scmp.eq.s32.totalorder %s42, 0
      %s45 = sadd.s32 %s44, 1
      %s46 = scalar_select %p43, %s44, %s45
      %p49 = pneg %p43
      %p50 = scmp.eq.s32.totalorder %s22, 1
      %p51 = por %p49, %p50
      %p52 = scmp.ne.s32.totalorder %s44, %s47
      %p53 = scmp.eq.s32.totalorder %s22, 0
      %p54 = por %p52, %p53
      %p55 = scmp.ne.s32.totalorder %s44, %s47
      %p56 = scmp.eq.s32.totalorder %s27, 1
      %p57 = por %p55, %p56
      %p58 = scmp.ne.s32.totalorder %s47, %s48
      %p59 = scmp.eq.s32.totalorder %s27, 0
      %p60 = por %p58, %p59
      %p61 = scmp.ne.s32.totalorder %s47, %s48
      %p62 = scmp.eq.s32.totalorder %s28, 1
      %p63 = por %p61, %p62
      %p65 = scmp.ne.s32.totalorder %s48, %s64
      %p66 = scmp.eq.s32.totalorder %s28, 0
      %p67 = por %p65, %p66
      %s69 = sadd.s32 %s68, 1
      %p72 = scmp.eq.s32.totalorder %s22, 1
      %p73 = scmp.ne.s32.totalorder %s68, %s70
      %p74 = scmp.eq.s32.totalorder %s22, 0
      %p75 = por %p73, %p74
      %p76 = scmp.ne.s32.totalorder %s68, %s70
      %p77 = scmp.eq.s32.totalorder %s27, 1
      %p78 = por %p76, %p77
      %p79 = scmp.ne.s32.totalorder %s70, %s71
      %p80 = scmp.eq.s32.totalorder %s27, 0
      %p81 = por %p79, %p80
      %p82 = scmp.ne.s32.totalorder %s70, %s71
      %p83 = scmp.eq.s32.totalorder %s28, 1
      %p84 = por %p82, %p83
      %p86 = scmp.ne.s32.totalorder %s71, %s85
      %p87 = scmp.eq.s32.totalorder %s28, 0
      %p88 = por %p86, %p87
      %s90 = sadd.s32 %s89, 1
      %p93 = scmp.eq.s32.totalorder %s22, 1
      %p94 = scmp.ne.s32.totalorder %s89, %s91
      %p95 = scmp.eq.s32.totalorder %s22, 0
      %p96 = por %p94, %p95
      %p97 = scmp.ne.s32.totalorder %s89, %s91
      %p98 = scmp.eq.s32.totalorder %s27, 1
      %p99 = por %p97, %p98
      %p100 = scmp.ne.s32.totalorder %s91, %s92
      %p101 = scmp.eq.s32.totalorder %s27, 0
      %p102 = por %p100, %p101
      %p103 = scmp.ne.s32.totalorder %s91, %s92
      %p104 = scmp.eq.s32.totalorder %s28, 1
      %p105 = por %p103, %p104
      %p107 = scmp.ne.s32.totalorder %s92, %s106
      %p108 = scmp.eq.s32.totalorder %s28, 0
      %p109 = por %p107, %p108
      %s111 = sadd.s32 %s110, 1
      %p114 = scmp.eq.s32.totalorder %s22, 1
      %p115 = scmp.ne.s32.totalorder %s110, %s112
      %p116 = scmp.eq.s32.totalorder %s22, 0
      %p117 = por %p115, %p116
      %p118 = scmp.ne.s32.totalorder %s110, %s112
      %p119 = scmp.eq.s32.totalorder %s27, 1
      %p120 = por %p118, %p119
      %p121 = scmp.ne.s32.totalorder %s112, %s113
      %p122 = scmp.eq.s32.totalorder %s27, 0
      %p123 = por %p121, %p122
      %p124 = scmp.ne.s32.totalorder %s112, %s113
      %p125 = scmp.eq.s32.totalorder %s28, 1
      %p126 = por %p124, %p125
      %p128 = scmp.ne.s32.totalorder %s113, %s127
      %p129 = scmp.eq.s32.totalorder %s28, 0
      %p130 = por %p128, %p129
      %s132 = sadd.s32 %s131, 1
      %p135 = scmp.eq.s32.totalorder %s22, 1
      %p136 = scmp.ne.s32.totalorder %s131, %s133
      %p137 = scmp.eq.s32.totalorder %s22, 0
      %p138 = por %p136, %p137
      %p139 = scmp.ne.s32.totalorder %s131, %s133
      %p140 = scmp.eq.s32.totalorder %s27, 1
      %p141 = por %p139, %p140
      %p142 = scmp.ne.s32.totalorder %s133, %s134
      %p143 = scmp.eq.s32.totalorder %s27, 0
      %p144 = por %p142, %p143
      %p145 = scmp.ne.s32.totalorder %s133, %s134
      %p146 = scmp.eq.s32.totalorder %s28, 1
      %p147 = por %p145, %p146
      %p149 = scmp.ne.s32.totalorder %s134, %s148
      %p150 = scmp.eq.s32.totalorder %s28, 0
      %p151 = por %p149, %p150
      %s152 = ssub.s32 %s29, %s41
      %p153 = scmp.eq.s32.totalorder %s152, 0
      %s155 = sadd.s32 %s154, 1
      %s156 = scalar_select %p153, %s154, %s155
      %p159 = pneg %p153
      %p160 = scmp.eq.s32.totalorder %s22, 1
      %p161 = por %p159, %p160
      %p162 = scmp.ne.s32.totalorder %s154, %s157
      %p163 = scmp.eq.s32.totalorder %s22, 0
      %p164 = por %p162, %p163
      %p165 = scmp.ne.s32.totalorder %s154, %s157
      %p166 = scmp.eq.s32.totalorder %s27, 1
      %p167 = por %p165, %p166
      %p168 = scmp.ne.s32.totalorder %s157, %s158
      %p169 = scmp.eq.s32.totalorder %s27, 0
      %p170 = por %p168, %p169
      %p171 = scmp.ne.s32.totalorder %s157, %s158
      %p172 = scmp.eq.s32.totalorder %s28, 1
      %p173 = por %p171, %p172
      %p175 = scmp.ne.s32.totalorder %s158, %s174
      %p176 = scmp.eq.s32.totalorder %s28, 0
      %p177 = por %p175, %p176
      %s178 = ssub.s32 %s29, %s41
      %p179 = scmp.eq.s32.totalorder %s178, 0
      %s181 = sadd.s32 %s180, 1
      %s182 = scalar_select %p179, %s180, %s181
      %p185 = pneg %p179
      %p186 = scmp.eq.s32.totalorder %s22, 1
      %p187 = por %p185, %p186
      %p188 = scmp.ne.s32.totalorder %s180, %s183
      %p189 = scmp.eq.s32.totalorder %s22, 0
      %p190 = por %p188, %p189
      %p191 = scmp.ne.s32.totalorder %s180, %s183
      %p192 = scmp.eq.s32.totalorder %s27, 1
      %p193 = por %p191, %p192
      %p194 = scmp.ne.s32.totalorder %s183, %s184
      %p195 = scmp.eq.s32.totalorder %s27, 0
      %p196 = por %p194, %p195
      %p197 = scmp.ne.s32.totalorder %s183, %s184
      %p198 = scmp.eq.s32.totalorder %s28, 1
      %p199 = por %p197, %p198
      %p201 = scmp.ne.s32.totalorder %s184, %s200
      %p202 = scmp.eq.s32.totalorder %s28, 0
      %p203 = por %p201, %p202
      %s204 = ssub.s32 %s30, %s37
      %s205 = ssub.s32 %s29, %s41
      %s206 = sor.u32 %s204, %s205
      %p207 = scmp.eq.s32.totalorder %s206, 0
      %s209 = sadd.s32 %s208, 1
      %s210 = scalar_select %p207, %s208, %s209
      %p213 = pneg %p207
      %p214 = scmp.eq.s32.totalorder %s22, 1
      %p215 = por %p213, %p214
      %p216 = scmp.ne.s32.totalorder %s208, %s211
      %p217 = scmp.eq.s32.totalorder %s22, 0
      %p218 = por %p216, %p217
      %p219 = scmp.ne.s32.totalorder %s208, %s211
      %p220 = scmp.eq.s32.totalorder %s27, 1
      %p221 = por %p219, %p220
      %p222 = scmp.ne.s32.totalorder %s211, %s212
      %p223 = scmp.eq.s32.totalorder %s27, 0
      %p224 = por %p222, %p223
      %p225 = scmp.ne.s32.totalorder %s211, %s212
      %p226 = scmp.eq.s32.totalorder %s28, 1
      %p227 = por %p225, %p226
      %p229 = scmp.ne.s32.totalorder %s212, %s228
      %p230 = scmp.eq.s32.totalorder %s28, 0
      %p231 = por %p229, %p230
      %p232 = scmp.le.s32.totalorder 1, %s22
      %p233 = scmp.lt.s32.totalorder %s22, 3
      %p234 = pnand %p232, %p233
      %p235 = pneg %p234
      // Predicated region
      $region9: #{tpu_custom_call.1} parent=5 // pred_check
        _
      $region10: #{tpu_custom_call.1} parent=5 // pred_check_branch
        %237 = sbr.rel (%p234) target = $region12
      $region11: #{tpu_custom_call.1} parent=5 // pred_region
        %s238 = ssub.s32 %s22, 1
        // Predicated region
        $region13: #{tpu_custom_call.1} parent=11 // pred_check
          %p239 = pneg %p60
        $region14: #{tpu_custom_call.1} parent=11 // pred_check_branch
          %241 = sbr.rel (%p239) target = $region16
        $region15: #{tpu_custom_call.1} parent=11 // pred_region
          %243 = vsyncadd [#allocation3], 0
          %s244 = smul.addr %s32, 8
          %s245 = scalar_lea.hbm %s0, %s244
          %s247 = sshll.u32 %s245, 4
          %s248 = int_to_ptr.hbm [resolvable:$true] %s247
          %s249 = sshll.u32 [#allocation2], 4
          %s250 = int_to_ptr.vmem [resolvable:$true] %s249
          %252 = dma.hbm_to_vmem [thread:$0]  %s248, 128, %s250, [#allocation3]
        $region16: #{tpu_custom_call.1} parent=11 // pred_fallthru
          _
        // Predicated region
        $region17: #{tpu_custom_call.1} parent=11 // pred_check
          %p253 = pneg %p81
        $region18: #{tpu_custom_call.1} parent=11 // pred_check_branch
          %255 = sbr.rel (%p253) target = $region20
        $region19: #{tpu_custom_call.1} parent=11 // pred_region
          %257 = vsyncadd [#allocation6], 0
          %s258 = sshll.u32 %s1, 4
          %s259 = int_to_ptr.hbm [resolvable:$true] %s258
          %s260 = sshll.u32 [#allocation5], 4
          %s261 = int_to_ptr.vmem [resolvable:$true] %s260
          %266 = dma.hbm_to_vmem [thread:$0]  %s259, 2048, %s261, [#allocation6], 128, 128, 8
        $region20: #{tpu_custom_call.1} parent=11 // pred_fallthru
          _
        // Predicated region
        $region21: #{tpu_custom_call.1} parent=11 // pred_check
          %p267 = pneg %p102
        $region22: #{tpu_custom_call.1} parent=11 // pred_check_branch
          %269 = sbr.rel (%p267) target = $region24
        $region23: #{tpu_custom_call.1} parent=11 // pred_region
          %271 = vsyncadd [#allocation6], 0
          %s273 = sshll.u32 %s2, 4
          %s274 = int_to_ptr.hbm [resolvable:$true] %s273
          %s275 = sshll.u32 [#allocation7], 4
          %s276 = int_to_ptr.vmem [resolvable:$true] %s275
          %278 = dma.hbm_to_vmem [thread:$0]  %s274, 16, %s276, [#allocation6]
        $region24: #{tpu_custom_call.1} parent=11 // pred_fallthru
          _
        // Predicated region
        $region25: #{tpu_custom_call.1} parent=11 // pred_check
          %p279 = pneg %p123
        $region26: #{tpu_custom_call.1} parent=11 // pred_check_branch
          %281 = sbr.rel (%p279) target = $region28
        $region27: #{tpu_custom_call.1} parent=11 // pred_region
          %283 = vsyncadd [#allocation9], 0
          %s284 = sshll.u32 %s3, 4
          %s285 = int_to_ptr.hbm [resolvable:$true] %s284
          %s286 = sshll.u32 [#allocation8], 4
          %s287 = int_to_ptr.vmem [resolvable:$true] %s286
          %292 = dma.hbm_to_vmem [thread:$0]  %s285, 4096, %s287, [#allocation9], 256, 256, 16
        $region28: #{tpu_custom_call.1} parent=11 // pred_fallthru
          _
        // Predicated region
        $region29: #{tpu_custom_call.1} parent=11 // pred_check
          %p293 = pneg %p144
        $region30: #{tpu_custom_call.1} parent=11 // pred_check_branch
          %295 = sbr.rel (%p293) target = $region32
        $region31: #{tpu_custom_call.1} parent=11 // pred_region
          %297 = vsyncadd [#allocation9], 0
          %s299 = sshll.u32 %s4, 4
          %s300 = int_to_ptr.hbm [resolvable:$true] %s299
          %s301 = sshll.u32 [#allocation10], 4
          %s302 = int_to_ptr.vmem [resolvable:$true] %s301
          %304 = dma.hbm_to_vmem [thread:$0]  %s300, 32, %s302, [#allocation9]
        $region32: #{tpu_custom_call.1} parent=11 // pred_fallthru
          _
      $region12: #{tpu_custom_call.1} parent=5 // pred_fallthru
        _
      %p305 = scmp.lt.s32.totalorder %s22, 2
      // Predicated region
      $region33: #{tpu_custom_call.1} parent=5 // pred_check
        %p306 = pneg %p305
      $region34: #{tpu_custom_call.1} parent=5 // pred_check_branch
        %308 = sbr.rel (%p306) target = $region36
      $region35: #{tpu_custom_call.1} parent=5 // pred_region
        // Predicated region
        $region37: #{tpu_custom_call.1} parent=35 // pred_check
          %p309 = pneg %p164
        $region38: #{tpu_custom_call.1} parent=35 // pred_check_branch
          %311 = sbr.rel (%p309) target = $region40
        $region39: #{tpu_custom_call.1} parent=35 // pred_region
          %s312 = sand.u32 %s22, 1
          %s313 = scalar_lea.sflag [#allocation12], %s312
          %s314 = sand.u32 %s154, 1
          %s315 = smul.addr %s314, 6144
          %s316 = scalar_lea.vmem [#allocation11], %s315
          %318 = vsyncadd %s313, 0
          %s319 = smul.addr %s29, 1536
          %s320 = smul.addr %s319, 4
          %s321 = scalar_lea.hbm %s5, %s320
          %s322 = sshll.u32 %s321, 4
          %s323 = int_to_ptr.hbm [resolvable:$true] %s322
          %s324 = sshll.u32 %s316, 4
          %s325 = int_to_ptr.vmem [resolvable:$true] %s324
          %330 = dma.hbm_to_vmem [thread:$0]  %s323, 98304, %s325, %s313, 3072, 3072, 192
        $region40: #{tpu_custom_call.1} parent=35 // pred_fallthru
          _
        // Predicated region
        $region41: #{tpu_custom_call.1} parent=35 // pred_check
          %p331 = pneg %p190
        $region42: #{tpu_custom_call.1} parent=35 // pred_check_branch
          %333 = sbr.rel (%p331) target = $region44
        $region43: #{tpu_custom_call.1} parent=35 // pred_region
          %s334 = sand.u32 %s22, 1
          %s335 = scalar_lea.sflag [#allocation12], %s334
          %s336 = sand.u32 %s180, 1
          %s337 = smul.addr %s336, 48
          %s338 = scalar_lea.vmem [#allocation13], %s337
          %s339 = smul.u32 48, %s29
          %341 = vsyncadd %s335, 0
          %s342 = scalar_lea.hbm %s6, %s339
          %s344 = sshll.u32 %s342, 4
          %s345 = int_to_ptr.hbm [resolvable:$true] %s344
          %s346 = sshll.u32 %s338, 4
          %s347 = int_to_ptr.vmem [resolvable:$true] %s346
          %349 = dma.hbm_to_vmem [thread:$0]  %s345, 768, %s347, %s335
        $region44: #{tpu_custom_call.1} parent=35 // pred_fallthru
          _
      $region36: #{tpu_custom_call.1} parent=5 // pred_fallthru
        _
      %p350 = scmp.le.s32.totalorder 1, %s22
      %p351 = scmp.lt.s32.totalorder %s22, 3
      %p352 = pnand %p350, %p351
      %p353 = pneg %p352
      // Predicated region
      $region45: #{tpu_custom_call.1} parent=5 // pred_check
        _
      $region46: #{tpu_custom_call.1} parent=5 // pred_check_branch
        %355 = sbr.rel (%p352) target = $region48
      $region47: #{tpu_custom_call.1} parent=5 // pred_region
        %s356 = ssub.s32 %s22, 1
        // Predicated region
        $region49: #{tpu_custom_call.1} parent=47 // pred_check
          %p357 = pneg %p60
        $region50: #{tpu_custom_call.1} parent=47 // pred_check_branch
          %359 = sbr.rel (%p357) target = $region52
        $region51: #{tpu_custom_call.1} parent=47 // pred_region
          %361 = dma.done [#allocation3], 128
        $region52: #{tpu_custom_call.1} parent=47 // pred_fallthru
          _
        // Predicated region
        $region53: #{tpu_custom_call.1} parent=47 // pred_check
          %p362 = pneg %p81
        $region54: #{tpu_custom_call.1} parent=47 // pred_check_branch
          %364 = sbr.rel (%p362) target = $region56
        $region55: #{tpu_custom_call.1} parent=47 // pred_region
          %366 = dma.done [#allocation6], 2048
        $region56: #{tpu_custom_call.1} parent=47 // pred_fallthru
          _
        // Predicated region
        $region57: #{tpu_custom_call.1} parent=47 // pred_check
          %p367 = pneg %p102
        $region58: #{tpu_custom_call.1} parent=47 // pred_check_branch
          %369 = sbr.rel (%p367) target = $region60
        $region59: #{tpu_custom_call.1} parent=47 // pred_region
          %371 = dma.done [#allocation6], 16
        $region60: #{tpu_custom_call.1} parent=47 // pred_fallthru
          _
        // Predicated region
        $region61: #{tpu_custom_call.1} parent=47 // pred_check
          %p372 = pneg %p123
        $region62: #{tpu_custom_call.1} parent=47 // pred_check_branch
          %374 = sbr.rel (%p372) target = $region64
        $region63: #{tpu_custom_call.1} parent=47 // pred_region
          %376 = dma.done [#allocation9], 4096
        $region64: #{tpu_custom_call.1} parent=47 // pred_fallthru
          _
        // Predicated region
        $region65: #{tpu_custom_call.1} parent=47 // pred_check
          %p377 = pneg %p144
        $region66: #{tpu_custom_call.1} parent=47 // pred_check_branch
          %379 = sbr.rel (%p377) target = $region68
        $region67: #{tpu_custom_call.1} parent=47 // pred_region
          %381 = dma.done [#allocation9], 32
        $region68: #{tpu_custom_call.1} parent=47 // pred_fallthru
          _
        %s382 = sand.u32 %s27, 1
        %s383 = scalar_lea.sflag [#allocation12], %s382
        %s384 = sand.u32 %s157, 1
        %s385 = smul.addr %s384, 6144
        %s386 = scalar_lea.vmem [#allocation11], %s385
        // Predicated region
        $region69: #{tpu_custom_call.1} parent=47 // pred_check
          %p387 = pneg %p170
        $region70: #{tpu_custom_call.1} parent=47 // pred_check_branch
          %389 = sbr.rel (%p387) target = $region72
        $region71: #{tpu_custom_call.1} parent=47 // pred_region
          %391 = dma.done %s383, 98304
        $region72: #{tpu_custom_call.1} parent=47 // pred_fallthru
          _
        %s392 = sand.u32 %s27, 1
        %s393 = scalar_lea.sflag [#allocation12], %s392
        %s394 = sand.u32 %s183, 1
        %s395 = smul.addr %s394, 48
        %s396 = scalar_lea.vmem [#allocation13], %s395
        // Predicated region
        $region73: #{tpu_custom_call.1} parent=47 // pred_check
          %p397 = pneg %p196
        $region74: #{tpu_custom_call.1} parent=47 // pred_check_branch
          %399 = sbr.rel (%p397) target = $region76
        $region75: #{tpu_custom_call.1} parent=47 // pred_region
          %401 = dma.done %s393, 768
        $region76: #{tpu_custom_call.1} parent=47 // pred_fallthru
          _
        %p402 = pneg %p60
        %p403 = pneg %p57
        %p404 = pneg %p81
        %p405 = pneg %p78
        %p406 = pneg %p102
        %p407 = pneg %p99
        %p408 = pneg %p123
        %p409 = pneg %p120
        %p410 = pneg %p144
        %p411 = pneg %p141
        %s412 = sand.u32 %s27, 1
        %s413 = scalar_lea.sflag [#allocation12], %s412
        %s414 = sand.u32 %s157, 1
        %s415 = smul.addr %s414, 6144
        %s416 = scalar_lea.vmem [#allocation11], %s415
        %p417 = pneg %p170
        %p418 = pneg %p167
        %s419 = sand.u32 %s27, 1
        %s420 = scalar_lea.sflag [#allocation12], %s419
        %s421 = sand.u32 %s183, 1
        %s422 = smul.addr %s421, 48
        %s423 = scalar_lea.vmem [#allocation13], %s422
        %p424 = pneg %p196
        %p425 = pneg %p193
        %p426 = pneg %p224
        %p427 = pneg %p221
        %s428 = sand.u32 %s211, 1
        %s429 = scalar_lea.sflag [#allocation4], %s428
        %s430 = sand.u32 %s211, 1
        %s431 = smul.addr %s430, 384
        %s432 = scalar_lea.vmem [#allocation14], %s431
        %s433 = smul.u32 48, %s31
        %s434 = smul.u32 48, %s31
        %v435 = vld [vmem:[#allocation2] sm:$0xff]
        %v436 = vld [vmem:[#allocation5] sm:$0xff]
        %v437 = vld [vmem:[#allocation5 + $0x8] sm:$0xff]
        %v438 = vld [vmem:[#allocation5 + $0x10] sm:$0xff]
        %v439 = vld [vmem:[#allocation5 + $0x18] sm:$0xff]
        %v440 = vld [vmem:[#allocation5 + $0x20] sm:$0xff]
        %v441 = vld [vmem:[#allocation5 + $0x28] sm:$0xff]
        %v442 = vld [vmem:[#allocation5 + $0x30] sm:$0xff]
        %v443 = vld [vmem:[#allocation5 + $0x38] sm:$0xff]
        %v444 = vld [vmem:[#allocation5 + $0x40] sm:$0xff]
        %v445 = vld [vmem:[#allocation5 + $0x48] sm:$0xff]
        %v446 = vld [vmem:[#allocation5 + $0x50] sm:$0xff]
        %v447 = vld [vmem:[#allocation5 + $0x58] sm:$0xff]
        %v448 = vld [vmem:[#allocation5 + $0x60] sm:$0xff]
        %v449 = vld [vmem:[#allocation5 + $0x68] sm:$0xff]
        %v450 = vld [vmem:[#allocation5 + $0x70] sm:$0xff]
        %v451 = vld [vmem:[#allocation5 + $0x78] sm:$0xff]
        %v452 = vld [vmem:[#allocation7] sm:$0x1]
        %v454 = vperm.slane %v452, 0
        %456 = vmatpush.msra.mxu0 %v451
        %457 = vmatpush.msra.mxu0 %v450
        %458 = vmatpush.msra.mxu0 %v449
        %459 = vmatpush.msra.mxu0 %v448
        %460 = vmatpush.msra.mxu0 %v447
        %461 = vmatpush.msra.mxu0 %v446
        %462 = vmatpush.msra.mxu0 %v445
        %463 = vmatpush.msra.mxu0 %v444
        %464 = vmatpush.msra.mxu0 %v443
        %465 = vmatpush.msra.mxu0 %v442
        %466 = vmatpush.msra.mxu0 %v441
        %467 = vmatpush.msra.mxu0 %v440
        %468 = vmatpush.msra.mxu0 %v439
        %469 = vmatpush.msra.mxu0 %v438
        %470 = vmatpush.msra.mxu0 %v437
        %471 = vmatpush.msra.mxu0 %v436
        %472 = vmatmul.f32.gmra.mxu0 %v435
        %v473 = vpop.f32.mrf.mxu0
        %v474 = vadd.f32 %v454, %v473
        %475 = vdwg.mxu0
        %v476 = vmax.f32 %v474, 0.0
        %v477 = vld [vmem:[#allocation8] sm:$0xff]
        %v478 = vld [vmem:[#allocation8 + $0x8] sm:$0xff]
        %v479 = vld [vmem:[#allocation8 + $0x10] sm:$0xff]
        %v480 = vld [vmem:[#allocation8 + $0x18] sm:$0xff]
        %v481 = vld [vmem:[#allocation8 + $0x20] sm:$0xff]
        %v482 = vld [vmem:[#allocation8 + $0x28] sm:$0xff]
        %v483 = vld [vmem:[#allocation8 + $0x30] sm:$0xff]
        %v484 = vld [vmem:[#allocation8 + $0x38] sm:$0xff]
        %v485 = vld [vmem:[#allocation8 + $0x40] sm:$0xff]
        %v486 = vld [vmem:[#allocation8 + $0x48] sm:$0xff]
        %v487 = vld [vmem:[#allocation8 + $0x50] sm:$0xff]
        %v488 = vld [vmem:[#allocation8 + $0x58] sm:$0xff]
        %v489 = vld [vmem:[#allocation8 + $0x60] sm:$0xff]
        %v490 = vld [vmem:[#allocation8 + $0x68] sm:$0xff]
        %v491 = vld [vmem:[#allocation8 + $0x70] sm:$0xff]
        %v492 = vld [vmem:[#allocation8 + $0x78] sm:$0xff]
        %v493 = vld [vmem:[#allocation8 + $0x80] sm:$0xff]
        %v494 = vld [vmem:[#allocation8 + $0x88] sm:$0xff]
        %v495 = vld [vmem:[#allocation8 + $0x90] sm:$0xff]
        %v496 = vld [vmem:[#allocation8 + $0x98] sm:$0xff]
        %v497 = vld [vmem:[#allocation8 + $0xa0] sm:$0xff]
        %v498 = vld [vmem:[#allocation8 + $0xa8] sm:$0xff]
        %v499 = vld [vmem:[#allocation8 + $0xb0] sm:$0xff]
        %v500 = vld [vmem:[#allocation8 + $0xb8] sm:$0xff]
        %v501 = vld [vmem:[#allocation8 + $0xc0] sm:$0xff]
        %v502 = vld [vmem:[#allocation8 + $0xc8] sm:$0xff]
        %v503 = vld [vmem:[#allocation8 + $0xd0] sm:$0xff]
        %v504 = vld [vmem:[#allocation8 + $0xd8] sm:$0xff]
        %v505 = vld [vmem:[#allocation8 + $0xe0] sm:$0xff]
        %v506 = vld [vmem:[#allocation8 + $0xe8] sm:$0xff]
        %v507 = vld [vmem:[#allocation8 + $0xf0] sm:$0xff]
        %v508 = vld [vmem:[#allocation8 + $0xf8] sm:$0xff]
        %v509 = vld [vmem:[#allocation10] sm:$0x3]
        %v511 = vperm.slane %v509, 0
        %v512 = vperm.slane %v509, 1
        %515 = vmatpush.msra.mxu0 %v507
        %516 = vmatpush.msra.mxu0 %v505
        %517 = vmatpush.msra.mxu0 %v503
        %518 = vmatpush.msra.mxu0 %v501
        %519 = vmatpush.msra.mxu0 %v499
        %520 = vmatpush.msra.mxu0 %v497
        %521 = vmatpush.msra.mxu0 %v495
        %522 = vmatpush.msra.mxu0 %v493
        %523 = vmatpush.msra.mxu0 %v491
        %524 = vmatpush.msra.mxu0 %v489
        %525 = vmatpush.msra.mxu0 %v487
        %526 = vmatpush.msra.mxu0 %v485
        %527 = vmatpush.msra.mxu0 %v483
        %528 = vmatpush.msra.mxu0 %v481
        %529 = vmatpush.msra.mxu0 %v479
        %530 = vmatpush.msra.mxu0 %v477
        %531 = vmatmul.f32.gmra.mxu0 %v476
        %v532 = vpop.f32.mrf.mxu0
        %v533 = vadd.f32 %v511, %v532
        %534 = vdwg.mxu0
        %535 = vmatpush.msra.mxu0 %v508
        %536 = vmatpush.msra.mxu0 %v506
        %537 = vmatpush.msra.mxu0 %v504
        %538 = vmatpush.msra.mxu0 %v502
        %539 = vmatpush.msra.mxu0 %v500
        %540 = vmatpush.msra.mxu0 %v498
        %541 = vmatpush.msra.mxu0 %v496
        %542 = vmatpush.msra.mxu0 %v494
        %543 = vmatpush.msra.mxu0 %v492
        %544 = vmatpush.msra.mxu0 %v490
        %545 = vmatpush.msra.mxu0 %v488
        %546 = vmatpush.msra.mxu0 %v486
        %547 = vmatpush.msra.mxu0 %v484
        %548 = vmatpush.msra.mxu0 %v482
        %549 = vmatpush.msra.mxu0 %v480
        %550 = vmatpush.msra.mxu0 %v478
        %551 = vmatmul.f32.gmra.mxu0 %v476
        %v552 = vpop.f32.mrf.mxu0
        %v553 = vadd.f32 %v512, %v552
        %554 = vdwg.mxu0
        %v555 = vmax.f32 %v533, 0.0
        %v556 = vmax.f32 %v553, 0.0
        %v557 = vpack.c.bf16 %v555, %v555
        %v558 = vpack.c.bf16 %v556, %v556
        %v559 = vld [vmem:[%s386] sm:$0xff]
        %v560 = vld [vmem:[%s386 + $0x8] sm:$0xff]
        %v561 = vld [vmem:[%s386 + $0x10] sm:$0xff]
        %v562 = vld [vmem:[%s386 + $0x18] sm:$0xff]
        %v563 = vld [vmem:[%s386 + $0x20] sm:$0xff]
        %v564 = vld [vmem:[%s386 + $0x28] sm:$0xff]
        %v565 = vld [vmem:[%s386 + $0x30] sm:$0xff]
        %v566 = vld [vmem:[%s386 + $0x38] sm:$0xff]
        %v567 = vld [vmem:[%s386 + $0x40] sm:$0xff]
        %v568 = vld [vmem:[%s386 + $0x48] sm:$0xff]
        %v569 = vld [vmem:[%s386 + $0x50] sm:$0xff]
        %v570 = vld [vmem:[%s386 + $0x58] sm:$0xff]
        %v571 = vld [vmem:[%s386 + $0x60] sm:$0xff]
        %v572 = vld [vmem:[%s386 + $0x68] sm:$0xff]
        %v573 = vld [vmem:[%s386 + $0x70] sm:$0xff]
        %v574 = vld [vmem:[%s386 + $0x78] sm:$0xff]
        %v575 = vld [vmem:[%s386 + $0x80] sm:$0xff]
        %v576 = vld [vmem:[%s386 + $0x88] sm:$0xff]
        %v577 = vld [vmem:[%s386 + $0x90] sm:$0xff]
        %v578 = vld [vmem:[%s386 + $0x98] sm:$0xff]
        %v579 = vld [vmem:[%s386 + $0xa0] sm:$0xff]
        %v580 = vld [vmem:[%s386 + $0xa8] sm:$0xff]
        %v581 = vld [vmem:[%s386 + $0xb0] sm:$0xff]
        %v582 = vld [vmem:[%s386 + $0xb8] sm:$0xff]
        %v583 = vld [vmem:[%s386 + $0xc0] sm:$0xff]
        %v584 = vld [vmem:[%s386 + $0xc8] sm:$0xff]
        %v585 = vld [vmem:[%s386 + $0xd0] sm:$0xff]
        %v586 = vld [vmem:[%s386 + $0xd8] sm:$0xff]
        %v587 = vld [vmem:[%s386 + $0xe0] sm:$0xff]
        %v588 = vld [vmem:[%s386 + $0xe8] sm:$0xff]
        %v589 = vld [vmem:[%s386 + $0xf0] sm:$0xff]
        %v590 = vld [vmem:[%s386 + $0xf8] sm:$0xff]
        %v591 = vld [vmem:[%s386 + $0x100] sm:$0xff]
        %v592 = vld [vmem:[%s386 + $0x108] sm:$0xff]
        %v593 = vld [vmem:[%s386 + $0x110] sm:$0xff]
        %v594 = vld [vmem:[%s386 + $0x118] sm:$0xff]
        %v595 = vld [vmem:[%s386 + $0x120] sm:$0xff]
        %v596 = vld [vmem:[%s386 + $0x128] sm:$0xff]
        %v597 = vld [vmem:[%s386 + $0x130] sm:$0xff]
        %v598 = vld [vmem:[%s386 + $0x138] sm:$0xff]
        %v599 = vld [vmem:[%s386 + $0x140] sm:$0xff]
        %v600 = vld [vmem:[%s386 + $0x148] sm:$0xff]
        %v601 = vld [vmem:[%s386 + $0x150] sm:$0xff]
        %v602 = vld [vmem:[%s386 + $0x158] sm:$0xff]
        %v603 = vld [vmem:[%s386 + $0x160] sm:$0xff]
        %v604 = vld [vmem:[%s386 + $0x168] sm:$0xff]
        %v605 = vld [vmem:[%s386 + $0x170] sm:$0xff]
        %v606 = vld [vmem:[%s386 + $0x178] sm:$0xff]
        %v607 = vld [vmem:[%s386 + $0x180] sm:$0xff]
        %v608 = vld [vmem:[%s386 + $0x188] sm:$0xff]
        %v609 = vld [vmem:[%s386 + $0x190] sm:$0xff]
        %v610 = vld [vmem:[%s386 + $0x198] sm:$0xff]
        %v611 = vld [vmem:[%s386 + $0x1a0] sm:$0xff]
        %v612 = vld [vmem:[%s386 + $0x1a8] sm:$0xff]
        %v613 = vld [vmem:[%s386 + $0x1b0] sm:$0xff]
        %v614 = vld [vmem:[%s386 + $0x1b8] sm:$0xff]
        %v615 = vld [vmem:[%s386 + $0x1c0] sm:$0xff]
        %v616 = vld [vmem:[%s386 + $0x1c8] sm:$0xff]
        %v617 = vld [vmem:[%s386 + $0x1d0] sm:$0xff]
        %v618 = vld [vmem:[%s386 + $0x1d8] sm:$0xff]
        %v619 = vld [vmem:[%s386 + $0x1e0] sm:$0xff]
        %v620 = vld [vmem:[%s386 + $0x1e8] sm:$0xff]
        %v621 = vld [vmem:[%s386 + $0x1f0] sm:$0xff]
        %v622 = vld [vmem:[%s386 + $0x1f8] sm:$0xff]
        %v623 = vld [vmem:[%s386 + $0x200] sm:$0xff]
        %v624 = vld [vmem:[%s386 + $0x208] sm:$0xff]
        %v625 = vld [vmem:[%s386 + $0x210] sm:$0xff]
        %v626 = vld [vmem:[%s386 + $0x218] sm:$0xff]
        %v627 = vld [vmem:[%s386 + $0x220] sm:$0xff]
        %v628 = vld [vmem:[%s386 + $0x228] sm:$0xff]
        %v629 = vld [vmem:[%s386 + $0x230] sm:$0xff]
        %v630 = vld [vmem:[%s386 + $0x238] sm:$0xff]
        %v631 = vld [vmem:[%s386 + $0x240] sm:$0xff]
        %v632 = vld [vmem:[%s386 + $0x248] sm:$0xff]
        %v633 = vld [vmem:[%s386 + $0x250] sm:$0xff]
        %v634 = vld [vmem:[%s386 + $0x258] sm:$0xff]
        %v635 = vld [vmem:[%s386 + $0x260] sm:$0xff]
        %v636 = vld [vmem:[%s386 + $0x268] sm:$0xff]
        %v637 = vld [vmem:[%s386 + $0x270] sm:$0xff]
        %v638 = vld [vmem:[%s386 + $0x278] sm:$0xff]
        %v639 = vld [vmem:[%s386 + $0x280] sm:$0xff]
        %v640 = vld [vmem:[%s386 + $0x288] sm:$0xff]
        %v641 = vld [vmem:[%s386 + $0x290] sm:$0xff]
        %v642 = vld [vmem:[%s386 + $0x298] sm:$0xff]
        %v643 = vld [vmem:[%s386 + $0x2a0] sm:$0xff]
        %v644 = vld [vmem:[%s386 + $0x2a8] sm:$0xff]
        %v645 = vld [vmem:[%s386 + $0x2b0] sm:$0xff]
        %v646 = vld [vmem:[%s386 + $0x2b8] sm:$0xff]
        %v647 = vld [vmem:[%s386 + $0x2c0] sm:$0xff]
        %v648 = vld [vmem:[%s386 + $0x2c8] sm:$0xff]
        %v649 = vld [vmem:[%s386 + $0x2d0] sm:$0xff]
        %v650 = vld [vmem:[%s386 + $0x2d8] sm:$0xff]
        %v651 = vld [vmem:[%s386 + $0x2e0] sm:$0xff]
        %v652 = vld [vmem:[%s386 + $0x2e8] sm:$0xff]
        %v653 = vld [vmem:[%s386 + $0x2f0] sm:$0xff]
        %v654 = vld [vmem:[%s386 + $0x2f8] sm:$0xff]
        %v655 = vld [vmem:[%s386 + $0x300] sm:$0xff]
        %v656 = vld [vmem:[%s386 + $0x308] sm:$0xff]
        %v657 = vld [vmem:[%s386 + $0x310] sm:$0xff]
        %v658 = vld [vmem:[%s386 + $0x318] sm:$0xff]
        %v659 = vld [vmem:[%s386 + $0x320] sm:$0xff]
        %v660 = vld [vmem:[%s386 + $0x328] sm:$0xff]
        %v661 = vld [vmem:[%s386 + $0x330] sm:$0xff]
        %v662 = vld [vmem:[%s386 + $0x338] sm:$0xff]
        %v663 = vld [vmem:[%s386 + $0x340] sm:$0xff]
        %v664 = vld [vmem:[%s386 + $0x348] sm:$0xff]
        %v665 = vld [vmem:[%s386 + $0x350] sm:$0xff]
        %v666 = vld [vmem:[%s386 + $0x358] sm:$0xff]
        %v667 = vld [vmem:[%s386 + $0x360] sm:$0xff]
        %v668 = vld [vmem:[%s386 + $0x368] sm:$0xff]
        %v669 = vld [vmem:[%s386 + $0x370] sm:$0xff]
        %v670 = vld [vmem:[%s386 + $0x378] sm:$0xff]
        %v671 = vld [vmem:[%s386 + $0x380] sm:$0xff]
        %v672 = vld [vmem:[%s386 + $0x388] sm:$0xff]
        %v673 = vld [vmem:[%s386 + $0x390] sm:$0xff]
        %v674 = vld [vmem:[%s386 + $0x398] sm:$0xff]
        %v675 = vld [vmem:[%s386 + $0x3a0] sm:$0xff]
        %v676 = vld [vmem:[%s386 + $0x3a8] sm:$0xff]
        %v677 = vld [vmem:[%s386 + $0x3b0] sm:$0xff]
        %v678 = vld [vmem:[%s386 + $0x3b8] sm:$0xff]
        %v679 = vld [vmem:[%s386 + $0x3c0] sm:$0xff]
        %v680 = vld [vmem:[%s386 + $0x3c8] sm:$0xff]
        %v681 = vld [vmem:[%s386 + $0x3d0] sm:$0xff]
        %v682 = vld [vmem:[%s386 + $0x3d8] sm:$0xff]
        %v683 = vld [vmem:[%s386 + $0x3e0] sm:$0xff]
        %v684 = vld [vmem:[%s386 + $0x3e8] sm:$0xff]
        %v685 = vld [vmem:[%s386 + $0x3f0] sm:$0xff]
        %v686 = vld [vmem:[%s386 + $0x3f8] sm:$0xff]
        %v687 = vld [vmem:[%s386 + $0x400] sm:$0xff]
        %v688 = vld [vmem:[%s386 + $0x408] sm:$0xff]
        %v689 = vld [vmem:[%s386 + $0x410] sm:$0xff]
        %v690 = vld [vmem:[%s386 + $0x418] sm:$0xff]
        %v691 = vld [vmem:[%s386 + $0x420] sm:$0xff]
        %v692 = vld [vmem:[%s386 + $0x428] sm:$0xff]
        %v693 = vld [vmem:[%s386 + $0x430] sm:$0xff]
        %v694 = vld [vmem:[%s386 + $0x438] sm:$0xff]
        %v695 = vld [vmem:[%s386 + $0x440] sm:$0xff]
        %v696 = vld [vmem:[%s386 + $0x448] sm:$0xff]
        %v697 = vld [vmem:[%s386 + $0x450] sm:$0xff]
        %v698 = vld [vmem:[%s386 + $0x458] sm:$0xff]
        %v699 = vld [vmem:[%s386 + $0x460] sm:$0xff]
        %v700 = vld [vmem:[%s386 + $0x468] sm:$0xff]
        %v701 = vld [vmem:[%s386 + $0x470] sm:$0xff]
        %v702 = vld [vmem:[%s386 + $0x478] sm:$0xff]
        %v703 = vld [vmem:[%s386 + $0x480] sm:$0xff]
        %v704 = vld [vmem:[%s386 + $0x488] sm:$0xff]
        %v705 = vld [vmem:[%s386 + $0x490] sm:$0xff]
        %v706 = vld [vmem:[%s386 + $0x498] sm:$0xff]
        %v707 = vld [vmem:[%s386 + $0x4a0] sm:$0xff]
        %v708 = vld [vmem:[%s386 + $0x4a8] sm:$0xff]
        %v709 = vld [vmem:[%s386 + $0x4b0] sm:$0xff]
        %v710 = vld [vmem:[%s386 + $0x4b8] sm:$0xff]
        %v711 = vld [vmem:[%s386 + $0x4c0] sm:$0xff]
        %v712 = vld [vmem:[%s386 + $0x4c8] sm:$0xff]
        %v713 = vld [vmem:[%s386 + $0x4d0] sm:$0xff]
        %v714 = vld [vmem:[%s386 + $0x4d8] sm:$0xff]
        %v715 = vld [vmem:[%s386 + $0x4e0] sm:$0xff]
        %v716 = vld [vmem:[%s386 + $0x4e8] sm:$0xff]
        %v717 = vld [vmem:[%s386 + $0x4f0] sm:$0xff]
        %v718 = vld [vmem:[%s386 + $0x4f8] sm:$0xff]
        %v719 = vld [vmem:[%s386 + $0x500] sm:$0xff]
        %v720 = vld [vmem:[%s386 + $0x508] sm:$0xff]
        %v721 = vld [vmem:[%s386 + $0x510] sm:$0xff]
        %v722 = vld [vmem:[%s386 + $0x518] sm:$0xff]
        %v723 = vld [vmem:[%s386 + $0x520] sm:$0xff]
        %v724 = vld [vmem:[%s386 + $0x528] sm:$0xff]
        %v725 = vld [vmem:[%s386 + $0x530] sm:$0xff]
        %v726 = vld [vmem:[%s386 + $0x538] sm:$0xff]
        %v727 = vld [vmem:[%s386 + $0x540] sm:$0xff]
        %v728 = vld [vmem:[%s386 + $0x548] sm:$0xff]
        %v729 = vld [vmem:[%s386 + $0x550] sm:$0xff]
        %v730 = vld [vmem:[%s386 + $0x558] sm:$0xff]
        %v731 = vld [vmem:[%s386 + $0x560] sm:$0xff]
        %v732 = vld [vmem:[%s386 + $0x568] sm:$0xff]
        %v733 = vld [vmem:[%s386 + $0x570] sm:$0xff]
        %v734 = vld [vmem:[%s386 + $0x578] sm:$0xff]
        %v735 = vld [vmem:[%s386 + $0x580] sm:$0xff]
        %v736 = vld [vmem:[%s386 + $0x588] sm:$0xff]
        %v737 = vld [vmem:[%s386 + $0x590] sm:$0xff]
        %v738 = vld [vmem:[%s386 + $0x598] sm:$0xff]
        %v739 = vld [vmem:[%s386 + $0x5a0] sm:$0xff]
        %v740 = vld [vmem:[%s386 + $0x5a8] sm:$0xff]
        %v741 = vld [vmem:[%s386 + $0x5b0] sm:$0xff]
        %v742 = vld [vmem:[%s386 + $0x5b8] sm:$0xff]
        %v743 = vld [vmem:[%s386 + $0x5c0] sm:$0xff]
        %v744 = vld [vmem:[%s386 + $0x5c8] sm:$0xff]
        %v745 = vld [vmem:[%s386 + $0x5d0] sm:$0xff]
        %v746 = vld [vmem:[%s386 + $0x5d8] sm:$0xff]
        %v747 = vld [vmem:[%s386 + $0x5e0] sm:$0xff]
        %v748 = vld [vmem:[%s386 + $0x5e8] sm:$0xff]
        %v749 = vld [vmem:[%s386 + $0x5f0] sm:$0xff]
        %v750 = vld [vmem:[%s386 + $0x5f8] sm:$0xff]
        %v751 = vld [vmem:[%s386 + $0x600] sm:$0xff]
        %v752 = vld [vmem:[%s386 + $0x608] sm:$0xff]
        %v753 = vld [vmem:[%s386 + $0x610] sm:$0xff]
        %v754 = vld [vmem:[%s386 + $0x618] sm:$0xff]
        %v755 = vld [vmem:[%s386 + $0x620] sm:$0xff]
        %v756 = vld [vmem:[%s386 + $0x628] sm:$0xff]
        %v757 = vld [vmem:[%s386 + $0x630] sm:$0xff]
        %v758 = vld [vmem:[%s386 + $0x638] sm:$0xff]
        %v759 = vld [vmem:[%s386 + $0x640] sm:$0xff]
        %v760 = vld [vmem:[%s386 + $0x648] sm:$0xff]
        %v761 = vld [vmem:[%s386 + $0x650] sm:$0xff]
        %v762 = vld [vmem:[%s386 + $0x658] sm:$0xff]
        %v763 = vld [vmem:[%s386 + $0x660] sm:$0xff]
        %v764 = vld [vmem:[%s386 + $0x668] sm:$0xff]
        %v765 = vld [vmem:[%s386 + $0x670] sm:$0xff]
        %v766 = vld [vmem:[%s386 + $0x678] sm:$0xff]
        %v767 = vld [vmem:[%s386 + $0x680] sm:$0xff]
        %v768 = vld [vmem:[%s386 + $0x688] sm:$0xff]
        %v769 = vld [vmem:[%s386 + $0x690] sm:$0xff]
        %v770 = vld [vmem:[%s386 + $0x698] sm:$0xff]
        %v771 = vld [vmem:[%s386 + $0x6a0] sm:$0xff]
        %v772 = vld [vmem:[%s386 + $0x6a8] sm:$0xff]
        %v773 = vld [vmem:[%s386 + $0x6b0] sm:$0xff]
        %v774 = vld [vmem:[%s386 + $0x6b8] sm:$0xff]
        %v775 = vld [vmem:[%s386 + $0x6c0] sm:$0xff]
        %v776 = vld [vmem:[%s386 + $0x6c8] sm:$0xff]
        %v777 = vld [vmem:[%s386 + $0x6d0] sm:$0xff]
        %v778 = vld [vmem:[%s386 + $0x6d8] sm:$0xff]
        %v779 = vld [vmem:[%s386 + $0x6e0] sm:$0xff]
        %v780 = vld [vmem:[%s386 + $0x6e8] sm:$0xff]
        %v781 = vld [vmem:[%s386 + $0x6f0] sm:$0xff]
        %v782 = vld [vmem:[%s386 + $0x6f8] sm:$0xff]
        %v783 = vld [vmem:[%s386 + $0x700] sm:$0xff]
        %v784 = vld [vmem:[%s386 + $0x708] sm:$0xff]
        %v785 = vld [vmem:[%s386 + $0x710] sm:$0xff]
        %v786 = vld [vmem:[%s386 + $0x718] sm:$0xff]
        %v787 = vld [vmem:[%s386 + $0x720] sm:$0xff]
        %v788 = vld [vmem:[%s386 + $0x728] sm:$0xff]
        %v789 = vld [vmem:[%s386 + $0x730] sm:$0xff]
        %v790 = vld [vmem:[%s386 + $0x738] sm:$0xff]
        %v791 = vld [vmem:[%s386 + $0x740] sm:$0xff]
        %v792 = vld [vmem:[%s386 + $0x748] sm:$0xff]
        %v793 = vld [vmem:[%s386 + $0x750] sm:$0xff]
        %v794 = vld [vmem:[%s386 + $0x758] sm:$0xff]
        %v795 = vld [vmem:[%s386 + $0x760] sm:$0xff]
        %v796 = vld [vmem:[%s386 + $0x768] sm:$0xff]
        %v797 = vld [vmem:[%s386 + $0x770] sm:$0xff]
        %v798 = vld [vmem:[%s386 + $0x778] sm:$0xff]
        %v799 = vld [vmem:[%s386 + $0x780] sm:$0xff]
        %v800 = vld [vmem:[%s386 + $0x788] sm:$0xff]
        %v801 = vld [vmem:[%s386 + $0x790] sm:$0xff]
        %v802 = vld [vmem:[%s386 + $0x798] sm:$0xff]
        %v803 = vld [vmem:[%s386 + $0x7a0] sm:$0xff]
        %v804 = vld [vmem:[%s386 + $0x7a8] sm:$0xff]
        %v805 = vld [vmem:[%s386 + $0x7b0] sm:$0xff]
        %v806 = vld [vmem:[%s386 + $0x7b8] sm:$0xff]
        %v807 = vld [vmem:[%s386 + $0x7c0] sm:$0xff]
        %v808 = vld [vmem:[%s386 + $0x7c8] sm:$0xff]
        %v809 = vld [vmem:[%s386 + $0x7d0] sm:$0xff]
        %v810 = vld [vmem:[%s386 + $0x7d8] sm:$0xff]
        %v811 = vld [vmem:[%s386 + $0x7e0] sm:$0xff]
        %v812 = vld [vmem:[%s386 + $0x7e8] sm:$0xff]
        %v813 = vld [vmem:[%s386 + $0x7f0] sm:$0xff]
        %v814 = vld [vmem:[%s386 + $0x7f8] sm:$0xff]
        %v815 = vld [vmem:[%s386 + $0x800] sm:$0xff]
        %v816 = vld [vmem:[%s386 + $0x808] sm:$0xff]
        %v817 = vld [vmem:[%s386 + $0x810] sm:$0xff]
        %v818 = vld [vmem:[%s386 + $0x818] sm:$0xff]
        %v819 = vld [vmem:[%s386 + $0x820] sm:$0xff]
        %v820 = vld [vmem:[%s386 + $0x828] sm:$0xff]
        %v821 = vld [vmem:[%s386 + $0x830] sm:$0xff]
        %v822 = vld [vmem:[%s386 + $0x838] sm:$0xff]
        %v823 = vld [vmem:[%s386 + $0x840] sm:$0xff]
        %v824 = vld [vmem:[%s386 + $0x848] sm:$0xff]
        %v825 = vld [vmem:[%s386 + $0x850] sm:$0xff]
        %v826 = vld [vmem:[%s386 + $0x858] sm:$0xff]
        %v827 = vld [vmem:[%s386 + $0x860] sm:$0xff]
        %v828 = vld [vmem:[%s386 + $0x868] sm:$0xff]
        %v829 = vld [vmem:[%s386 + $0x870] sm:$0xff]
        %v830 = vld [vmem:[%s386 + $0x878] sm:$0xff]
        %v831 = vld [vmem:[%s386 + $0x880] sm:$0xff]
        %v832 = vld [vmem:[%s386 + $0x888] sm:$0xff]
        %v833 = vld [vmem:[%s386 + $0x890] sm:$0xff]
        %v834 = vld [vmem:[%s386 + $0x898] sm:$0xff]
        %v835 = vld [vmem:[%s386 + $0x8a0] sm:$0xff]
        %v836 = vld [vmem:[%s386 + $0x8a8] sm:$0xff]
        %v837 = vld [vmem:[%s386 + $0x8b0] sm:$0xff]
        %v838 = vld [vmem:[%s386 + $0x8b8] sm:$0xff]
        %v839 = vld [vmem:[%s386 + $0x8c0] sm:$0xff]
        %v840 = vld [vmem:[%s386 + $0x8c8] sm:$0xff]
        %v841 = vld [vmem:[%s386 + $0x8d0] sm:$0xff]
        %v842 = vld [vmem:[%s386 + $0x8d8] sm:$0xff]
        %v843 = vld [vmem:[%s386 + $0x8e0] sm:$0xff]
        %v844 = vld [vmem:[%s386 + $0x8e8] sm:$0xff]
        %v845 = vld [vmem:[%s386 + $0x8f0] sm:$0xff]
        %v846 = vld [vmem:[%s386 + $0x8f8] sm:$0xff]
        %v847 = vld [vmem:[%s386 + $0x900] sm:$0xff]
        %v848 = vld [vmem:[%s386 + $0x908] sm:$0xff]
        %v849 = vld [vmem:[%s386 + $0x910] sm:$0xff]
        %v850 = vld [vmem:[%s386 + $0x918] sm:$0xff]
        %v851 = vld [vmem:[%s386 + $0x920] sm:$0xff]
        %v852 = vld [vmem:[%s386 + $0x928] sm:$0xff]
        %v853 = vld [vmem:[%s386 + $0x930] sm:$0xff]
        %v854 = vld [vmem:[%s386 + $0x938] sm:$0xff]
        %v855 = vld [vmem:[%s386 + $0x940] sm:$0xff]
        %v856 = vld [vmem:[%s386 + $0x948] sm:$0xff]
        %v857 = vld [vmem:[%s386 + $0x950] sm:$0xff]
        %v858 = vld [vmem:[%s386 + $0x958] sm:$0xff]
        %v859 = vld [vmem:[%s386 + $0x960] sm:$0xff]
        %v860 = vld [vmem:[%s386 + $0x968] sm:$0xff]
        %v861 = vld [vmem:[%s386 + $0x970] sm:$0xff]
        %v862 = vld [vmem:[%s386 + $0x978] sm:$0xff]
        %v863 = vld [vmem:[%s386 + $0x980] sm:$0xff]
        %v864 = vld [vmem:[%s386 + $0x988] sm:$0xff]
        %v865 = vld [vmem:[%s386 + $0x990] sm:$0xff]
        %v866 = vld [vmem:[%s386 + $0x998] sm:$0xff]
        %v867 = vld [vmem:[%s386 + $0x9a0] sm:$0xff]
        %v868 = vld [vmem:[%s386 + $0x9a8] sm:$0xff]
        %v869 = vld [vmem:[%s386 + $0x9b0] sm:$0xff]
        %v870 = vld [vmem:[%s386 + $0x9b8] sm:$0xff]
        %v871 = vld [vmem:[%s386 + $0x9c0] sm:$0xff]
        %v872 = vld [vmem:[%s386 + $0x9c8] sm:$0xff]
        %v873 = vld [vmem:[%s386 + $0x9d0] sm:$0xff]
        %v874 = vld [vmem:[%s386 + $0x9d8] sm:$0xff]
        %v875 = vld [vmem:[%s386 + $0x9e0] sm:$0xff]
        %v876 = vld [vmem:[%s386 + $0x9e8] sm:$0xff]
        %v877 = vld [vmem:[%s386 + $0x9f0] sm:$0xff]
        %v878 = vld [vmem:[%s386 + $0x9f8] sm:$0xff]
        %v879 = vld [vmem:[%s386 + $0xa00] sm:$0xff]
        %v880 = vld [vmem:[%s386 + $0xa08] sm:$0xff]
        %v881 = vld [vmem:[%s386 + $0xa10] sm:$0xff]
        %v882 = vld [vmem:[%s386 + $0xa18] sm:$0xff]
        %v883 = vld [vmem:[%s386 + $0xa20] sm:$0xff]
        %v884 = vld [vmem:[%s386 + $0xa28] sm:$0xff]
        %v885 = vld [vmem:[%s386 + $0xa30] sm:$0xff]
        %v886 = vld [vmem:[%s386 + $0xa38] sm:$0xff]
        %v887 = vld [vmem:[%s386 + $0xa40] sm:$0xff]
        %v888 = vld [vmem:[%s386 + $0xa48] sm:$0xff]
        %v889 = vld [vmem:[%s386 + $0xa50] sm:$0xff]
        %v890 = vld [vmem:[%s386 + $0xa58] sm:$0xff]
        %v891 = vld [vmem:[%s386 + $0xa60] sm:$0xff]
        %v892 = vld [vmem:[%s386 + $0xa68] sm:$0xff]
        %v893 = vld [vmem:[%s386 + $0xa70] sm:$0xff]
        %v894 = vld [vmem:[%s386 + $0xa78] sm:$0xff]
        %v895 = vld [vmem:[%s386 + $0xa80] sm:$0xff]
        %v896 = vld [vmem:[%s386 + $0xa88] sm:$0xff]
        %v897 = vld [vmem:[%s386 + $0xa90] sm:$0xff]
        %v898 = vld [vmem:[%s386 + $0xa98] sm:$0xff]
        %v899 = vld [vmem:[%s386 + $0xaa0] sm:$0xff]
        %v900 = vld [vmem:[%s386 + $0xaa8] sm:$0xff]
        %v901 = vld [vmem:[%s386 + $0xab0] sm:$0xff]
        %v902 = vld [vmem:[%s386 + $0xab8] sm:$0xff]
        %v903 = vld [vmem:[%s386 + $0xac0] sm:$0xff]
        %v904 = vld [vmem:[%s386 + $0xac8] sm:$0xff]
        %v905 = vld [vmem:[%s386 + $0xad0] sm:$0xff]
        %v906 = vld [vmem:[%s386 + $0xad8] sm:$0xff]
        %v907 = vld [vmem:[%s386 + $0xae0] sm:$0xff]
        %v908 = vld [vmem:[%s386 + $0xae8] sm:$0xff]
        %v909 = vld [vmem:[%s386 + $0xaf0] sm:$0xff]
        %v910 = vld [vmem:[%s386 + $0xaf8] sm:$0xff]
        %v911 = vld [vmem:[%s386 + $0xb00] sm:$0xff]
        %v912 = vld [vmem:[%s386 + $0xb08] sm:$0xff]
        %v913 = vld [vmem:[%s386 + $0xb10] sm:$0xff]
        %v914 = vld [vmem:[%s386 + $0xb18] sm:$0xff]
        %v915 = vld [vmem:[%s386 + $0xb20] sm:$0xff]
        %v916 = vld [vmem:[%s386 + $0xb28] sm:$0xff]
        %v917 = vld [vmem:[%s386 + $0xb30] sm:$0xff]
        %v918 = vld [vmem:[%s386 + $0xb38] sm:$0xff]
        %v919 = vld [vmem:[%s386 + $0xb40] sm:$0xff]
        %v920 = vld [vmem:[%s386 + $0xb48] sm:$0xff]
        %v921 = vld [vmem:[%s386 + $0xb50] sm:$0xff]
        %v922 = vld [vmem:[%s386 + $0xb58] sm:$0xff]
        %v923 = vld [vmem:[%s386 + $0xb60] sm:$0xff]
        %v924 = vld [vmem:[%s386 + $0xb68] sm:$0xff]
        %v925 = vld [vmem:[%s386 + $0xb70] sm:$0xff]
        %v926 = vld [vmem:[%s386 + $0xb78] sm:$0xff]
        %v927 = vld [vmem:[%s386 + $0xb80] sm:$0xff]
        %v928 = vld [vmem:[%s386 + $0xb88] sm:$0xff]
        %v929 = vld [vmem:[%s386 + $0xb90] sm:$0xff]
        %v930 = vld [vmem:[%s386 + $0xb98] sm:$0xff]
        %v931 = vld [vmem:[%s386 + $0xba0] sm:$0xff]
        %v932 = vld [vmem:[%s386 + $0xba8] sm:$0xff]
        %v933 = vld [vmem:[%s386 + $0xbb0] sm:$0xff]
        %v934 = vld [vmem:[%s386 + $0xbb8] sm:$0xff]
        %v935 = vld [vmem:[%s386 + $0xbc0] sm:$0xff]
        %v936 = vld [vmem:[%s386 + $0xbc8] sm:$0xff]
        %v937 = vld [vmem:[%s386 + $0xbd0] sm:$0xff]
        %v938 = vld [vmem:[%s386 + $0xbd8] sm:$0xff]
        %v939 = vld [vmem:[%s386 + $0xbe0] sm:$0xff]
        %v940 = vld [vmem:[%s386 + $0xbe8] sm:$0xff]
        %v941 = vld [vmem:[%s386 + $0xbf0] sm:$0xff]
        %v942 = vld [vmem:[%s386 + $0xbf8] sm:$0xff]
        %v943 = vld [vmem:[%s386 + $0xc00] sm:$0xff]
        %v944 = vld [vmem:[%s386 + $0xc08] sm:$0xff]
        %v945 = vld [vmem:[%s386 + $0xc10] sm:$0xff]
        %v946 = vld [vmem:[%s386 + $0xc18] sm:$0xff]
        %v947 = vld [vmem:[%s386 + $0xc20] sm:$0xff]
        %v948 = vld [vmem:[%s386 + $0xc28] sm:$0xff]
        %v949 = vld [vmem:[%s386 + $0xc30] sm:$0xff]
        %v950 = vld [vmem:[%s386 + $0xc38] sm:$0xff]
        %v951 = vld [vmem:[%s386 + $0xc40] sm:$0xff]
        %v952 = vld [vmem:[%s386 + $0xc48] sm:$0xff]
        %v953 = vld [vmem:[%s386 + $0xc50] sm:$0xff]
        %v954 = vld [vmem:[%s386 + $0xc58] sm:$0xff]
        %v955 = vld [vmem:[%s386 + $0xc60] sm:$0xff]
        %v956 = vld [vmem:[%s386 + $0xc68] sm:$0xff]
        %v957 = vld [vmem:[%s386 + $0xc70] sm:$0xff]
        %v958 = vld [vmem:[%s386 + $0xc78] sm:$0xff]
        %v959 = vld [vmem:[%s386 + $0xc80] sm:$0xff]
        %v960 = vld [vmem:[%s386 + $0xc88] sm:$0xff]
        %v961 = vld [vmem:[%s386 + $0xc90] sm:$0xff]
        %v962 = vld [vmem:[%s386 + $0xc98] sm:$0xff]
        %v963 = vld [vmem:[%s386 + $0xca0] sm:$0xff]
        %v964 = vld [vmem:[%s386 + $0xca8] sm:$0xff]
        %v965 = vld [vmem:[%s386 + $0xcb0] sm:$0xff]
        %v966 = vld [vmem:[%s386 + $0xcb8] sm:$0xff]
        %v967 = vld [vmem:[%s386 + $0xcc0] sm:$0xff]
        %v968 = vld [vmem:[%s386 + $0xcc8] sm:$0xff]
        %v969 = vld [vmem:[%s386 + $0xcd0] sm:$0xff]
        %v970 = vld [vmem:[%s386 + $0xcd8] sm:$0xff]
        %v971 = vld [vmem:[%s386 + $0xce0] sm:$0xff]
        %v972 = vld [vmem:[%s386 + $0xce8] sm:$0xff]
        %v973 = vld [vmem:[%s386 + $0xcf0] sm:$0xff]
        %v974 = vld [vmem:[%s386 + $0xcf8] sm:$0xff]
        %v975 = vld [vmem:[%s386 + $0xd00] sm:$0xff]
        %v976 = vld [vmem:[%s386 + $0xd08] sm:$0xff]
        %v977 = vld [vmem:[%s386 + $0xd10] sm:$0xff]
        %v978 = vld [vmem:[%s386 + $0xd18] sm:$0xff]
        %v979 = vld [vmem:[%s386 + $0xd20] sm:$0xff]
        %v980 = vld [vmem:[%s386 + $0xd28] sm:$0xff]
        %v981 = vld [vmem:[%s386 + $0xd30] sm:$0xff]
        %v982 = vld [vmem:[%s386 + $0xd38] sm:$0xff]
        %v983 = vld [vmem:[%s386 + $0xd40] sm:$0xff]
        %v984 = vld [vmem:[%s386 + $0xd48] sm:$0xff]
        %v985 = vld [vmem:[%s386 + $0xd50] sm:$0xff]
        %v986 = vld [vmem:[%s386 + $0xd58] sm:$0xff]
        %v987 = vld [vmem:[%s386 + $0xd60] sm:$0xff]
        %v988 = vld [vmem:[%s386 + $0xd68] sm:$0xff]
        %v989 = vld [vmem:[%s386 + $0xd70] sm:$0xff]
        %v990 = vld [vmem:[%s386 + $0xd78] sm:$0xff]
        %v991 = vld [vmem:[%s386 + $0xd80] sm:$0xff]
        %v992 = vld [vmem:[%s386 + $0xd88] sm:$0xff]
        %v993 = vld [vmem:[%s386 + $0xd90] sm:$0xff]
        %v994 = vld [vmem:[%s386 + $0xd98] sm:$0xff]
        %v995 = vld [vmem:[%s386 + $0xda0] sm:$0xff]
        %v996 = vld [vmem:[%s386 + $0xda8] sm:$0xff]
        %v997 = vld [vmem:[%s386 + $0xdb0] sm:$0xff]
        %v998 = vld [vmem:[%s386 + $0xdb8] sm:$0xff]
        %v999 = vld [vmem:[%s386 + $0xdc0] sm:$0xff]
        %v1000 = vld [vmem:[%s386 + $0xdc8] sm:$0xff]
        %v1001 = vld [vmem:[%s386 + $0xdd0] sm:$0xff]
        %v1002 = vld [vmem:[%s386 + $0xdd8] sm:$0xff]
        %v1003 = vld [vmem:[%s386 + $0xde0] sm:$0xff]
        %v1004 = vld [vmem:[%s386 + $0xde8] sm:$0xff]
        %v1005 = vld [vmem:[%s386 + $0xdf0] sm:$0xff]
        %v1006 = vld [vmem:[%s386 + $0xdf8] sm:$0xff]
        %v1007 = vld [vmem:[%s386 + $0xe00] sm:$0xff]
        %v1008 = vld [vmem:[%s386 + $0xe08] sm:$0xff]
        %v1009 = vld [vmem:[%s386 + $0xe10] sm:$0xff]
        %v1010 = vld [vmem:[%s386 + $0xe18] sm:$0xff]
        %v1011 = vld [vmem:[%s386 + $0xe20] sm:$0xff]
        %v1012 = vld [vmem:[%s386 + $0xe28] sm:$0xff]
        %v1013 = vld [vmem:[%s386 + $0xe30] sm:$0xff]
        %v1014 = vld [vmem:[%s386 + $0xe38] sm:$0xff]
        %v1015 = vld [vmem:[%s386 + $0xe40] sm:$0xff]
        %v1016 = vld [vmem:[%s386 + $0xe48] sm:$0xff]
        %v1017 = vld [vmem:[%s386 + $0xe50] sm:$0xff]
        %v1018 = vld [vmem:[%s386 + $0xe58] sm:$0xff]
        %v1019 = vld [vmem:[%s386 + $0xe60] sm:$0xff]
        %v1020 = vld [vmem:[%s386 + $0xe68] sm:$0xff]
        %v1021 = vld [vmem:[%s386 + $0xe70] sm:$0xff]
        %v1022 = vld [vmem:[%s386 + $0xe78] sm:$0xff]
        %v1023 = vld [vmem:[%s386 + $0xe80] sm:$0xff]
        %v1024 = vld [vmem:[%s386 + $0xe88] sm:$0xff]
        %v1025 = vld [vmem:[%s386 + $0xe90] sm:$0xff]
        %v1026 = vld [vmem:[%s386 + $0xe98] sm:$0xff]
        %v1027 = vld [vmem:[%s386 + $0xea0] sm:$0xff]
        %v1028 = vld [vmem:[%s386 + $0xea8] sm:$0xff]
        %v1029 = vld [vmem:[%s386 + $0xeb0] sm:$0xff]
        %v1030 = vld [vmem:[%s386 + $0xeb8] sm:$0xff]
        %v1031 = vld [vmem:[%s386 + $0xec0] sm:$0xff]
        %v1032 = vld [vmem:[%s386 + $0xec8] sm:$0xff]
        %v1033 = vld [vmem:[%s386 + $0xed0] sm:$0xff]
        %v1034 = vld [vmem:[%s386 + $0xed8] sm:$0xff]
        %v1035 = vld [vmem:[%s386 + $0xee0] sm:$0xff]
        %v1036 = vld [vmem:[%s386 + $0xee8] sm:$0xff]
        %v1037 = vld [vmem:[%s386 + $0xef0] sm:$0xff]
        %v1038 = vld [vmem:[%s386 + $0xef8] sm:$0xff]
        %v1039 = vld [vmem:[%s386 + $0xf00] sm:$0xff]
        %v1040 = vld [vmem:[%s386 + $0xf08] sm:$0xff]
        %v1041 = vld [vmem:[%s386 + $0xf10] sm:$0xff]
        %v1042 = vld [vmem:[%s386 + $0xf18] sm:$0xff]
        %v1043 = vld [vmem:[%s386 + $0xf20] sm:$0xff]
        %v1044 = vld [vmem:[%s386 + $0xf28] sm:$0xff]
        %v1045 = vld [vmem:[%s386 + $0xf30] sm:$0xff]
        %v1046 = vld [vmem:[%s386 + $0xf38] sm:$0xff]
        %v1047 = vld [vmem:[%s386 + $0xf40] sm:$0xff]
        %v1048 = vld [vmem:[%s386 + $0xf48] sm:$0xff]
        %v1049 = vld [vmem:[%s386 + $0xf50] sm:$0xff]
        %v1050 = vld [vmem:[%s386 + $0xf58] sm:$0xff]
        %v1051 = vld [vmem:[%s386 + $0xf60] sm:$0xff]
        %v1052 = vld [vmem:[%s386 + $0xf68] sm:$0xff]
        %v1053 = vld [vmem:[%s386 + $0xf70] sm:$0xff]
        %v1054 = vld [vmem:[%s386 + $0xf78] sm:$0xff]
        %v1055 = vld [vmem:[%s386 + $0xf80] sm:$0xff]
        %v1056 = vld [vmem:[%s386 + $0xf88] sm:$0xff]
        %v1057 = vld [vmem:[%s386 + $0xf90] sm:$0xff]
        %v1058 = vld [vmem:[%s386 + $0xf98] sm:$0xff]
        %v1059 = vld [vmem:[%s386 + $0xfa0] sm:$0xff]
        %v1060 = vld [vmem:[%s386 + $0xfa8] sm:$0xff]
        %v1061 = vld [vmem:[%s386 + $0xfb0] sm:$0xff]
        %v1062 = vld [vmem:[%s386 + $0xfb8] sm:$0xff]
        %v1063 = vld [vmem:[%s386 + $0xfc0] sm:$0xff]
        %v1064 = vld [vmem:[%s386 + $0xfc8] sm:$0xff]
        %v1065 = vld [vmem:[%s386 + $0xfd0] sm:$0xff]
        %v1066 = vld [vmem:[%s386 + $0xfd8] sm:$0xff]
        %v1067 = vld [vmem:[%s386 + $0xfe0] sm:$0xff]
        %v1068 = vld [vmem:[%s386 + $0xfe8] sm:$0xff]
        %v1069 = vld [vmem:[%s386 + $0xff0] sm:$0xff]
        %v1070 = vld [vmem:[%s386 + $0xff8] sm:$0xff]
        %v1071 = vld [vmem:[%s386 + $0x1000] sm:$0xff]
        %v1072 = vld [vmem:[%s386 + $0x1008] sm:$0xff]
        %v1073 = vld [vmem:[%s386 + $0x1010] sm:$0xff]
        %v1074 = vld [vmem:[%s386 + $0x1018] sm:$0xff]
        %v1075 = vld [vmem:[%s386 + $0x1020] sm:$0xff]
        %v1076 = vld [vmem:[%s386 + $0x1028] sm:$0xff]
        %v1077 = vld [vmem:[%s386 + $0x1030] sm:$0xff]
        %v1078 = vld [vmem:[%s386 + $0x1038] sm:$0xff]
        %v1079 = vld [vmem:[%s386 + $0x1040] sm:$0xff]
        %v1080 = vld [vmem:[%s386 + $0x1048] sm:$0xff]
        %v1081 = vld [vmem:[%s386 + $0x1050] sm:$0xff]
        %v1082 = vld [vmem:[%s386 + $0x1058] sm:$0xff]
        %v1083 = vld [vmem:[%s386 + $0x1060] sm:$0xff]
        %v1084 = vld [vmem:[%s386 + $0x1068] sm:$0xff]
        %v1085 = vld [vmem:[%s386 + $0x1070] sm:$0xff]
        %v1086 = vld [vmem:[%s386 + $0x1078] sm:$0xff]
        %v1087 = vld [vmem:[%s386 + $0x1080] sm:$0xff]
        %v1088 = vld [vmem:[%s386 + $0x1088] sm:$0xff]
        %v1089 = vld [vmem:[%s386 + $0x1090] sm:$0xff]
        %v1090 = vld [vmem:[%s386 + $0x1098] sm:$0xff]
        %v1091 = vld [vmem:[%s386 + $0x10a0] sm:$0xff]
        %v1092 = vld [vmem:[%s386 + $0x10a8] sm:$0xff]
        %v1093 = vld [vmem:[%s386 + $0x10b0] sm:$0xff]
        %v1094 = vld [vmem:[%s386 + $0x10b8] sm:$0xff]
        %v1095 = vld [vmem:[%s386 + $0x10c0] sm:$0xff]
        %v1096 = vld [vmem:[%s386 + $0x10c8] sm:$0xff]
        %v1097 = vld [vmem:[%s386 + $0x10d0] sm:$0xff]
        %v1098 = vld [vmem:[%s386 + $0x10d8] sm:$0xff]
        %v1099 = vld [vmem:[%s386 + $0x10e0] sm:$0xff]
        %v1100 = vld [vmem:[%s386 + $0x10e8] sm:$0xff]
        %v1101 = vld [vmem:[%s386 + $0x10f0] sm:$0xff]
        %v1102 = vld [vmem:[%s386 + $0x10f8] sm:$0xff]
        %v1103 = vld [vmem:[%s386 + $0x1100] sm:$0xff]
        %v1104 = vld [vmem:[%s386 + $0x1108] sm:$0xff]
        %v1105 = vld [vmem:[%s386 + $0x1110] sm:$0xff]
        %v1106 = vld [vmem:[%s386 + $0x1118] sm:$0xff]
        %v1107 = vld [vmem:[%s386 + $0x1120] sm:$0xff]
        %v1108 = vld [vmem:[%s386 + $0x1128] sm:$0xff]
        %v1109 = vld [vmem:[%s386 + $0x1130] sm:$0xff]
        %v1110 = vld [vmem:[%s386 + $0x1138] sm:$0xff]
        %v1111 = vld [vmem:[%s386 + $0x1140] sm:$0xff]
        %v1112 = vld [vmem:[%s386 + $0x1148] sm:$0xff]
        %v1113 = vld [vmem:[%s386 + $0x1150] sm:$0xff]
        %v1114 = vld [vmem:[%s386 + $0x1158] sm:$0xff]
        %v1115 = vld [vmem:[%s386 + $0x1160] sm:$0xff]
        %v1116 = vld [vmem:[%s386 + $0x1168] sm:$0xff]
        %v1117 = vld [vmem:[%s386 + $0x1170] sm:$0xff]
        %v1118 = vld [vmem:[%s386 + $0x1178] sm:$0xff]
        %v1119 = vld [vmem:[%s386 + $0x1180] sm:$0xff]
        %v1120 = vld [vmem:[%s386 + $0x1188] sm:$0xff]
        %v1121 = vld [vmem:[%s386 + $0x1190] sm:$0xff]
        %v1122 = vld [vmem:[%s386 + $0x1198] sm:$0xff]
        %v1123 = vld [vmem:[%s386 + $0x11a0] sm:$0xff]
        %v1124 = vld [vmem:[%s386 + $0x11a8] sm:$0xff]
        %v1125 = vld [vmem:[%s386 + $0x11b0] sm:$0xff]
        %v1126 = vld [vmem:[%s386 + $0x11b8] sm:$0xff]
        %v1127 = vld [vmem:[%s386 + $0x11c0] sm:$0xff]
        %v1128 = vld [vmem:[%s386 + $0x11c8] sm:$0xff]
        %v1129 = vld [vmem:[%s386 + $0x11d0] sm:$0xff]
        %v1130 = vld [vmem:[%s386 + $0x11d8] sm:$0xff]
        %v1131 = vld [vmem:[%s386 + $0x11e0] sm:$0xff]
        %v1132 = vld [vmem:[%s386 + $0x11e8] sm:$0xff]
        %v1133 = vld [vmem:[%s386 + $0x11f0] sm:$0xff]
        %v1134 = vld [vmem:[%s386 + $0x11f8] sm:$0xff]
        %v1135 = vld [vmem:[%s386 + $0x1200] sm:$0xff]
        %v1136 = vld [vmem:[%s386 + $0x1208] sm:$0xff]
        %v1137 = vld [vmem:[%s386 + $0x1210] sm:$0xff]
        %v1138 = vld [vmem:[%s386 + $0x1218] sm:$0xff]
        %v1139 = vld [vmem:[%s386 + $0x1220] sm:$0xff]
        %v1140 = vld [vmem:[%s386 + $0x1228] sm:$0xff]
        %v1141 = vld [vmem:[%s386 + $0x1230] sm:$0xff]
        %v1142 = vld [vmem:[%s386 + $0x1238] sm:$0xff]
        %v1143 = vld [vmem:[%s386 + $0x1240] sm:$0xff]
        %v1144 = vld [vmem:[%s386 + $0x1248] sm:$0xff]
        %v1145 = vld [vmem:[%s386 + $0x1250] sm:$0xff]
        %v1146 = vld [vmem:[%s386 + $0x1258] sm:$0xff]
        %v1147 = vld [vmem:[%s386 + $0x1260] sm:$0xff]
        %v1148 = vld [vmem:[%s386 + $0x1268] sm:$0xff]
        %v1149 = vld [vmem:[%s386 + $0x1270] sm:$0xff]
        %v1150 = vld [vmem:[%s386 + $0x1278] sm:$0xff]
        %v1151 = vld [vmem:[%s386 + $0x1280] sm:$0xff]
        %v1152 = vld [vmem:[%s386 + $0x1288] sm:$0xff]
        %v1153 = vld [vmem:[%s386 + $0x1290] sm:$0xff]
        %v1154 = vld [vmem:[%s386 + $0x1298] sm:$0xff]
        %v1155 = vld [vmem:[%s386 + $0x12a0] sm:$0xff]
        %v1156 = vld [vmem:[%s386 + $0x12a8] sm:$0xff]
        %v1157 = vld [vmem:[%s386 + $0x12b0] sm:$0xff]
        %v1158 = vld [vmem:[%s386 + $0x12b8] sm:$0xff]
        %v1159 = vld [vmem:[%s386 + $0x12c0] sm:$0xff]
        %v1160 = vld [vmem:[%s386 + $0x12c8] sm:$0xff]
        %v1161 = vld [vmem:[%s386 + $0x12d0] sm:$0xff]
        %v1162 = vld [vmem:[%s386 + $0x12d8] sm:$0xff]
        %v1163 = vld [vmem:[%s386 + $0x12e0] sm:$0xff]
        %v1164 = vld [vmem:[%s386 + $0x12e8] sm:$0xff]
        %v1165 = vld [vmem:[%s386 + $0x12f0] sm:$0xff]
        %v1166 = vld [vmem:[%s386 + $0x12f8] sm:$0xff]
        %v1167 = vld [vmem:[%s386 + $0x1300] sm:$0xff]
        %v1168 = vld [vmem:[%s386 + $0x1308] sm:$0xff]
        %v1169 = vld [vmem:[%s386 + $0x1310] sm:$0xff]
        %v1170 = vld [vmem:[%s386 + $0x1318] sm:$0xff]
        %v1171 = vld [vmem:[%s386 + $0x1320] sm:$0xff]
        %v1172 = vld [vmem:[%s386 + $0x1328] sm:$0xff]
        %v1173 = vld [vmem:[%s386 + $0x1330] sm:$0xff]
        %v1174 = vld [vmem:[%s386 + $0x1338] sm:$0xff]
        %v1175 = vld [vmem:[%s386 + $0x1340] sm:$0xff]
        %v1176 = vld [vmem:[%s386 + $0x1348] sm:$0xff]
        %v1177 = vld [vmem:[%s386 + $0x1350] sm:$0xff]
        %v1178 = vld [vmem:[%s386 + $0x1358] sm:$0xff]
        %v1179 = vld [vmem:[%s386 + $0x1360] sm:$0xff]
        %v1180 = vld [vmem:[%s386 + $0x1368] sm:$0xff]
        %v1181 = vld [vmem:[%s386 + $0x1370] sm:$0xff]
        %v1182 = vld [vmem:[%s386 + $0x1378] sm:$0xff]
        %v1183 = vld [vmem:[%s386 + $0x1380] sm:$0xff]
        %v1184 = vld [vmem:[%s386 + $0x1388] sm:$0xff]
        %v1185 = vld [vmem:[%s386 + $0x1390] sm:$0xff]
        %v1186 = vld [vmem:[%s386 + $0x1398] sm:$0xff]
        %v1187 = vld [vmem:[%s386 + $0x13a0] sm:$0xff]
        %v1188 = vld [vmem:[%s386 + $0x13a8] sm:$0xff]
        %v1189 = vld [vmem:[%s386 + $0x13b0] sm:$0xff]
        %v1190 = vld [vmem:[%s386 + $0x13b8] sm:$0xff]
        %v1191 = vld [vmem:[%s386 + $0x13c0] sm:$0xff]
        %v1192 = vld [vmem:[%s386 + $0x13c8] sm:$0xff]
        %v1193 = vld [vmem:[%s386 + $0x13d0] sm:$0xff]
        %v1194 = vld [vmem:[%s386 + $0x13d8] sm:$0xff]
        %v1195 = vld [vmem:[%s386 + $0x13e0] sm:$0xff]
        %v1196 = vld [vmem:[%s386 + $0x13e8] sm:$0xff]
        %v1197 = vld [vmem:[%s386 + $0x13f0] sm:$0xff]
        %v1198 = vld [vmem:[%s386 + $0x13f8] sm:$0xff]
        %v1199 = vld [vmem:[%s386 + $0x1400] sm:$0xff]
        %v1200 = vld [vmem:[%s386 + $0x1408] sm:$0xff]
        %v1201 = vld [vmem:[%s386 + $0x1410] sm:$0xff]
        %v1202 = vld [vmem:[%s386 + $0x1418] sm:$0xff]
        %v1203 = vld [vmem:[%s386 + $0x1420] sm:$0xff]
        %v1204 = vld [vmem:[%s386 + $0x1428] sm:$0xff]
        %v1205 = vld [vmem:[%s386 + $0x1430] sm:$0xff]
        %v1206 = vld [vmem:[%s386 + $0x1438] sm:$0xff]
        %v1207 = vld [vmem:[%s386 + $0x1440] sm:$0xff]
        %v1208 = vld [vmem:[%s386 + $0x1448] sm:$0xff]
        %v1209 = vld [vmem:[%s386 + $0x1450] sm:$0xff]
        %v1210 = vld [vmem:[%s386 + $0x1458] sm:$0xff]
        %v1211 = vld [vmem:[%s386 + $0x1460] sm:$0xff]
        %v1212 = vld [vmem:[%s386 + $0x1468] sm:$0xff]
        %v1213 = vld [vmem:[%s386 + $0x1470] sm:$0xff]
        %v1214 = vld [vmem:[%s386 + $0x1478] sm:$0xff]
        %v1215 = vld [vmem:[%s386 + $0x1480] sm:$0xff]
        %v1216 = vld [vmem:[%s386 + $0x1488] sm:$0xff]
        %v1217 = vld [vmem:[%s386 + $0x1490] sm:$0xff]
        %v1218 = vld [vmem:[%s386 + $0x1498] sm:$0xff]
        %v1219 = vld [vmem:[%s386 + $0x14a0] sm:$0xff]
        %v1220 = vld [vmem:[%s386 + $0x14a8] sm:$0xff]
        %v1221 = vld [vmem:[%s386 + $0x14b0] sm:$0xff]
        %v1222 = vld [vmem:[%s386 + $0x14b8] sm:$0xff]
        %v1223 = vld [vmem:[%s386 + $0x14c0] sm:$0xff]
        %v1224 = vld [vmem:[%s386 + $0x14c8] sm:$0xff]
        %v1225 = vld [vmem:[%s386 + $0x14d0] sm:$0xff]
        %v1226 = vld [vmem:[%s386 + $0x14d8] sm:$0xff]
        %v1227 = vld [vmem:[%s386 + $0x14e0] sm:$0xff]
        %v1228 = vld [vmem:[%s386 + $0x14e8] sm:$0xff]
        %v1229 = vld [vmem:[%s386 + $0x14f0] sm:$0xff]
        %v1230 = vld [vmem:[%s386 + $0x14f8] sm:$0xff]
        %v1231 = vld [vmem:[%s386 + $0x1500] sm:$0xff]
        %v1232 = vld [vmem:[%s386 + $0x1508] sm:$0xff]
        %v1233 = vld [vmem:[%s386 + $0x1510] sm:$0xff]
        %v1234 = vld [vmem:[%s386 + $0x1518] sm:$0xff]
        %v1235 = vld [vmem:[%s386 + $0x1520] sm:$0xff]
        %v1236 = vld [vmem:[%s386 + $0x1528] sm:$0xff]
        %v1237 = vld [vmem:[%s386 + $0x1530] sm:$0xff]
        %v1238 = vld [vmem:[%s386 + $0x1538] sm:$0xff]
        %v1239 = vld [vmem:[%s386 + $0x1540] sm:$0xff]
        %v1240 = vld [vmem:[%s386 + $0x1548] sm:$0xff]
        %v1241 = vld [vmem:[%s386 + $0x1550] sm:$0xff]
        %v1242 = vld [vmem:[%s386 + $0x1558] sm:$0xff]
        %v1243 = vld [vmem:[%s386 + $0x1560] sm:$0xff]
        %v1244 = vld [vmem:[%s386 + $0x1568] sm:$0xff]
        %v1245 = vld [vmem:[%s386 + $0x1570] sm:$0xff]
        %v1246 = vld [vmem:[%s386 + $0x1578] sm:$0xff]
        %v1247 = vld [vmem:[%s386 + $0x1580] sm:$0xff]
        %v1248 = vld [vmem:[%s386 + $0x1588] sm:$0xff]
        %v1249 = vld [vmem:[%s386 + $0x1590] sm:$0xff]
        %v1250 = vld [vmem:[%s386 + $0x1598] sm:$0xff]
        %v1251 = vld [vmem:[%s386 + $0x15a0] sm:$0xff]
        %v1252 = vld [vmem:[%s386 + $0x15a8] sm:$0xff]
        %v1253 = vld [vmem:[%s386 + $0x15b0] sm:$0xff]
        %v1254 = vld [vmem:[%s386 + $0x15b8] sm:$0xff]
        %v1255 = vld [vmem:[%s386 + $0x15c0] sm:$0xff]
        %v1256 = vld [vmem:[%s386 + $0x15c8] sm:$0xff]
        %v1257 = vld [vmem:[%s386 + $0x15d0] sm:$0xff]
        %v1258 = vld [vmem:[%s386 + $0x15d8] sm:$0xff]
        %v1259 = vld [vmem:[%s386 + $0x15e0] sm:$0xff]
        %v1260 = vld [vmem:[%s386 + $0x15e8] sm:$0xff]
        %v1261 = vld [vmem:[%s386 + $0x15f0] sm:$0xff]
        %v1262 = vld [vmem:[%s386 + $0x15f8] sm:$0xff]
        %v1263 = vld [vmem:[%s386 + $0x1600] sm:$0xff]
        %v1264 = vld [vmem:[%s386 + $0x1608] sm:$0xff]
        %v1265 = vld [vmem:[%s386 + $0x1610] sm:$0xff]
        %v1266 = vld [vmem:[%s386 + $0x1618] sm:$0xff]
        %v1267 = vld [vmem:[%s386 + $0x1620] sm:$0xff]
        %v1268 = vld [vmem:[%s386 + $0x1628] sm:$0xff]
        %v1269 = vld [vmem:[%s386 + $0x1630] sm:$0xff]
        %v1270 = vld [vmem:[%s386 + $0x1638] sm:$0xff]
        %v1271 = vld [vmem:[%s386 + $0x1640] sm:$0xff]
        %v1272 = vld [vmem:[%s386 + $0x1648] sm:$0xff]
        %v1273 = vld [vmem:[%s386 + $0x1650] sm:$0xff]
        %v1274 = vld [vmem:[%s386 + $0x1658] sm:$0xff]
        %v1275 = vld [vmem:[%s386 + $0x1660] sm:$0xff]
        %v1276 = vld [vmem:[%s386 + $0x1668] sm:$0xff]
        %v1277 = vld [vmem:[%s386 + $0x1670] sm:$0xff]
        %v1278 = vld [vmem:[%s386 + $0x1678] sm:$0xff]
        %v1279 = vld [vmem:[%s386 + $0x1680] sm:$0xff]
        %v1280 = vld [vmem:[%s386 + $0x1688] sm:$0xff]
        %v1281 = vld [vmem:[%s386 + $0x1690] sm:$0xff]
        %v1282 = vld [vmem:[%s386 + $0x1698] sm:$0xff]
        %v1283 = vld [vmem:[%s386 + $0x16a0] sm:$0xff]
        %v1284 = vld [vmem:[%s386 + $0x16a8] sm:$0xff]
        %v1285 = vld [vmem:[%s386 + $0x16b0] sm:$0xff]
        %v1286 = vld [vmem:[%s386 + $0x16b8] sm:$0xff]
        %v1287 = vld [vmem:[%s386 + $0x16c0] sm:$0xff]
        %v1288 = vld [vmem:[%s386 + $0x16c8] sm:$0xff]
        %v1289 = vld [vmem:[%s386 + $0x16d0] sm:$0xff]
        %v1290 = vld [vmem:[%s386 + $0x16d8] sm:$0xff]
        %v1291 = vld [vmem:[%s386 + $0x16e0] sm:$0xff]
        %v1292 = vld [vmem:[%s386 + $0x16e8] sm:$0xff]
        %v1293 = vld [vmem:[%s386 + $0x16f0] sm:$0xff]
        %v1294 = vld [vmem:[%s386 + $0x16f8] sm:$0xff]
        %v1295 = vld [vmem:[%s386 + $0x1700] sm:$0xff]
        %v1296 = vld [vmem:[%s386 + $0x1708] sm:$0xff]
        %v1297 = vld [vmem:[%s386 + $0x1710] sm:$0xff]
        %v1298 = vld [vmem:[%s386 + $0x1718] sm:$0xff]
        %v1299 = vld [vmem:[%s386 + $0x1720] sm:$0xff]
        %v1300 = vld [vmem:[%s386 + $0x1728] sm:$0xff]
        %v1301 = vld [vmem:[%s386 + $0x1730] sm:$0xff]
        %v1302 = vld [vmem:[%s386 + $0x1738] sm:$0xff]
        %v1303 = vld [vmem:[%s386 + $0x1740] sm:$0xff]
        %v1304 = vld [vmem:[%s386 + $0x1748] sm:$0xff]
        %v1305 = vld [vmem:[%s386 + $0x1750] sm:$0xff]
        %v1306 = vld [vmem:[%s386 + $0x1758] sm:$0xff]
        %v1307 = vld [vmem:[%s386 + $0x1760] sm:$0xff]
        %v1308 = vld [vmem:[%s386 + $0x1768] sm:$0xff]
        %v1309 = vld [vmem:[%s386 + $0x1770] sm:$0xff]
        %v1310 = vld [vmem:[%s386 + $0x1778] sm:$0xff]
        %v1311 = vld [vmem:[%s386 + $0x1780] sm:$0xff]
        %v1312 = vld [vmem:[%s386 + $0x1788] sm:$0xff]
        %v1313 = vld [vmem:[%s386 + $0x1790] sm:$0xff]
        %v1314 = vld [vmem:[%s386 + $0x1798] sm:$0xff]
        %v1315 = vld [vmem:[%s386 + $0x17a0] sm:$0xff]
        %v1316 = vld [vmem:[%s386 + $0x17a8] sm:$0xff]
        %v1317 = vld [vmem:[%s386 + $0x17b0] sm:$0xff]
        %v1318 = vld [vmem:[%s386 + $0x17b8] sm:$0xff]
        %v1319 = vld [vmem:[%s386 + $0x17c0] sm:$0xff]
        %v1320 = vld [vmem:[%s386 + $0x17c8] sm:$0xff]
        %v1321 = vld [vmem:[%s386 + $0x17d0] sm:$0xff]
        %v1322 = vld [vmem:[%s386 + $0x17d8] sm:$0xff]
        %v1323 = vld [vmem:[%s386 + $0x17e0] sm:$0xff]
        %v1324 = vld [vmem:[%s386 + $0x17e8] sm:$0xff]
        %v1325 = vld [vmem:[%s386 + $0x17f0] sm:$0xff]
        %v1326 = vld [vmem:[%s386 + $0x17f8] sm:$0xff]
        %v1327 = vld [vmem:[%s396] sm:$0xff]
        %v1328 = vld [vmem:[%s396 + $0x8] sm:$0xff]
        %v1329 = vld [vmem:[%s396 + $0x10] sm:$0xff]
        %v1330 = vld [vmem:[%s396 + $0x18] sm:$0xff]
        %v1331 = vld [vmem:[%s396 + $0x20] sm:$0xff]
        %v1332 = vld [vmem:[%s396 + $0x28] sm:$0xff]
        %v1339 = vperm.slane %v1327, 0
        %v1340 = vperm.slane %v1327, 1
        %v1341 = vperm.slane %v1327, 2
        %v1342 = vperm.slane %v1327, 3
        %v1343 = vperm.slane %v1327, 4
        %v1344 = vperm.slane %v1327, 5
        %v1345 = vperm.slane %v1327, 6
        %v1346 = vperm.slane %v1327, 7
        %v1347 = vperm.slane %v1328, 0
        %v1348 = vperm.slane %v1328, 1
        %v1349 = vperm.slane %v1328, 2
        %v1350 = vperm.slane %v1328, 3
        %v1351 = vperm.slane %v1328, 4
        %v1352 = vperm.slane %v1328, 5
        %v1353 = vperm.slane %v1328, 6
        %v1354 = vperm.slane %v1328, 7
        %v1355 = vperm.slane %v1329, 0
        %v1356 = vperm.slane %v1329, 1
        %v1357 = vperm.slane %v1329, 2
        %v1358 = vperm.slane %v1329, 3
        %v1359 = vperm.slane %v1329, 4
        %v1360 = vperm.slane %v1329, 5
        %v1361 = vperm.slane %v1329, 6
        %v1362 = vperm.slane %v1329, 7
        %v1363 = vperm.slane %v1330, 0
        %v1364 = vperm.slane %v1330, 1
        %v1365 = vperm.slane %v1330, 2
        %v1366 = vperm.slane %v1330, 3
        %v1367 = vperm.slane %v1330, 4
        %v1368 = vperm.slane %v1330, 5
        %v1369 = vperm.slane %v1330, 6
        %v1370 = vperm.slane %v1330, 7
        %v1371 = vperm.slane %v1331, 0
        %v1372 = vperm.slane %v1331, 1
        %v1373 = vperm.slane %v1331, 2
        %v1374 = vperm.slane %v1331, 3
        %v1375 = vperm.slane %v1331, 4
        %v1376 = vperm.slane %v1331, 5
        %v1377 = vperm.slane %v1331, 6
        %v1378 = vperm.slane %v1331, 7
        %v1379 = vperm.slane %v1332, 0
        %v1380 = vperm.slane %v1332, 1
        %v1381 = vperm.slane %v1332, 2
        %v1382 = vperm.slane %v1332, 3
        %v1383 = vperm.slane %v1332, 4
        %v1384 = vperm.slane %v1332, 5
        %v1385 = vperm.slane %v1332, 6
        %v1386 = vperm.slane %v1332, 7
        %v2203 = vunpack.c.l.b16 %v559
        %v2204 = vunpack.c.h.b16 %v559
        %v2205 = vunpack.c.l.b16 %v560
        %v2206 = vunpack.c.h.b16 %v560
        %v2207 = vunpack.c.l.b16 %v561
        %v2208 = vunpack.c.h.b16 %v561
        %v2209 = vunpack.c.l.b16 %v562
        %v2210 = vunpack.c.h.b16 %v562
        %v2211 = vunpack.c.l.b16 %v563
        %v2212 = vunpack.c.h.b16 %v563
        %v2213 = vunpack.c.l.b16 %v564
        %v2214 = vunpack.c.h.b16 %v564
        %v2215 = vunpack.c.l.b16 %v565
        %v2216 = vunpack.c.h.b16 %v565
        %v2217 = vunpack.c.l.b16 %v566
        %v2218 = vunpack.c.h.b16 %v566
        %v2219 = vunpack.c.l.b16 %v567
        %v2220 = vunpack.c.h.b16 %v567
        %v2221 = vunpack.c.l.b16 %v568
        %v2222 = vunpack.c.h.b16 %v568
        %v2223 = vunpack.c.l.b16 %v569
        %v2224 = vunpack.c.h.b16 %v569
        %v2225 = vunpack.c.l.b16 %v570
        %v2226 = vunpack.c.h.b16 %v570
        %v2227 = vunpack.c.l.b16 %v571
        %v2228 = vunpack.c.h.b16 %v571
        %v2229 = vunpack.c.l.b16 %v572
        %v2230 = vunpack.c.h.b16 %v572
        %v2231 = vunpack.c.l.b16 %v573
        %v2232 = vunpack.c.h.b16 %v573
        %v2233 = vunpack.c.l.b16 %v574
        %v2234 = vunpack.c.h.b16 %v574
        %v2235 = vunpack.c.l.b16 %v575
        %v2236 = vunpack.c.h.b16 %v575
        %v2237 = vunpack.c.l.b16 %v576
        %v2238 = vunpack.c.h.b16 %v576
        %v2239 = vunpack.c.l.b16 %v577
        %v2240 = vunpack.c.h.b16 %v577
        %v2241 = vunpack.c.l.b16 %v578
        %v2242 = vunpack.c.h.b16 %v578
        %v2243 = vunpack.c.l.b16 %v579
        %v2244 = vunpack.c.h.b16 %v579
        %v2245 = vunpack.c.l.b16 %v580
        %v2246 = vunpack.c.h.b16 %v580
        %v2247 = vunpack.c.l.b16 %v581
        %v2248 = vunpack.c.h.b16 %v581
        %v2249 = vunpack.c.l.b16 %v582
        %v2250 = vunpack.c.h.b16 %v582
        %v2251 = vunpack.c.l.b16 %v583
        %v2252 = vunpack.c.h.b16 %v583
        %v2253 = vunpack.c.l.b16 %v584
        %v2254 = vunpack.c.h.b16 %v584
        %v2255 = vunpack.c.l.b16 %v585
        %v2256 = vunpack.c.h.b16 %v585
        %v2257 = vunpack.c.l.b16 %v586
        %v2258 = vunpack.c.h.b16 %v586
        %v2259 = vunpack.c.l.b16 %v587
        %v2260 = vunpack.c.h.b16 %v587
        %v2261 = vunpack.c.l.b16 %v588
        %v2262 = vunpack.c.h.b16 %v588
        %v2263 = vunpack.c.l.b16 %v589
        %v2264 = vunpack.c.h.b16 %v589
        %v2265 = vunpack.c.l.b16 %v590
        %v2266 = vunpack.c.h.b16 %v590
        %v2267 = vunpack.c.l.b16 %v591
        %v2268 = vunpack.c.h.b16 %v591
        %v2269 = vunpack.c.l.b16 %v592
        %v2270 = vunpack.c.h.b16 %v592
        %v2271 = vunpack.c.l.b16 %v593
        %v2272 = vunpack.c.h.b16 %v593
        %v2273 = vunpack.c.l.b16 %v594
        %v2274 = vunpack.c.h.b16 %v594
        %v2275 = vunpack.c.l.b16 %v595
        %v2276 = vunpack.c.h.b16 %v595
        %v2277 = vunpack.c.l.b16 %v596
        %v2278 = vunpack.c.h.b16 %v596
        %v2279 = vunpack.c.l.b16 %v597
        %v2280 = vunpack.c.h.b16 %v597
        %v2281 = vunpack.c.l.b16 %v598
        %v2282 = vunpack.c.h.b16 %v598
        %v2283 = vunpack.c.l.b16 %v599
        %v2284 = vunpack.c.h.b16 %v599
        %v2285 = vunpack.c.l.b16 %v600
        %v2286 = vunpack.c.h.b16 %v600
        %v2287 = vunpack.c.l.b16 %v601
        %v2288 = vunpack.c.h.b16 %v601
        %v2289 = vunpack.c.l.b16 %v602
        %v2290 = vunpack.c.h.b16 %v602
        %v2291 = vunpack.c.l.b16 %v603
        %v2292 = vunpack.c.h.b16 %v603
        %v2293 = vunpack.c.l.b16 %v604
        %v2294 = vunpack.c.h.b16 %v604
        %v2295 = vunpack.c.l.b16 %v605
        %v2296 = vunpack.c.h.b16 %v605
        %v2297 = vunpack.c.l.b16 %v606
        %v2298 = vunpack.c.h.b16 %v606
        %v2299 = vunpack.c.l.b16 %v607
        %v2300 = vunpack.c.h.b16 %v607
        %v2301 = vunpack.c.l.b16 %v608
        %v2302 = vunpack.c.h.b16 %v608
        %v2303 = vunpack.c.l.b16 %v609
        %v2304 = vunpack.c.h.b16 %v609
        %v2305 = vunpack.c.l.b16 %v610
        %v2306 = vunpack.c.h.b16 %v610
        %v2307 = vunpack.c.l.b16 %v611
        %v2308 = vunpack.c.h.b16 %v611
        %v2309 = vunpack.c.l.b16 %v612
        %v2310 = vunpack.c.h.b16 %v612
        %v2311 = vunpack.c.l.b16 %v613
        %v2312 = vunpack.c.h.b16 %v613
        %v2313 = vunpack.c.l.b16 %v614
        %v2314 = vunpack.c.h.b16 %v614
        %v2315 = vunpack.c.l.b16 %v615
        %v2316 = vunpack.c.h.b16 %v615
        %v2317 = vunpack.c.l.b16 %v616
        %v2318 = vunpack.c.h.b16 %v616
        %v2319 = vunpack.c.l.b16 %v617
        %v2320 = vunpack.c.h.b16 %v617
        %v2321 = vunpack.c.l.b16 %v618
        %v2322 = vunpack.c.h.b16 %v618
        %v2323 = vunpack.c.l.b16 %v619
        %v2324 = vunpack.c.h.b16 %v619
        %v2325 = vunpack.c.l.b16 %v620
        %v2326 = vunpack.c.h.b16 %v620
        %v2327 = vunpack.c.l.b16 %v621
        %v2328 = vunpack.c.h.b16 %v621
        %v2329 = vunpack.c.l.b16 %v622
        %v2330 = vunpack.c.h.b16 %v622
        %v2331 = vunpack.c.l.b16 %v623
        %v2332 = vunpack.c.h.b16 %v623
        %v2333 = vunpack.c.l.b16 %v624
        %v2334 = vunpack.c.h.b16 %v624
        %v2335 = vunpack.c.l.b16 %v625
        %v2336 = vunpack.c.h.b16 %v625
        %v2337 = vunpack.c.l.b16 %v626
        %v2338 = vunpack.c.h.b16 %v626
        %v2339 = vunpack.c.l.b16 %v627
        %v2340 = vunpack.c.h.b16 %v627
        %v2341 = vunpack.c.l.b16 %v628
        %v2342 = vunpack.c.h.b16 %v628
        %v2343 = vunpack.c.l.b16 %v629
        %v2344 = vunpack.c.h.b16 %v629
        %v2345 = vunpack.c.l.b16 %v630
        %v2346 = vunpack.c.h.b16 %v630
        %v2347 = vunpack.c.l.b16 %v631
        %v2348 = vunpack.c.h.b16 %v631
        %v2349 = vunpack.c.l.b16 %v632
        %v2350 = vunpack.c.h.b16 %v632
        %v2351 = vunpack.c.l.b16 %v633
        %v2352 = vunpack.c.h.b16 %v633
        %v2353 = vunpack.c.l.b16 %v634
        %v2354 = vunpack.c.h.b16 %v634
        %v2355 = vunpack.c.l.b16 %v635
        %v2356 = vunpack.c.h.b16 %v635
        %v2357 = vunpack.c.l.b16 %v636
        %v2358 = vunpack.c.h.b16 %v636
        %v2359 = vunpack.c.l.b16 %v637
        %v2360 = vunpack.c.h.b16 %v637
        %v2361 = vunpack.c.l.b16 %v638
        %v2362 = vunpack.c.h.b16 %v638
        %v2363 = vunpack.c.l.b16 %v639
        %v2364 = vunpack.c.h.b16 %v639
        %v2365 = vunpack.c.l.b16 %v640
        %v2366 = vunpack.c.h.b16 %v640
        %v2367 = vunpack.c.l.b16 %v641
        %v2368 = vunpack.c.h.b16 %v641
        %v2369 = vunpack.c.l.b16 %v642
        %v2370 = vunpack.c.h.b16 %v642
        %v2371 = vunpack.c.l.b16 %v643
        %v2372 = vunpack.c.h.b16 %v643
        %v2373 = vunpack.c.l.b16 %v644
        %v2374 = vunpack.c.h.b16 %v644
        %v2375 = vunpack.c.l.b16 %v645
        %v2376 = vunpack.c.h.b16 %v645
        %v2377 = vunpack.c.l.b16 %v646
        %v2378 = vunpack.c.h.b16 %v646
        %v2379 = vunpack.c.l.b16 %v647
        %v2380 = vunpack.c.h.b16 %v647
        %v2381 = vunpack.c.l.b16 %v648
        %v2382 = vunpack.c.h.b16 %v648
        %v2383 = vunpack.c.l.b16 %v649
        %v2384 = vunpack.c.h.b16 %v649
        %v2385 = vunpack.c.l.b16 %v650
        %v2386 = vunpack.c.h.b16 %v650
        %v2387 = vunpack.c.l.b16 %v651
        %v2388 = vunpack.c.h.b16 %v651
        %v2389 = vunpack.c.l.b16 %v652
        %v2390 = vunpack.c.h.b16 %v652
        %v2391 = vunpack.c.l.b16 %v653
        %v2392 = vunpack.c.h.b16 %v653
        %v2393 = vunpack.c.l.b16 %v654
        %v2394 = vunpack.c.h.b16 %v654
        %v2395 = vunpack.c.l.b16 %v655
        %v2396 = vunpack.c.h.b16 %v655
        %v2397 = vunpack.c.l.b16 %v656
        %v2398 = vunpack.c.h.b16 %v656
        %v2399 = vunpack.c.l.b16 %v657
        %v2400 = vunpack.c.h.b16 %v657
        %v2401 = vunpack.c.l.b16 %v658
        %v2402 = vunpack.c.h.b16 %v658
        %v2403 = vunpack.c.l.b16 %v659
        %v2404 = vunpack.c.h.b16 %v659
        %v2405 = vunpack.c.l.b16 %v660
        %v2406 = vunpack.c.h.b16 %v660
        %v2407 = vunpack.c.l.b16 %v661
        %v2408 = vunpack.c.h.b16 %v661
        %v2409 = vunpack.c.l.b16 %v662
        %v2410 = vunpack.c.h.b16 %v662
        %v2411 = vunpack.c.l.b16 %v663
        %v2412 = vunpack.c.h.b16 %v663
        %v2413 = vunpack.c.l.b16 %v664
        %v2414 = vunpack.c.h.b16 %v664
        %v2415 = vunpack.c.l.b16 %v665
        %v2416 = vunpack.c.h.b16 %v665
        %v2417 = vunpack.c.l.b16 %v666
        %v2418 = vunpack.c.h.b16 %v666
        %v2419 = vunpack.c.l.b16 %v667
        %v2420 = vunpack.c.h.b16 %v667
        %v2421 = vunpack.c.l.b16 %v668
        %v2422 = vunpack.c.h.b16 %v668
        %v2423 = vunpack.c.l.b16 %v669
        %v2424 = vunpack.c.h.b16 %v669
        %v2425 = vunpack.c.l.b16 %v670
        %v2426 = vunpack.c.h.b16 %v670
        %v2427 = vunpack.c.l.b16 %v671
        %v2428 = vunpack.c.h.b16 %v671
        %v2429 = vunpack.c.l.b16 %v672
        %v2430 = vunpack.c.h.b16 %v672
        %v2431 = vunpack.c.l.b16 %v673
        %v2432 = vunpack.c.h.b16 %v673
        %v2433 = vunpack.c.l.b16 %v674
        %v2434 = vunpack.c.h.b16 %v674
        %v2435 = vunpack.c.l.b16 %v675
        %v2436 = vunpack.c.h.b16 %v675
        %v2437 = vunpack.c.l.b16 %v676
        %v2438 = vunpack.c.h.b16 %v676
        %v2439 = vunpack.c.l.b16 %v677
        %v2440 = vunpack.c.h.b16 %v677
        %v2441 = vunpack.c.l.b16 %v678
        %v2442 = vunpack.c.h.b16 %v678
        %v2443 = vunpack.c.l.b16 %v679
        %v2444 = vunpack.c.h.b16 %v679
        %v2445 = vunpack.c.l.b16 %v680
        %v2446 = vunpack.c.h.b16 %v680
        %v2447 = vunpack.c.l.b16 %v681
        %v2448 = vunpack.c.h.b16 %v681
        %v2449 = vunpack.c.l.b16 %v682
        %v2450 = vunpack.c.h.b16 %v682
        %v2451 = vunpack.c.l.b16 %v683
        %v2452 = vunpack.c.h.b16 %v683
        %v2453 = vunpack.c.l.b16 %v684
        %v2454 = vunpack.c.h.b16 %v684
        %v2455 = vunpack.c.l.b16 %v685
        %v2456 = vunpack.c.h.b16 %v685
        %v2457 = vunpack.c.l.b16 %v686
        %v2458 = vunpack.c.h.b16 %v686
        %v2459 = vunpack.c.l.b16 %v687
        %v2460 = vunpack.c.h.b16 %v687
        %v2461 = vunpack.c.l.b16 %v688
        %v2462 = vunpack.c.h.b16 %v688
        %v2463 = vunpack.c.l.b16 %v689
        %v2464 = vunpack.c.h.b16 %v689
        %v2465 = vunpack.c.l.b16 %v690
        %v2466 = vunpack.c.h.b16 %v690
        %v2467 = vunpack.c.l.b16 %v691
        %v2468 = vunpack.c.h.b16 %v691
        %v2469 = vunpack.c.l.b16 %v692
        %v2470 = vunpack.c.h.b16 %v692
        %v2471 = vunpack.c.l.b16 %v693
        %v2472 = vunpack.c.h.b16 %v693
        %v2473 = vunpack.c.l.b16 %v694
        %v2474 = vunpack.c.h.b16 %v694
        %v2475 = vunpack.c.l.b16 %v695
        %v2476 = vunpack.c.h.b16 %v695
        %v2477 = vunpack.c.l.b16 %v696
        %v2478 = vunpack.c.h.b16 %v696
        %v2479 = vunpack.c.l.b16 %v697
        %v2480 = vunpack.c.h.b16 %v697
        %v2481 = vunpack.c.l.b16 %v698
        %v2482 = vunpack.c.h.b16 %v698
        %v2483 = vunpack.c.l.b16 %v699
        %v2484 = vunpack.c.h.b16 %v699
        %v2485 = vunpack.c.l.b16 %v700
        %v2486 = vunpack.c.h.b16 %v700
        %v2487 = vunpack.c.l.b16 %v701
        %v2488 = vunpack.c.h.b16 %v701
        %v2489 = vunpack.c.l.b16 %v702
        %v2490 = vunpack.c.h.b16 %v702
        %v2491 = vunpack.c.l.b16 %v703
        %v2492 = vunpack.c.h.b16 %v703
        %v2493 = vunpack.c.l.b16 %v704
        %v2494 = vunpack.c.h.b16 %v704
        %v2495 = vunpack.c.l.b16 %v705
        %v2496 = vunpack.c.h.b16 %v705
        %v2497 = vunpack.c.l.b16 %v706
        %v2498 = vunpack.c.h.b16 %v706
        %v2499 = vunpack.c.l.b16 %v707
        %v2500 = vunpack.c.h.b16 %v707
        %v2501 = vunpack.c.l.b16 %v708
        %v2502 = vunpack.c.h.b16 %v708
        %v2503 = vunpack.c.l.b16 %v709
        %v2504 = vunpack.c.h.b16 %v709
        %v2505 = vunpack.c.l.b16 %v710
        %v2506 = vunpack.c.h.b16 %v710
        %v2507 = vunpack.c.l.b16 %v711
        %v2508 = vunpack.c.h.b16 %v711
        %v2509 = vunpack.c.l.b16 %v712
        %v2510 = vunpack.c.h.b16 %v712
        %v2511 = vunpack.c.l.b16 %v713
        %v2512 = vunpack.c.h.b16 %v713
        %v2513 = vunpack.c.l.b16 %v714
        %v2514 = vunpack.c.h.b16 %v714
        %v2515 = vunpack.c.l.b16 %v715
        %v2516 = vunpack.c.h.b16 %v715
        %v2517 = vunpack.c.l.b16 %v716
        %v2518 = vunpack.c.h.b16 %v716
        %v2519 = vunpack.c.l.b16 %v717
        %v2520 = vunpack.c.h.b16 %v717
        %v2521 = vunpack.c.l.b16 %v718
        %v2522 = vunpack.c.h.b16 %v718
        %v2523 = vunpack.c.l.b16 %v719
        %v2524 = vunpack.c.h.b16 %v719
        %v2525 = vunpack.c.l.b16 %v720
        %v2526 = vunpack.c.h.b16 %v720
        %v2527 = vunpack.c.l.b16 %v721
        %v2528 = vunpack.c.h.b16 %v721
        %v2529 = vunpack.c.l.b16 %v722
        %v2530 = vunpack.c.h.b16 %v722
        %v2531 = vunpack.c.l.b16 %v723
        %v2532 = vunpack.c.h.b16 %v723
        %v2533 = vunpack.c.l.b16 %v724
        %v2534 = vunpack.c.h.b16 %v724
        %v2535 = vunpack.c.l.b16 %v725
        %v2536 = vunpack.c.h.b16 %v725
        %v2537 = vunpack.c.l.b16 %v726
        %v2538 = vunpack.c.h.b16 %v726
        %v2539 = vunpack.c.l.b16 %v727
        %v2540 = vunpack.c.h.b16 %v727
        %v2541 = vunpack.c.l.b16 %v728
        %v2542 = vunpack.c.h.b16 %v728
        %v2543 = vunpack.c.l.b16 %v729
        %v2544 = vunpack.c.h.b16 %v729
        %v2545 = vunpack.c.l.b16 %v730
        %v2546 = vunpack.c.h.b16 %v730
        %v2547 = vunpack.c.l.b16 %v731
        %v2548 = vunpack.c.h.b16 %v731
        %v2549 = vunpack.c.l.b16 %v732
        %v2550 = vunpack.c.h.b16 %v732
        %v2551 = vunpack.c.l.b16 %v733
        %v2552 = vunpack.c.h.b16 %v733
        %v2553 = vunpack.c.l.b16 %v734
        %v2554 = vunpack.c.h.b16 %v734
        %v2555 = vunpack.c.l.b16 %v735
        %v2556 = vunpack.c.h.b16 %v735
        %v2557 = vunpack.c.l.b16 %v736
        %v2558 = vunpack.c.h.b16 %v736
        %v2559 = vunpack.c.l.b16 %v737
        %v2560 = vunpack.c.h.b16 %v737
        %v2561 = vunpack.c.l.b16 %v738
        %v2562 = vunpack.c.h.b16 %v738
        %v2563 = vunpack.c.l.b16 %v739
        %v2564 = vunpack.c.h.b16 %v739
        %v2565 = vunpack.c.l.b16 %v740
        %v2566 = vunpack.c.h.b16 %v740
        %v2567 = vunpack.c.l.b16 %v741
        %v2568 = vunpack.c.h.b16 %v741
        %v2569 = vunpack.c.l.b16 %v742
        %v2570 = vunpack.c.h.b16 %v742
        %v2571 = vunpack.c.l.b16 %v743
        %v2572 = vunpack.c.h.b16 %v743
        %v2573 = vunpack.c.l.b16 %v744
        %v2574 = vunpack.c.h.b16 %v744
        %v2575 = vunpack.c.l.b16 %v745
        %v2576 = vunpack.c.h.b16 %v745
        %v2577 = vunpack.c.l.b16 %v746
        %v2578 = vunpack.c.h.b16 %v746
        %v2579 = vunpack.c.l.b16 %v747
        %v2580 = vunpack.c.h.b16 %v747
        %v2581 = vunpack.c.l.b16 %v748
        %v2582 = vunpack.c.h.b16 %v748
        %v2583 = vunpack.c.l.b16 %v749
        %v2584 = vunpack.c.h.b16 %v749
        %v2585 = vunpack.c.l.b16 %v750
        %v2586 = vunpack.c.h.b16 %v750
        %v2587 = vunpack.c.l.b16 %v751
        %v2588 = vunpack.c.h.b16 %v751
        %v2589 = vunpack.c.l.b16 %v752
        %v2590 = vunpack.c.h.b16 %v752
        %v2591 = vunpack.c.l.b16 %v753
        %v2592 = vunpack.c.h.b16 %v753
        %v2593 = vunpack.c.l.b16 %v754
        %v2594 = vunpack.c.h.b16 %v754
        %v2595 = vunpack.c.l.b16 %v755
        %v2596 = vunpack.c.h.b16 %v755
        %v2597 = vunpack.c.l.b16 %v756
        %v2598 = vunpack.c.h.b16 %v756
        %v2599 = vunpack.c.l.b16 %v757
        %v2600 = vunpack.c.h.b16 %v757
        %v2601 = vunpack.c.l.b16 %v758
        %v2602 = vunpack.c.h.b16 %v758
        %v2603 = vunpack.c.l.b16 %v759
        %v2604 = vunpack.c.h.b16 %v759
        %v2605 = vunpack.c.l.b16 %v760
        %v2606 = vunpack.c.h.b16 %v760
        %v2607 = vunpack.c.l.b16 %v761
        %v2608 = vunpack.c.h.b16 %v761
        %v2609 = vunpack.c.l.b16 %v762
        %v2610 = vunpack.c.h.b16 %v762
        %v2611 = vunpack.c.l.b16 %v763
        %v2612 = vunpack.c.h.b16 %v763
        %v2613 = vunpack.c.l.b16 %v764
        %v2614 = vunpack.c.h.b16 %v764
        %v2615 = vunpack.c.l.b16 %v765
        %v2616 = vunpack.c.h.b16 %v765
        %v2617 = vunpack.c.l.b16 %v766
        %v2618 = vunpack.c.h.b16 %v766
        %v2619 = vunpack.c.l.b16 %v767
        %v2620 = vunpack.c.h.b16 %v767
        %v2621 = vunpack.c.l.b16 %v768
        %v2622 = vunpack.c.h.b16 %v768
        %v2623 = vunpack.c.l.b16 %v769
        %v2624 = vunpack.c.h.b16 %v769
        %v2625 = vunpack.c.l.b16 %v770
        %v2626 = vunpack.c.h.b16 %v770
        %v2627 = vunpack.c.l.b16 %v771
        %v2628 = vunpack.c.h.b16 %v771
        %v2629 = vunpack.c.l.b16 %v772
        %v2630 = vunpack.c.h.b16 %v772
        %v2631 = vunpack.c.l.b16 %v773
        %v2632 = vunpack.c.h.b16 %v773
        %v2633 = vunpack.c.l.b16 %v774
        %v2634 = vunpack.c.h.b16 %v774
        %v2635 = vunpack.c.l.b16 %v775
        %v2636 = vunpack.c.h.b16 %v775
        %v2637 = vunpack.c.l.b16 %v776
        %v2638 = vunpack.c.h.b16 %v776
        %v2639 = vunpack.c.l.b16 %v777
        %v2640 = vunpack.c.h.b16 %v777
        %v2641 = vunpack.c.l.b16 %v778
        %v2642 = vunpack.c.h.b16 %v778
        %v2643 = vunpack.c.l.b16 %v779
        %v2644 = vunpack.c.h.b16 %v779
        %v2645 = vunpack.c.l.b16 %v780
        %v2646 = vunpack.c.h.b16 %v780
        %v2647 = vunpack.c.l.b16 %v781
        %v2648 = vunpack.c.h.b16 %v781
        %v2649 = vunpack.c.l.b16 %v782
        %v2650 = vunpack.c.h.b16 %v782
        %v2651 = vunpack.c.l.b16 %v783
        %v2652 = vunpack.c.h.b16 %v783
        %v2653 = vunpack.c.l.b16 %v784
        %v2654 = vunpack.c.h.b16 %v784
        %v2655 = vunpack.c.l.b16 %v785
        %v2656 = vunpack.c.h.b16 %v785
        %v2657 = vunpack.c.l.b16 %v786
        %v2658 = vunpack.c.h.b16 %v786
        %v2659 = vunpack.c.l.b16 %v787
        %v2660 = vunpack.c.h.b16 %v787
        %v2661 = vunpack.c.l.b16 %v788
        %v2662 = vunpack.c.h.b16 %v788
        %v2663 = vunpack.c.l.b16 %v789
        %v2664 = vunpack.c.h.b16 %v789
        %v2665 = vunpack.c.l.b16 %v790
        %v2666 = vunpack.c.h.b16 %v790
        %v2667 = vunpack.c.l.b16 %v791
        %v2668 = vunpack.c.h.b16 %v791
        %v2669 = vunpack.c.l.b16 %v792
        %v2670 = vunpack.c.h.b16 %v792
        %v2671 = vunpack.c.l.b16 %v793
        %v2672 = vunpack.c.h.b16 %v793
        %v2673 = vunpack.c.l.b16 %v794
        %v2674 = vunpack.c.h.b16 %v794
        %v2675 = vunpack.c.l.b16 %v795
        %v2676 = vunpack.c.h.b16 %v795
        %v2677 = vunpack.c.l.b16 %v796
        %v2678 = vunpack.c.h.b16 %v796
        %v2679 = vunpack.c.l.b16 %v797
        %v2680 = vunpack.c.h.b16 %v797
        %v2681 = vunpack.c.l.b16 %v798
        %v2682 = vunpack.c.h.b16 %v798
        %v2683 = vunpack.c.l.b16 %v799
        %v2684 = vunpack.c.h.b16 %v799
        %v2685 = vunpack.c.l.b16 %v800
        %v2686 = vunpack.c.h.b16 %v800
        %v2687 = vunpack.c.l.b16 %v801
        %v2688 = vunpack.c.h.b16 %v801
        %v2689 = vunpack.c.l.b16 %v802
        %v2690 = vunpack.c.h.b16 %v802
        %v2691 = vunpack.c.l.b16 %v803
        %v2692 = vunpack.c.h.b16 %v803
        %v2693 = vunpack.c.l.b16 %v804
        %v2694 = vunpack.c.h.b16 %v804
        %v2695 = vunpack.c.l.b16 %v805
        %v2696 = vunpack.c.h.b16 %v805
        %v2697 = vunpack.c.l.b16 %v806
        %v2698 = vunpack.c.h.b16 %v806
        %v2699 = vunpack.c.l.b16 %v807
        %v2700 = vunpack.c.h.b16 %v807
        %v2701 = vunpack.c.l.b16 %v808
        %v2702 = vunpack.c.h.b16 %v808
        %v2703 = vunpack.c.l.b16 %v809
        %v2704 = vunpack.c.h.b16 %v809
        %v2705 = vunpack.c.l.b16 %v810
        %v2706 = vunpack.c.h.b16 %v810
        %v2707 = vunpack.c.l.b16 %v811
        %v2708 = vunpack.c.h.b16 %v811
        %v2709 = vunpack.c.l.b16 %v812
        %v2710 = vunpack.c.h.b16 %v812
        %v2711 = vunpack.c.l.b16 %v813
        %v2712 = vunpack.c.h.b16 %v813
        %v2713 = vunpack.c.l.b16 %v814
        %v2714 = vunpack.c.h.b16 %v814
        %v2715 = vunpack.c.l.b16 %v815
        %v2716 = vunpack.c.h.b16 %v815
        %v2717 = vunpack.c.l.b16 %v816
        %v2718 = vunpack.c.h.b16 %v816
        %v2719 = vunpack.c.l.b16 %v817
        %v2720 = vunpack.c.h.b16 %v817
        %v2721 = vunpack.c.l.b16 %v818
        %v2722 = vunpack.c.h.b16 %v818
        %v2723 = vunpack.c.l.b16 %v819
        %v2724 = vunpack.c.h.b16 %v819
        %v2725 = vunpack.c.l.b16 %v820
        %v2726 = vunpack.c.h.b16 %v820
        %v2727 = vunpack.c.l.b16 %v821
        %v2728 = vunpack.c.h.b16 %v821
        %v2729 = vunpack.c.l.b16 %v822
        %v2730 = vunpack.c.h.b16 %v822
        %v2731 = vunpack.c.l.b16 %v823
        %v2732 = vunpack.c.h.b16 %v823
        %v2733 = vunpack.c.l.b16 %v824
        %v2734 = vunpack.c.h.b16 %v824
        %v2735 = vunpack.c.l.b16 %v825
        %v2736 = vunpack.c.h.b16 %v825
        %v2737 = vunpack.c.l.b16 %v826
        %v2738 = vunpack.c.h.b16 %v826
        %v2739 = vunpack.c.l.b16 %v827
        %v2740 = vunpack.c.h.b16 %v827
        %v2741 = vunpack.c.l.b16 %v828
        %v2742 = vunpack.c.h.b16 %v828
        %v2743 = vunpack.c.l.b16 %v829
        %v2744 = vunpack.c.h.b16 %v829
        %v2745 = vunpack.c.l.b16 %v830
        %v2746 = vunpack.c.h.b16 %v830
        %v2747 = vunpack.c.l.b16 %v831
        %v2748 = vunpack.c.h.b16 %v831
        %v2749 = vunpack.c.l.b16 %v832
        %v2750 = vunpack.c.h.b16 %v832
        %v2751 = vunpack.c.l.b16 %v833
        %v2752 = vunpack.c.h.b16 %v833
        %v2753 = vunpack.c.l.b16 %v834
        %v2754 = vunpack.c.h.b16 %v834
        %v2755 = vunpack.c.l.b16 %v835
        %v2756 = vunpack.c.h.b16 %v835
        %v2757 = vunpack.c.l.b16 %v836
        %v2758 = vunpack.c.h.b16 %v836
        %v2759 = vunpack.c.l.b16 %v837
        %v2760 = vunpack.c.h.b16 %v837
        %v2761 = vunpack.c.l.b16 %v838
        %v2762 = vunpack.c.h.b16 %v838
        %v2763 = vunpack.c.l.b16 %v839
        %v2764 = vunpack.c.h.b16 %v839
        %v2765 = vunpack.c.l.b16 %v840
        %v2766 = vunpack.c.h.b16 %v840
        %v2767 = vunpack.c.l.b16 %v841
        %v2768 = vunpack.c.h.b16 %v841
        %v2769 = vunpack.c.l.b16 %v842
        %v2770 = vunpack.c.h.b16 %v842
        %v2771 = vunpack.c.l.b16 %v843
        %v2772 = vunpack.c.h.b16 %v843
        %v2773 = vunpack.c.l.b16 %v844
        %v2774 = vunpack.c.h.b16 %v844
        %v2775 = vunpack.c.l.b16 %v845
        %v2776 = vunpack.c.h.b16 %v845
        %v2777 = vunpack.c.l.b16 %v846
        %v2778 = vunpack.c.h.b16 %v846
        %v2779 = vunpack.c.l.b16 %v847
        %v2780 = vunpack.c.h.b16 %v847
        %v2781 = vunpack.c.l.b16 %v848
        %v2782 = vunpack.c.h.b16 %v848
        %v2783 = vunpack.c.l.b16 %v849
        %v2784 = vunpack.c.h.b16 %v849
        %v2785 = vunpack.c.l.b16 %v850
        %v2786 = vunpack.c.h.b16 %v850
        %v2787 = vunpack.c.l.b16 %v851
        %v2788 = vunpack.c.h.b16 %v851
        %v2789 = vunpack.c.l.b16 %v852
        %v2790 = vunpack.c.h.b16 %v852
        %v2791 = vunpack.c.l.b16 %v853
        %v2792 = vunpack.c.h.b16 %v853
        %v2793 = vunpack.c.l.b16 %v854
        %v2794 = vunpack.c.h.b16 %v854
        %v2795 = vunpack.c.l.b16 %v855
        %v2796 = vunpack.c.h.b16 %v855
        %v2797 = vunpack.c.l.b16 %v856
        %v2798 = vunpack.c.h.b16 %v856
        %v2799 = vunpack.c.l.b16 %v857
        %v2800 = vunpack.c.h.b16 %v857
        %v2801 = vunpack.c.l.b16 %v858
        %v2802 = vunpack.c.h.b16 %v858
        %v2803 = vunpack.c.l.b16 %v859
        %v2804 = vunpack.c.h.b16 %v859
        %v2805 = vunpack.c.l.b16 %v860
        %v2806 = vunpack.c.h.b16 %v860
        %v2807 = vunpack.c.l.b16 %v861
        %v2808 = vunpack.c.h.b16 %v861
        %v2809 = vunpack.c.l.b16 %v862
        %v2810 = vunpack.c.h.b16 %v862
        %v2811 = vunpack.c.l.b16 %v863
        %v2812 = vunpack.c.h.b16 %v863
        %v2813 = vunpack.c.l.b16 %v864
        %v2814 = vunpack.c.h.b16 %v864
        %v2815 = vunpack.c.l.b16 %v865
        %v2816 = vunpack.c.h.b16 %v865
        %v2817 = vunpack.c.l.b16 %v866
        %v2818 = vunpack.c.h.b16 %v866
        %v2819 = vunpack.c.l.b16 %v867
        %v2820 = vunpack.c.h.b16 %v867
        %v2821 = vunpack.c.l.b16 %v868
        %v2822 = vunpack.c.h.b16 %v868
        %v2823 = vunpack.c.l.b16 %v869
        %v2824 = vunpack.c.h.b16 %v869
        %v2825 = vunpack.c.l.b16 %v870
        %v2826 = vunpack.c.h.b16 %v870
        %v2827 = vunpack.c.l.b16 %v871
        %v2828 = vunpack.c.h.b16 %v871
        %v2829 = vunpack.c.l.b16 %v872
        %v2830 = vunpack.c.h.b16 %v872
        %v2831 = vunpack.c.l.b16 %v873
        %v2832 = vunpack.c.h.b16 %v873
        %v2833 = vunpack.c.l.b16 %v874
        %v2834 = vunpack.c.h.b16 %v874
        %v2835 = vunpack.c.l.b16 %v875
        %v2836 = vunpack.c.h.b16 %v875
        %v2837 = vunpack.c.l.b16 %v876
        %v2838 = vunpack.c.h.b16 %v876
        %v2839 = vunpack.c.l.b16 %v877
        %v2840 = vunpack.c.h.b16 %v877
        %v2841 = vunpack.c.l.b16 %v878
        %v2842 = vunpack.c.h.b16 %v878
        %v2843 = vunpack.c.l.b16 %v879
        %v2844 = vunpack.c.h.b16 %v879
        %v2845 = vunpack.c.l.b16 %v880
        %v2846 = vunpack.c.h.b16 %v880
        %v2847 = vunpack.c.l.b16 %v881
        %v2848 = vunpack.c.h.b16 %v881
        %v2849 = vunpack.c.l.b16 %v882
        %v2850 = vunpack.c.h.b16 %v882
        %v2851 = vunpack.c.l.b16 %v883
        %v2852 = vunpack.c.h.b16 %v883
        %v2853 = vunpack.c.l.b16 %v884
        %v2854 = vunpack.c.h.b16 %v884
        %v2855 = vunpack.c.l.b16 %v885
        %v2856 = vunpack.c.h.b16 %v885
        %v2857 = vunpack.c.l.b16 %v886
        %v2858 = vunpack.c.h.b16 %v886
        %v2859 = vunpack.c.l.b16 %v887
        %v2860 = vunpack.c.h.b16 %v887
        %v2861 = vunpack.c.l.b16 %v888
        %v2862 = vunpack.c.h.b16 %v888
        %v2863 = vunpack.c.l.b16 %v889
        %v2864 = vunpack.c.h.b16 %v889
        %v2865 = vunpack.c.l.b16 %v890
        %v2866 = vunpack.c.h.b16 %v890
        %v2867 = vunpack.c.l.b16 %v891
        %v2868 = vunpack.c.h.b16 %v891
        %v2869 = vunpack.c.l.b16 %v892
        %v2870 = vunpack.c.h.b16 %v892
        %v2871 = vunpack.c.l.b16 %v893
        %v2872 = vunpack.c.h.b16 %v893
        %v2873 = vunpack.c.l.b16 %v894
        %v2874 = vunpack.c.h.b16 %v894
        %v2875 = vunpack.c.l.b16 %v895
        %v2876 = vunpack.c.h.b16 %v895
        %v2877 = vunpack.c.l.b16 %v896
        %v2878 = vunpack.c.h.b16 %v896
        %v2879 = vunpack.c.l.b16 %v897
        %v2880 = vunpack.c.h.b16 %v897
        %v2881 = vunpack.c.l.b16 %v898
        %v2882 = vunpack.c.h.b16 %v898
        %v2883 = vunpack.c.l.b16 %v899
        %v2884 = vunpack.c.h.b16 %v899
        %v2885 = vunpack.c.l.b16 %v900
        %v2886 = vunpack.c.h.b16 %v900
        %v2887 = vunpack.c.l.b16 %v901
        %v2888 = vunpack.c.h.b16 %v901
        %v2889 = vunpack.c.l.b16 %v902
        %v2890 = vunpack.c.h.b16 %v902
        %v2891 = vunpack.c.l.b16 %v903
        %v2892 = vunpack.c.h.b16 %v903
        %v2893 = vunpack.c.l.b16 %v904
        %v2894 = vunpack.c.h.b16 %v904
        %v2895 = vunpack.c.l.b16 %v905
        %v2896 = vunpack.c.h.b16 %v905
        %v2897 = vunpack.c.l.b16 %v906
        %v2898 = vunpack.c.h.b16 %v906
        %v2899 = vunpack.c.l.b16 %v907
        %v2900 = vunpack.c.h.b16 %v907
        %v2901 = vunpack.c.l.b16 %v908
        %v2902 = vunpack.c.h.b16 %v908
        %v2903 = vunpack.c.l.b16 %v909
        %v2904 = vunpack.c.h.b16 %v909
        %v2905 = vunpack.c.l.b16 %v910
        %v2906 = vunpack.c.h.b16 %v910
        %v2907 = vunpack.c.l.b16 %v911
        %v2908 = vunpack.c.h.b16 %v911
        %v2909 = vunpack.c.l.b16 %v912
        %v2910 = vunpack.c.h.b16 %v912
        %v2911 = vunpack.c.l.b16 %v913
        %v2912 = vunpack.c.h.b16 %v913
        %v2913 = vunpack.c.l.b16 %v914
        %v2914 = vunpack.c.h.b16 %v914
        %v2915 = vunpack.c.l.b16 %v915
        %v2916 = vunpack.c.h.b16 %v915
        %v2917 = vunpack.c.l.b16 %v916
        %v2918 = vunpack.c.h.b16 %v916
        %v2919 = vunpack.c.l.b16 %v917
        %v2920 = vunpack.c.h.b16 %v917
        %v2921 = vunpack.c.l.b16 %v918
        %v2922 = vunpack.c.h.b16 %v918
        %v2923 = vunpack.c.l.b16 %v919
        %v2924 = vunpack.c.h.b16 %v919
        %v2925 = vunpack.c.l.b16 %v920
        %v2926 = vunpack.c.h.b16 %v920
        %v2927 = vunpack.c.l.b16 %v921
        %v2928 = vunpack.c.h.b16 %v921
        %v2929 = vunpack.c.l.b16 %v922
        %v2930 = vunpack.c.h.b16 %v922
        %v2931 = vunpack.c.l.b16 %v923
        %v2932 = vunpack.c.h.b16 %v923
        %v2933 = vunpack.c.l.b16 %v924
        %v2934 = vunpack.c.h.b16 %v924
        %v2935 = vunpack.c.l.b16 %v925
        %v2936 = vunpack.c.h.b16 %v925
        %v2937 = vunpack.c.l.b16 %v926
        %v2938 = vunpack.c.h.b16 %v926
        %v2939 = vunpack.c.l.b16 %v927
        %v2940 = vunpack.c.h.b16 %v927
        %v2941 = vunpack.c.l.b16 %v928
        %v2942 = vunpack.c.h.b16 %v928
        %v2943 = vunpack.c.l.b16 %v929
        %v2944 = vunpack.c.h.b16 %v929
        %v2945 = vunpack.c.l.b16 %v930
        %v2946 = vunpack.c.h.b16 %v930
        %v2947 = vunpack.c.l.b16 %v931
        %v2948 = vunpack.c.h.b16 %v931
        %v2949 = vunpack.c.l.b16 %v932
        %v2950 = vunpack.c.h.b16 %v932
        %v2951 = vunpack.c.l.b16 %v933
        %v2952 = vunpack.c.h.b16 %v933
        %v2953 = vunpack.c.l.b16 %v934
        %v2954 = vunpack.c.h.b16 %v934
        %v2955 = vunpack.c.l.b16 %v935
        %v2956 = vunpack.c.h.b16 %v935
        %v2957 = vunpack.c.l.b16 %v936
        %v2958 = vunpack.c.h.b16 %v936
        %v2959 = vunpack.c.l.b16 %v937
        %v2960 = vunpack.c.h.b16 %v937
        %v2961 = vunpack.c.l.b16 %v938
        %v2962 = vunpack.c.h.b16 %v938
        %v2963 = vunpack.c.l.b16 %v939
        %v2964 = vunpack.c.h.b16 %v939
        %v2965 = vunpack.c.l.b16 %v940
        %v2966 = vunpack.c.h.b16 %v940
        %v2967 = vunpack.c.l.b16 %v941
        %v2968 = vunpack.c.h.b16 %v941
        %v2969 = vunpack.c.l.b16 %v942
        %v2970 = vunpack.c.h.b16 %v942
        %v2971 = vunpack.c.l.b16 %v943
        %v2972 = vunpack.c.h.b16 %v943
        %v2973 = vunpack.c.l.b16 %v944
        %v2974 = vunpack.c.h.b16 %v944
        %v2975 = vunpack.c.l.b16 %v945
        %v2976 = vunpack.c.h.b16 %v945
        %v2977 = vunpack.c.l.b16 %v946
        %v2978 = vunpack.c.h.b16 %v946
        %v2979 = vunpack.c.l.b16 %v947
        %v2980 = vunpack.c.h.b16 %v947
        %v2981 = vunpack.c.l.b16 %v948
        %v2982 = vunpack.c.h.b16 %v948
        %v2983 = vunpack.c.l.b16 %v949
        %v2984 = vunpack.c.h.b16 %v949
        %v2985 = vunpack.c.l.b16 %v950
        %v2986 = vunpack.c.h.b16 %v950
        %v2987 = vunpack.c.l.b16 %v951
        %v2988 = vunpack.c.h.b16 %v951
        %v2989 = vunpack.c.l.b16 %v952
        %v2990 = vunpack.c.h.b16 %v952
        %v2991 = vunpack.c.l.b16 %v953
        %v2992 = vunpack.c.h.b16 %v953
        %v2993 = vunpack.c.l.b16 %v954
        %v2994 = vunpack.c.h.b16 %v954
        %v2995 = vunpack.c.l.b16 %v955
        %v2996 = vunpack.c.h.b16 %v955
        %v2997 = vunpack.c.l.b16 %v956
        %v2998 = vunpack.c.h.b16 %v956
        %v2999 = vunpack.c.l.b16 %v957
        %v3000 = vunpack.c.h.b16 %v957
        %v3001 = vunpack.c.l.b16 %v958
        %v3002 = vunpack.c.h.b16 %v958
        %v3003 = vunpack.c.l.b16 %v959
        %v3004 = vunpack.c.h.b16 %v959
        %v3005 = vunpack.c.l.b16 %v960
        %v3006 = vunpack.c.h.b16 %v960
        %v3007 = vunpack.c.l.b16 %v961
        %v3008 = vunpack.c.h.b16 %v961
        %v3009 = vunpack.c.l.b16 %v962
        %v3010 = vunpack.c.h.b16 %v962
        %v3011 = vunpack.c.l.b16 %v963
        %v3012 = vunpack.c.h.b16 %v963
        %v3013 = vunpack.c.l.b16 %v964
        %v3014 = vunpack.c.h.b16 %v964
        %v3015 = vunpack.c.l.b16 %v965
        %v3016 = vunpack.c.h.b16 %v965
        %v3017 = vunpack.c.l.b16 %v966
        %v3018 = vunpack.c.h.b16 %v966
        %v3019 = vunpack.c.l.b16 %v967
        %v3020 = vunpack.c.h.b16 %v967
        %v3021 = vunpack.c.l.b16 %v968
        %v3022 = vunpack.c.h.b16 %v968
        %v3023 = vunpack.c.l.b16 %v969
        %v3024 = vunpack.c.h.b16 %v969
        %v3025 = vunpack.c.l.b16 %v970
        %v3026 = vunpack.c.h.b16 %v970
        %v3027 = vunpack.c.l.b16 %v971
        %v3028 = vunpack.c.h.b16 %v971
        %v3029 = vunpack.c.l.b16 %v972
        %v3030 = vunpack.c.h.b16 %v972
        %v3031 = vunpack.c.l.b16 %v973
        %v3032 = vunpack.c.h.b16 %v973
        %v3033 = vunpack.c.l.b16 %v974
        %v3034 = vunpack.c.h.b16 %v974
        %v3035 = vunpack.c.l.b16 %v975
        %v3036 = vunpack.c.h.b16 %v975
        %v3037 = vunpack.c.l.b16 %v976
        %v3038 = vunpack.c.h.b16 %v976
        %v3039 = vunpack.c.l.b16 %v977
        %v3040 = vunpack.c.h.b16 %v977
        %v3041 = vunpack.c.l.b16 %v978
        %v3042 = vunpack.c.h.b16 %v978
        %v3043 = vunpack.c.l.b16 %v979
        %v3044 = vunpack.c.h.b16 %v979
        %v3045 = vunpack.c.l.b16 %v980
        %v3046 = vunpack.c.h.b16 %v980
        %v3047 = vunpack.c.l.b16 %v981
        %v3048 = vunpack.c.h.b16 %v981
        %v3049 = vunpack.c.l.b16 %v982
        %v3050 = vunpack.c.h.b16 %v982
        %v3051 = vunpack.c.l.b16 %v983
        %v3052 = vunpack.c.h.b16 %v983
        %v3053 = vunpack.c.l.b16 %v984
        %v3054 = vunpack.c.h.b16 %v984
        %v3055 = vunpack.c.l.b16 %v985
        %v3056 = vunpack.c.h.b16 %v985
        %v3057 = vunpack.c.l.b16 %v986
        %v3058 = vunpack.c.h.b16 %v986
        %v3059 = vunpack.c.l.b16 %v987
        %v3060 = vunpack.c.h.b16 %v987
        %v3061 = vunpack.c.l.b16 %v988
        %v3062 = vunpack.c.h.b16 %v988
        %v3063 = vunpack.c.l.b16 %v989
        %v3064 = vunpack.c.h.b16 %v989
        %v3065 = vunpack.c.l.b16 %v990
        %v3066 = vunpack.c.h.b16 %v990
        %v3067 = vunpack.c.l.b16 %v991
        %v3068 = vunpack.c.h.b16 %v991
        %v3069 = vunpack.c.l.b16 %v992
        %v3070 = vunpack.c.h.b16 %v992
        %v3071 = vunpack.c.l.b16 %v993
        %v3072 = vunpack.c.h.b16 %v993
        %v3073 = vunpack.c.l.b16 %v994
        %v3074 = vunpack.c.h.b16 %v994
        %v3075 = vunpack.c.l.b16 %v995
        %v3076 = vunpack.c.h.b16 %v995
        %v3077 = vunpack.c.l.b16 %v996
        %v3078 = vunpack.c.h.b16 %v996
        %v3079 = vunpack.c.l.b16 %v997
        %v3080 = vunpack.c.h.b16 %v997
        %v3081 = vunpack.c.l.b16 %v998
        %v3082 = vunpack.c.h.b16 %v998
        %v3083 = vunpack.c.l.b16 %v999
        %v3084 = vunpack.c.h.b16 %v999
        %v3085 = vunpack.c.l.b16 %v1000
        %v3086 = vunpack.c.h.b16 %v1000
        %v3087 = vunpack.c.l.b16 %v1001
        %v3088 = vunpack.c.h.b16 %v1001
        %v3089 = vunpack.c.l.b16 %v1002
        %v3090 = vunpack.c.h.b16 %v1002
        %v3091 = vunpack.c.l.b16 %v1003
        %v3092 = vunpack.c.h.b16 %v1003
        %v3093 = vunpack.c.l.b16 %v1004
        %v3094 = vunpack.c.h.b16 %v1004
        %v3095 = vunpack.c.l.b16 %v1005
        %v3096 = vunpack.c.h.b16 %v1005
        %v3097 = vunpack.c.l.b16 %v1006
        %v3098 = vunpack.c.h.b16 %v1006
        %v3099 = vunpack.c.l.b16 %v1007
        %v3100 = vunpack.c.h.b16 %v1007
        %v3101 = vunpack.c.l.b16 %v1008
        %v3102 = vunpack.c.h.b16 %v1008
        %v3103 = vunpack.c.l.b16 %v1009
        %v3104 = vunpack.c.h.b16 %v1009
        %v3105 = vunpack.c.l.b16 %v1010
        %v3106 = vunpack.c.h.b16 %v1010
        %v3107 = vunpack.c.l.b16 %v1011
        %v3108 = vunpack.c.h.b16 %v1011
        %v3109 = vunpack.c.l.b16 %v1012
        %v3110 = vunpack.c.h.b16 %v1012
        %v3111 = vunpack.c.l.b16 %v1013
        %v3112 = vunpack.c.h.b16 %v1013
        %v3113 = vunpack.c.l.b16 %v1014
        %v3114 = vunpack.c.h.b16 %v1014
        %v3115 = vunpack.c.l.b16 %v1015
        %v3116 = vunpack.c.h.b16 %v1015
        %v3117 = vunpack.c.l.b16 %v1016
        %v3118 = vunpack.c.h.b16 %v1016
        %v3119 = vunpack.c.l.b16 %v1017
        %v3120 = vunpack.c.h.b16 %v1017
        %v3121 = vunpack.c.l.b16 %v1018
        %v3122 = vunpack.c.h.b16 %v1018
        %v3123 = vunpack.c.l.b16 %v1019
        %v3124 = vunpack.c.h.b16 %v1019
        %v3125 = vunpack.c.l.b16 %v1020
        %v3126 = vunpack.c.h.b16 %v1020
        %v3127 = vunpack.c.l.b16 %v1021
        %v3128 = vunpack.c.h.b16 %v1021
        %v3129 = vunpack.c.l.b16 %v1022
        %v3130 = vunpack.c.h.b16 %v1022
        %v3131 = vunpack.c.l.b16 %v1023
        %v3132 = vunpack.c.h.b16 %v1023
        %v3133 = vunpack.c.l.b16 %v1024
        %v3134 = vunpack.c.h.b16 %v1024
        %v3135 = vunpack.c.l.b16 %v1025
        %v3136 = vunpack.c.h.b16 %v1025
        %v3137 = vunpack.c.l.b16 %v1026
        %v3138 = vunpack.c.h.b16 %v1026
        %v3139 = vunpack.c.l.b16 %v1027
        %v3140 = vunpack.c.h.b16 %v1027
        %v3141 = vunpack.c.l.b16 %v1028
        %v3142 = vunpack.c.h.b16 %v1028
        %v3143 = vunpack.c.l.b16 %v1029
        %v3144 = vunpack.c.h.b16 %v1029
        %v3145 = vunpack.c.l.b16 %v1030
        %v3146 = vunpack.c.h.b16 %v1030
        %v3147 = vunpack.c.l.b16 %v1031
        %v3148 = vunpack.c.h.b16 %v1031
        %v3149 = vunpack.c.l.b16 %v1032
        %v3150 = vunpack.c.h.b16 %v1032
        %v3151 = vunpack.c.l.b16 %v1033
        %v3152 = vunpack.c.h.b16 %v1033
        %v3153 = vunpack.c.l.b16 %v1034
        %v3154 = vunpack.c.h.b16 %v1034
        %v3155 = vunpack.c.l.b16 %v1035
        %v3156 = vunpack.c.h.b16 %v1035
        %v3157 = vunpack.c.l.b16 %v1036
        %v3158 = vunpack.c.h.b16 %v1036
        %v3159 = vunpack.c.l.b16 %v1037
        %v3160 = vunpack.c.h.b16 %v1037
        %v3161 = vunpack.c.l.b16 %v1038
        %v3162 = vunpack.c.h.b16 %v1038
        %v3163 = vunpack.c.l.b16 %v1039
        %v3164 = vunpack.c.h.b16 %v1039
        %v3165 = vunpack.c.l.b16 %v1040
        %v3166 = vunpack.c.h.b16 %v1040
        %v3167 = vunpack.c.l.b16 %v1041
        %v3168 = vunpack.c.h.b16 %v1041
        %v3169 = vunpack.c.l.b16 %v1042
        %v3170 = vunpack.c.h.b16 %v1042
        %v3171 = vunpack.c.l.b16 %v1043
        %v3172 = vunpack.c.h.b16 %v1043
        %v3173 = vunpack.c.l.b16 %v1044
        %v3174 = vunpack.c.h.b16 %v1044
        %v3175 = vunpack.c.l.b16 %v1045
        %v3176 = vunpack.c.h.b16 %v1045
        %v3177 = vunpack.c.l.b16 %v1046
        %v3178 = vunpack.c.h.b16 %v1046
        %v3179 = vunpack.c.l.b16 %v1047
        %v3180 = vunpack.c.h.b16 %v1047
        %v3181 = vunpack.c.l.b16 %v1048
        %v3182 = vunpack.c.h.b16 %v1048
        %v3183 = vunpack.c.l.b16 %v1049
        %v3184 = vunpack.c.h.b16 %v1049
        %v3185 = vunpack.c.l.b16 %v1050
        %v3186 = vunpack.c.h.b16 %v1050
        %v3187 = vunpack.c.l.b16 %v1051
        %v3188 = vunpack.c.h.b16 %v1051
        %v3189 = vunpack.c.l.b16 %v1052
        %v3190 = vunpack.c.h.b16 %v1052
        %v3191 = vunpack.c.l.b16 %v1053
        %v3192 = vunpack.c.h.b16 %v1053
        %v3193 = vunpack.c.l.b16 %v1054
        %v3194 = vunpack.c.h.b16 %v1054
        %v3195 = vunpack.c.l.b16 %v1055
        %v3196 = vunpack.c.h.b16 %v1055
        %v3197 = vunpack.c.l.b16 %v1056
        %v3198 = vunpack.c.h.b16 %v1056
        %v3199 = vunpack.c.l.b16 %v1057
        %v3200 = vunpack.c.h.b16 %v1057
        %v3201 = vunpack.c.l.b16 %v1058
        %v3202 = vunpack.c.h.b16 %v1058
        %v3203 = vunpack.c.l.b16 %v1059
        %v3204 = vunpack.c.h.b16 %v1059
        %v3205 = vunpack.c.l.b16 %v1060
        %v3206 = vunpack.c.h.b16 %v1060
        %v3207 = vunpack.c.l.b16 %v1061
        %v3208 = vunpack.c.h.b16 %v1061
        %v3209 = vunpack.c.l.b16 %v1062
        %v3210 = vunpack.c.h.b16 %v1062
        %v3211 = vunpack.c.l.b16 %v1063
        %v3212 = vunpack.c.h.b16 %v1063
        %v3213 = vunpack.c.l.b16 %v1064
        %v3214 = vunpack.c.h.b16 %v1064
        %v3215 = vunpack.c.l.b16 %v1065
        %v3216 = vunpack.c.h.b16 %v1065
        %v3217 = vunpack.c.l.b16 %v1066
        %v3218 = vunpack.c.h.b16 %v1066
        %v3219 = vunpack.c.l.b16 %v1067
        %v3220 = vunpack.c.h.b16 %v1067
        %v3221 = vunpack.c.l.b16 %v1068
        %v3222 = vunpack.c.h.b16 %v1068
        %v3223 = vunpack.c.l.b16 %v1069
        %v3224 = vunpack.c.h.b16 %v1069
        %v3225 = vunpack.c.l.b16 %v1070
        %v3226 = vunpack.c.h.b16 %v1070
        %v3227 = vunpack.c.l.b16 %v1071
        %v3228 = vunpack.c.h.b16 %v1071
        %v3229 = vunpack.c.l.b16 %v1072
        %v3230 = vunpack.c.h.b16 %v1072
        %v3231 = vunpack.c.l.b16 %v1073
        %v3232 = vunpack.c.h.b16 %v1073
        %v3233 = vunpack.c.l.b16 %v1074
        %v3234 = vunpack.c.h.b16 %v1074
        %v3235 = vunpack.c.l.b16 %v1075
        %v3236 = vunpack.c.h.b16 %v1075
        %v3237 = vunpack.c.l.b16 %v1076
        %v3238 = vunpack.c.h.b16 %v1076
        %v3239 = vunpack.c.l.b16 %v1077
        %v3240 = vunpack.c.h.b16 %v1077
        %v3241 = vunpack.c.l.b16 %v1078
        %v3242 = vunpack.c.h.b16 %v1078
        %v3243 = vunpack.c.l.b16 %v1079
        %v3244 = vunpack.c.h.b16 %v1079
        %v3245 = vunpack.c.l.b16 %v1080
        %v3246 = vunpack.c.h.b16 %v1080
        %v3247 = vunpack.c.l.b16 %v1081
        %v3248 = vunpack.c.h.b16 %v1081
        %v3249 = vunpack.c.l.b16 %v1082
        %v3250 = vunpack.c.h.b16 %v1082
        %v3251 = vunpack.c.l.b16 %v1083
        %v3252 = vunpack.c.h.b16 %v1083
        %v3253 = vunpack.c.l.b16 %v1084
        %v3254 = vunpack.c.h.b16 %v1084
        %v3255 = vunpack.c.l.b16 %v1085
        %v3256 = vunpack.c.h.b16 %v1085
        %v3257 = vunpack.c.l.b16 %v1086
        %v3258 = vunpack.c.h.b16 %v1086
        %v3259 = vunpack.c.l.b16 %v1087
        %v3260 = vunpack.c.h.b16 %v1087
        %v3261 = vunpack.c.l.b16 %v1088
        %v3262 = vunpack.c.h.b16 %v1088
        %v3263 = vunpack.c.l.b16 %v1089
        %v3264 = vunpack.c.h.b16 %v1089
        %v3265 = vunpack.c.l.b16 %v1090
        %v3266 = vunpack.c.h.b16 %v1090
        %v3267 = vunpack.c.l.b16 %v1091
        %v3268 = vunpack.c.h.b16 %v1091
        %v3269 = vunpack.c.l.b16 %v1092
        %v3270 = vunpack.c.h.b16 %v1092
        %v3271 = vunpack.c.l.b16 %v1093
        %v3272 = vunpack.c.h.b16 %v1093
        %v3273 = vunpack.c.l.b16 %v1094
        %v3274 = vunpack.c.h.b16 %v1094
        %v3275 = vunpack.c.l.b16 %v1095
        %v3276 = vunpack.c.h.b16 %v1095
        %v3277 = vunpack.c.l.b16 %v1096
        %v3278 = vunpack.c.h.b16 %v1096
        %v3279 = vunpack.c.l.b16 %v1097
        %v3280 = vunpack.c.h.b16 %v1097
        %v3281 = vunpack.c.l.b16 %v1098
        %v3282 = vunpack.c.h.b16 %v1098
        %v3283 = vunpack.c.l.b16 %v1099
        %v3284 = vunpack.c.h.b16 %v1099
        %v3285 = vunpack.c.l.b16 %v1100
        %v3286 = vunpack.c.h.b16 %v1100
        %v3287 = vunpack.c.l.b16 %v1101
        %v3288 = vunpack.c.h.b16 %v1101
        %v3289 = vunpack.c.l.b16 %v1102
        %v3290 = vunpack.c.h.b16 %v1102
        %v3291 = vunpack.c.l.b16 %v1103
        %v3292 = vunpack.c.h.b16 %v1103
        %v3293 = vunpack.c.l.b16 %v1104
        %v3294 = vunpack.c.h.b16 %v1104
        %v3295 = vunpack.c.l.b16 %v1105
        %v3296 = vunpack.c.h.b16 %v1105
        %v3297 = vunpack.c.l.b16 %v1106
        %v3298 = vunpack.c.h.b16 %v1106
        %v3299 = vunpack.c.l.b16 %v1107
        %v3300 = vunpack.c.h.b16 %v1107
        %v3301 = vunpack.c.l.b16 %v1108
        %v3302 = vunpack.c.h.b16 %v1108
        %v3303 = vunpack.c.l.b16 %v1109
        %v3304 = vunpack.c.h.b16 %v1109
        %v3305 = vunpack.c.l.b16 %v1110
        %v3306 = vunpack.c.h.b16 %v1110
        %v3307 = vunpack.c.l.b16 %v1111
        %v3308 = vunpack.c.h.b16 %v1111
        %v3309 = vunpack.c.l.b16 %v1112
        %v3310 = vunpack.c.h.b16 %v1112
        %v3311 = vunpack.c.l.b16 %v1113
        %v3312 = vunpack.c.h.b16 %v1113
        %v3313 = vunpack.c.l.b16 %v1114
        %v3314 = vunpack.c.h.b16 %v1114
        %v3315 = vunpack.c.l.b16 %v1115
        %v3316 = vunpack.c.h.b16 %v1115
        %v3317 = vunpack.c.l.b16 %v1116
        %v3318 = vunpack.c.h.b16 %v1116
        %v3319 = vunpack.c.l.b16 %v1117
        %v3320 = vunpack.c.h.b16 %v1117
        %v3321 = vunpack.c.l.b16 %v1118
        %v3322 = vunpack.c.h.b16 %v1118
        %v3323 = vunpack.c.l.b16 %v1119
        %v3324 = vunpack.c.h.b16 %v1119
        %v3325 = vunpack.c.l.b16 %v1120
        %v3326 = vunpack.c.h.b16 %v1120
        %v3327 = vunpack.c.l.b16 %v1121
        %v3328 = vunpack.c.h.b16 %v1121
        %v3329 = vunpack.c.l.b16 %v1122
        %v3330 = vunpack.c.h.b16 %v1122
        %v3331 = vunpack.c.l.b16 %v1123
        %v3332 = vunpack.c.h.b16 %v1123
        %v3333 = vunpack.c.l.b16 %v1124
        %v3334 = vunpack.c.h.b16 %v1124
        %v3335 = vunpack.c.l.b16 %v1125
        %v3336 = vunpack.c.h.b16 %v1125
        %v3337 = vunpack.c.l.b16 %v1126
        %v3338 = vunpack.c.h.b16 %v1126
        %v3339 = vunpack.c.l.b16 %v1127
        %v3340 = vunpack.c.h.b16 %v1127
        %v3341 = vunpack.c.l.b16 %v1128
        %v3342 = vunpack.c.h.b16 %v1128
        %v3343 = vunpack.c.l.b16 %v1129
        %v3344 = vunpack.c.h.b16 %v1129
        %v3345 = vunpack.c.l.b16 %v1130
        %v3346 = vunpack.c.h.b16 %v1130
        %v3347 = vunpack.c.l.b16 %v1131
        %v3348 = vunpack.c.h.b16 %v1131
        %v3349 = vunpack.c.l.b16 %v1132
        %v3350 = vunpack.c.h.b16 %v1132
        %v3351 = vunpack.c.l.b16 %v1133
        %v3352 = vunpack.c.h.b16 %v1133
        %v3353 = vunpack.c.l.b16 %v1134
        %v3354 = vunpack.c.h.b16 %v1134
        %v3355 = vunpack.c.l.b16 %v1135
        %v3356 = vunpack.c.h.b16 %v1135
        %v3357 = vunpack.c.l.b16 %v1136
        %v3358 = vunpack.c.h.b16 %v1136
        %v3359 = vunpack.c.l.b16 %v1137
        %v3360 = vunpack.c.h.b16 %v1137
        %v3361 = vunpack.c.l.b16 %v1138
        %v3362 = vunpack.c.h.b16 %v1138
        %v3363 = vunpack.c.l.b16 %v1139
        %v3364 = vunpack.c.h.b16 %v1139
        %v3365 = vunpack.c.l.b16 %v1140
        %v3366 = vunpack.c.h.b16 %v1140
        %v3367 = vunpack.c.l.b16 %v1141
        %v3368 = vunpack.c.h.b16 %v1141
        %v3369 = vunpack.c.l.b16 %v1142
        %v3370 = vunpack.c.h.b16 %v1142
        %v3371 = vunpack.c.l.b16 %v1143
        %v3372 = vunpack.c.h.b16 %v1143
        %v3373 = vunpack.c.l.b16 %v1144
        %v3374 = vunpack.c.h.b16 %v1144
        %v3375 = vunpack.c.l.b16 %v1145
        %v3376 = vunpack.c.h.b16 %v1145
        %v3377 = vunpack.c.l.b16 %v1146
        %v3378 = vunpack.c.h.b16 %v1146
        %v3379 = vunpack.c.l.b16 %v1147
        %v3380 = vunpack.c.h.b16 %v1147
        %v3381 = vunpack.c.l.b16 %v1148
        %v3382 = vunpack.c.h.b16 %v1148
        %v3383 = vunpack.c.l.b16 %v1149
        %v3384 = vunpack.c.h.b16 %v1149
        %v3385 = vunpack.c.l.b16 %v1150
        %v3386 = vunpack.c.h.b16 %v1150
        %v3387 = vunpack.c.l.b16 %v1151
        %v3388 = vunpack.c.h.b16 %v1151
        %v3389 = vunpack.c.l.b16 %v1152
        %v3390 = vunpack.c.h.b16 %v1152
        %v3391 = vunpack.c.l.b16 %v1153
        %v3392 = vunpack.c.h.b16 %v1153
        %v3393 = vunpack.c.l.b16 %v1154
        %v3394 = vunpack.c.h.b16 %v1154
        %v3395 = vunpack.c.l.b16 %v1155
        %v3396 = vunpack.c.h.b16 %v1155
        %v3397 = vunpack.c.l.b16 %v1156
        %v3398 = vunpack.c.h.b16 %v1156
        %v3399 = vunpack.c.l.b16 %v1157
        %v3400 = vunpack.c.h.b16 %v1157
        %v3401 = vunpack.c.l.b16 %v1158
        %v3402 = vunpack.c.h.b16 %v1158
        %v3403 = vunpack.c.l.b16 %v1159
        %v3404 = vunpack.c.h.b16 %v1159
        %v3405 = vunpack.c.l.b16 %v1160
        %v3406 = vunpack.c.h.b16 %v1160
        %v3407 = vunpack.c.l.b16 %v1161
        %v3408 = vunpack.c.h.b16 %v1161
        %v3409 = vunpack.c.l.b16 %v1162
        %v3410 = vunpack.c.h.b16 %v1162
        %v3411 = vunpack.c.l.b16 %v1163
        %v3412 = vunpack.c.h.b16 %v1163
        %v3413 = vunpack.c.l.b16 %v1164
        %v3414 = vunpack.c.h.b16 %v1164
        %v3415 = vunpack.c.l.b16 %v1165
        %v3416 = vunpack.c.h.b16 %v1165
        %v3417 = vunpack.c.l.b16 %v1166
        %v3418 = vunpack.c.h.b16 %v1166
        %v3419 = vunpack.c.l.b16 %v1167
        %v3420 = vunpack.c.h.b16 %v1167
        %v3421 = vunpack.c.l.b16 %v1168
        %v3422 = vunpack.c.h.b16 %v1168
        %v3423 = vunpack.c.l.b16 %v1169
        %v3424 = vunpack.c.h.b16 %v1169
        %v3425 = vunpack.c.l.b16 %v1170
        %v3426 = vunpack.c.h.b16 %v1170
        %v3427 = vunpack.c.l.b16 %v1171
        %v3428 = vunpack.c.h.b16 %v1171
        %v3429 = vunpack.c.l.b16 %v1172
        %v3430 = vunpack.c.h.b16 %v1172
        %v3431 = vunpack.c.l.b16 %v1173
        %v3432 = vunpack.c.h.b16 %v1173
        %v3433 = vunpack.c.l.b16 %v1174
        %v3434 = vunpack.c.h.b16 %v1174
        %v3435 = vunpack.c.l.b16 %v1175
        %v3436 = vunpack.c.h.b16 %v1175
        %v3437 = vunpack.c.l.b16 %v1176
        %v3438 = vunpack.c.h.b16 %v1176
        %v3439 = vunpack.c.l.b16 %v1177
        %v3440 = vunpack.c.h.b16 %v1177
        %v3441 = vunpack.c.l.b16 %v1178
        %v3442 = vunpack.c.h.b16 %v1178
        %v3443 = vunpack.c.l.b16 %v1179
        %v3444 = vunpack.c.h.b16 %v1179
        %v3445 = vunpack.c.l.b16 %v1180
        %v3446 = vunpack.c.h.b16 %v1180
        %v3447 = vunpack.c.l.b16 %v1181
        %v3448 = vunpack.c.h.b16 %v1181
        %v3449 = vunpack.c.l.b16 %v1182
        %v3450 = vunpack.c.h.b16 %v1182
        %v3451 = vunpack.c.l.b16 %v1183
        %v3452 = vunpack.c.h.b16 %v1183
        %v3453 = vunpack.c.l.b16 %v1184
        %v3454 = vunpack.c.h.b16 %v1184
        %v3455 = vunpack.c.l.b16 %v1185
        %v3456 = vunpack.c.h.b16 %v1185
        %v3457 = vunpack.c.l.b16 %v1186
        %v3458 = vunpack.c.h.b16 %v1186
        %v3459 = vunpack.c.l.b16 %v1187
        %v3460 = vunpack.c.h.b16 %v1187
        %v3461 = vunpack.c.l.b16 %v1188
        %v3462 = vunpack.c.h.b16 %v1188
        %v3463 = vunpack.c.l.b16 %v1189
        %v3464 = vunpack.c.h.b16 %v1189
        %v3465 = vunpack.c.l.b16 %v1190
        %v3466 = vunpack.c.h.b16 %v1190
        %v3467 = vunpack.c.l.b16 %v1191
        %v3468 = vunpack.c.h.b16 %v1191
        %v3469 = vunpack.c.l.b16 %v1192
        %v3470 = vunpack.c.h.b16 %v1192
        %v3471 = vunpack.c.l.b16 %v1193
        %v3472 = vunpack.c.h.b16 %v1193
        %v3473 = vunpack.c.l.b16 %v1194
        %v3474 = vunpack.c.h.b16 %v1194
        %v3475 = vunpack.c.l.b16 %v1195
        %v3476 = vunpack.c.h.b16 %v1195
        %v3477 = vunpack.c.l.b16 %v1196
        %v3478 = vunpack.c.h.b16 %v1196
        %v3479 = vunpack.c.l.b16 %v1197
        %v3480 = vunpack.c.h.b16 %v1197
        %v3481 = vunpack.c.l.b16 %v1198
        %v3482 = vunpack.c.h.b16 %v1198
        %v3483 = vunpack.c.l.b16 %v1199
        %v3484 = vunpack.c.h.b16 %v1199
        %v3485 = vunpack.c.l.b16 %v1200
        %v3486 = vunpack.c.h.b16 %v1200
        %v3487 = vunpack.c.l.b16 %v1201
        %v3488 = vunpack.c.h.b16 %v1201
        %v3489 = vunpack.c.l.b16 %v1202
        %v3490 = vunpack.c.h.b16 %v1202
        %v3491 = vunpack.c.l.b16 %v1203
        %v3492 = vunpack.c.h.b16 %v1203
        %v3493 = vunpack.c.l.b16 %v1204
        %v3494 = vunpack.c.h.b16 %v1204
        %v3495 = vunpack.c.l.b16 %v1205
        %v3496 = vunpack.c.h.b16 %v1205
        %v3497 = vunpack.c.l.b16 %v1206
        %v3498 = vunpack.c.h.b16 %v1206
        %v3499 = vunpack.c.l.b16 %v1207
        %v3500 = vunpack.c.h.b16 %v1207
        %v3501 = vunpack.c.l.b16 %v1208
        %v3502 = vunpack.c.h.b16 %v1208
        %v3503 = vunpack.c.l.b16 %v1209
        %v3504 = vunpack.c.h.b16 %v1209
        %v3505 = vunpack.c.l.b16 %v1210
        %v3506 = vunpack.c.h.b16 %v1210
        %v3507 = vunpack.c.l.b16 %v1211
        %v3508 = vunpack.c.h.b16 %v1211
        %v3509 = vunpack.c.l.b16 %v1212
        %v3510 = vunpack.c.h.b16 %v1212
        %v3511 = vunpack.c.l.b16 %v1213
        %v3512 = vunpack.c.h.b16 %v1213
        %v3513 = vunpack.c.l.b16 %v1214
        %v3514 = vunpack.c.h.b16 %v1214
        %v3515 = vunpack.c.l.b16 %v1215
        %v3516 = vunpack.c.h.b16 %v1215
        %v3517 = vunpack.c.l.b16 %v1216
        %v3518 = vunpack.c.h.b16 %v1216
        %v3519 = vunpack.c.l.b16 %v1217
        %v3520 = vunpack.c.h.b16 %v1217
        %v3521 = vunpack.c.l.b16 %v1218
        %v3522 = vunpack.c.h.b16 %v1218
        %v3523 = vunpack.c.l.b16 %v1219
        %v3524 = vunpack.c.h.b16 %v1219
        %v3525 = vunpack.c.l.b16 %v1220
        %v3526 = vunpack.c.h.b16 %v1220
        %v3527 = vunpack.c.l.b16 %v1221
        %v3528 = vunpack.c.h.b16 %v1221
        %v3529 = vunpack.c.l.b16 %v1222
        %v3530 = vunpack.c.h.b16 %v1222
        %v3531 = vunpack.c.l.b16 %v1223
        %v3532 = vunpack.c.h.b16 %v1223
        %v3533 = vunpack.c.l.b16 %v1224
        %v3534 = vunpack.c.h.b16 %v1224
        %v3535 = vunpack.c.l.b16 %v1225
        %v3536 = vunpack.c.h.b16 %v1225
        %v3537 = vunpack.c.l.b16 %v1226
        %v3538 = vunpack.c.h.b16 %v1226
        %v3539 = vunpack.c.l.b16 %v1227
        %v3540 = vunpack.c.h.b16 %v1227
        %v3541 = vunpack.c.l.b16 %v1228
        %v3542 = vunpack.c.h.b16 %v1228
        %v3543 = vunpack.c.l.b16 %v1229
        %v3544 = vunpack.c.h.b16 %v1229
        %v3545 = vunpack.c.l.b16 %v1230
        %v3546 = vunpack.c.h.b16 %v1230
        %v3547 = vunpack.c.l.b16 %v1231
        %v3548 = vunpack.c.h.b16 %v1231
        %v3549 = vunpack.c.l.b16 %v1232
        %v3550 = vunpack.c.h.b16 %v1232
        %v3551 = vunpack.c.l.b16 %v1233
        %v3552 = vunpack.c.h.b16 %v1233
        %v3553 = vunpack.c.l.b16 %v1234
        %v3554 = vunpack.c.h.b16 %v1234
        %v3555 = vunpack.c.l.b16 %v1235
        %v3556 = vunpack.c.h.b16 %v1235
        %v3557 = vunpack.c.l.b16 %v1236
        %v3558 = vunpack.c.h.b16 %v1236
        %v3559 = vunpack.c.l.b16 %v1237
        %v3560 = vunpack.c.h.b16 %v1237
        %v3561 = vunpack.c.l.b16 %v1238
        %v3562 = vunpack.c.h.b16 %v1238
        %v3563 = vunpack.c.l.b16 %v1239
        %v3564 = vunpack.c.h.b16 %v1239
        %v3565 = vunpack.c.l.b16 %v1240
        %v3566 = vunpack.c.h.b16 %v1240
        %v3567 = vunpack.c.l.b16 %v1241
        %v3568 = vunpack.c.h.b16 %v1241
        %v3569 = vunpack.c.l.b16 %v1242
        %v3570 = vunpack.c.h.b16 %v1242
        %v3571 = vunpack.c.l.b16 %v1243
        %v3572 = vunpack.c.h.b16 %v1243
        %v3573 = vunpack.c.l.b16 %v1244
        %v3574 = vunpack.c.h.b16 %v1244
        %v3575 = vunpack.c.l.b16 %v1245
        %v3576 = vunpack.c.h.b16 %v1245
        %v3577 = vunpack.c.l.b16 %v1246
        %v3578 = vunpack.c.h.b16 %v1246
        %v3579 = vunpack.c.l.b16 %v1247
        %v3580 = vunpack.c.h.b16 %v1247
        %v3581 = vunpack.c.l.b16 %v1248
        %v3582 = vunpack.c.h.b16 %v1248
        %v3583 = vunpack.c.l.b16 %v1249
        %v3584 = vunpack.c.h.b16 %v1249
        %v3585 = vunpack.c.l.b16 %v1250
        %v3586 = vunpack.c.h.b16 %v1250
        %v3587 = vunpack.c.l.b16 %v1251
        %v3588 = vunpack.c.h.b16 %v1251
        %v3589 = vunpack.c.l.b16 %v1252
        %v3590 = vunpack.c.h.b16 %v1252
        %v3591 = vunpack.c.l.b16 %v1253
        %v3592 = vunpack.c.h.b16 %v1253
        %v3593 = vunpack.c.l.b16 %v1254
        %v3594 = vunpack.c.h.b16 %v1254
        %v3595 = vunpack.c.l.b16 %v1255
        %v3596 = vunpack.c.h.b16 %v1255
        %v3597 = vunpack.c.l.b16 %v1256
        %v3598 = vunpack.c.h.b16 %v1256
        %v3599 = vunpack.c.l.b16 %v1257
        %v3600 = vunpack.c.h.b16 %v1257
        %v3601 = vunpack.c.l.b16 %v1258
        %v3602 = vunpack.c.h.b16 %v1258
        %v3603 = vunpack.c.l.b16 %v1259
        %v3604 = vunpack.c.h.b16 %v1259
        %v3605 = vunpack.c.l.b16 %v1260
        %v3606 = vunpack.c.h.b16 %v1260
        %v3607 = vunpack.c.l.b16 %v1261
        %v3608 = vunpack.c.h.b16 %v1261
        %v3609 = vunpack.c.l.b16 %v1262
        %v3610 = vunpack.c.h.b16 %v1262
        %v3611 = vunpack.c.l.b16 %v1263
        %v3612 = vunpack.c.h.b16 %v1263
        %v3613 = vunpack.c.l.b16 %v1264
        %v3614 = vunpack.c.h.b16 %v1264
        %v3615 = vunpack.c.l.b16 %v1265
        %v3616 = vunpack.c.h.b16 %v1265
        %v3617 = vunpack.c.l.b16 %v1266
        %v3618 = vunpack.c.h.b16 %v1266
        %v3619 = vunpack.c.l.b16 %v1267
        %v3620 = vunpack.c.h.b16 %v1267
        %v3621 = vunpack.c.l.b16 %v1268
        %v3622 = vunpack.c.h.b16 %v1268
        %v3623 = vunpack.c.l.b16 %v1269
        %v3624 = vunpack.c.h.b16 %v1269
        %v3625 = vunpack.c.l.b16 %v1270
        %v3626 = vunpack.c.h.b16 %v1270
        %v3627 = vunpack.c.l.b16 %v1271
        %v3628 = vunpack.c.h.b16 %v1271
        %v3629 = vunpack.c.l.b16 %v1272
        %v3630 = vunpack.c.h.b16 %v1272
        %v3631 = vunpack.c.l.b16 %v1273
        %v3632 = vunpack.c.h.b16 %v1273
        %v3633 = vunpack.c.l.b16 %v1274
        %v3634 = vunpack.c.h.b16 %v1274
        %v3635 = vunpack.c.l.b16 %v1275
        %v3636 = vunpack.c.h.b16 %v1275
        %v3637 = vunpack.c.l.b16 %v1276
        %v3638 = vunpack.c.h.b16 %v1276
        %v3639 = vunpack.c.l.b16 %v1277
        %v3640 = vunpack.c.h.b16 %v1277
        %v3641 = vunpack.c.l.b16 %v1278
        %v3642 = vunpack.c.h.b16 %v1278
        %v3643 = vunpack.c.l.b16 %v1279
        %v3644 = vunpack.c.h.b16 %v1279
        %v3645 = vunpack.c.l.b16 %v1280
        %v3646 = vunpack.c.h.b16 %v1280
        %v3647 = vunpack.c.l.b16 %v1281
        %v3648 = vunpack.c.h.b16 %v1281
        %v3649 = vunpack.c.l.b16 %v1282
        %v3650 = vunpack.c.h.b16 %v1282
        %v3651 = vunpack.c.l.b16 %v1283
        %v3652 = vunpack.c.h.b16 %v1283
        %v3653 = vunpack.c.l.b16 %v1284
        %v3654 = vunpack.c.h.b16 %v1284
        %v3655 = vunpack.c.l.b16 %v1285
        %v3656 = vunpack.c.h.b16 %v1285
        %v3657 = vunpack.c.l.b16 %v1286
        %v3658 = vunpack.c.h.b16 %v1286
        %v3659 = vunpack.c.l.b16 %v1287
        %v3660 = vunpack.c.h.b16 %v1287
        %v3661 = vunpack.c.l.b16 %v1288
        %v3662 = vunpack.c.h.b16 %v1288
        %v3663 = vunpack.c.l.b16 %v1289
        %v3664 = vunpack.c.h.b16 %v1289
        %v3665 = vunpack.c.l.b16 %v1290
        %v3666 = vunpack.c.h.b16 %v1290
        %v3667 = vunpack.c.l.b16 %v1291
        %v3668 = vunpack.c.h.b16 %v1291
        %v3669 = vunpack.c.l.b16 %v1292
        %v3670 = vunpack.c.h.b16 %v1292
        %v3671 = vunpack.c.l.b16 %v1293
        %v3672 = vunpack.c.h.b16 %v1293
        %v3673 = vunpack.c.l.b16 %v1294
        %v3674 = vunpack.c.h.b16 %v1294
        %v3675 = vunpack.c.l.b16 %v1295
        %v3676 = vunpack.c.h.b16 %v1295
        %v3677 = vunpack.c.l.b16 %v1296
        %v3678 = vunpack.c.h.b16 %v1296
        %v3679 = vunpack.c.l.b16 %v1297
        %v3680 = vunpack.c.h.b16 %v1297
        %v3681 = vunpack.c.l.b16 %v1298
        %v3682 = vunpack.c.h.b16 %v1298
        %v3683 = vunpack.c.l.b16 %v1299
        %v3684 = vunpack.c.h.b16 %v1299
        %v3685 = vunpack.c.l.b16 %v1300
        %v3686 = vunpack.c.h.b16 %v1300
        %v3687 = vunpack.c.l.b16 %v1301
        %v3688 = vunpack.c.h.b16 %v1301
        %v3689 = vunpack.c.l.b16 %v1302
        %v3690 = vunpack.c.h.b16 %v1302
        %v3691 = vunpack.c.l.b16 %v1303
        %v3692 = vunpack.c.h.b16 %v1303
        %v3693 = vunpack.c.l.b16 %v1304
        %v3694 = vunpack.c.h.b16 %v1304
        %v3695 = vunpack.c.l.b16 %v1305
        %v3696 = vunpack.c.h.b16 %v1305
        %v3697 = vunpack.c.l.b16 %v1306
        %v3698 = vunpack.c.h.b16 %v1306
        %v3699 = vunpack.c.l.b16 %v1307
        %v3700 = vunpack.c.h.b16 %v1307
        %v3701 = vunpack.c.l.b16 %v1308
        %v3702 = vunpack.c.h.b16 %v1308
        %v3703 = vunpack.c.l.b16 %v1309
        %v3704 = vunpack.c.h.b16 %v1309
        %v3705 = vunpack.c.l.b16 %v1310
        %v3706 = vunpack.c.h.b16 %v1310
        %v3707 = vunpack.c.l.b16 %v1311
        %v3708 = vunpack.c.h.b16 %v1311
        %v3709 = vunpack.c.l.b16 %v1312
        %v3710 = vunpack.c.h.b16 %v1312
        %v3711 = vunpack.c.l.b16 %v1313
        %v3712 = vunpack.c.h.b16 %v1313
        %v3713 = vunpack.c.l.b16 %v1314
        %v3714 = vunpack.c.h.b16 %v1314
        %v3715 = vunpack.c.l.b16 %v1315
        %v3716 = vunpack.c.h.b16 %v1315
        %v3717 = vunpack.c.l.b16 %v1316
        %v3718 = vunpack.c.h.b16 %v1316
        %v3719 = vunpack.c.l.b16 %v1317
        %v3720 = vunpack.c.h.b16 %v1317
        %v3721 = vunpack.c.l.b16 %v1318
        %v3722 = vunpack.c.h.b16 %v1318
        %v3723 = vunpack.c.l.b16 %v1319
        %v3724 = vunpack.c.h.b16 %v1319
        %v3725 = vunpack.c.l.b16 %v1320
        %v3726 = vunpack.c.h.b16 %v1320
        %v3727 = vunpack.c.l.b16 %v1321
        %v3728 = vunpack.c.h.b16 %v1321
        %v3729 = vunpack.c.l.b16 %v1322
        %v3730 = vunpack.c.h.b16 %v1322
        %v3731 = vunpack.c.l.b16 %v1323
        %v3732 = vunpack.c.h.b16 %v1323
        %v3733 = vunpack.c.l.b16 %v1324
        %v3734 = vunpack.c.h.b16 %v1324
        %v3735 = vunpack.c.l.b16 %v1325
        %v3736 = vunpack.c.h.b16 %v1325
        %v3737 = vunpack.c.l.b16 %v1326
        %v3738 = vunpack.c.h.b16 %v1326
        %v3739 = vpack.c.b16 %v2251, %v2203
        %v3740 = vpack.c.b16 %v2252, %v2204
        %v3741 = vpack.c.b16 %v2253, %v2205
        %v3742 = vpack.c.b16 %v2254, %v2206
        %v3743 = vpack.c.b16 %v2255, %v2207
        %v3744 = vpack.c.b16 %v2256, %v2208
        %v3745 = vpack.c.b16 %v2257, %v2209
        %v3746 = vpack.c.b16 %v2258, %v2210
        %v3747 = vpack.c.b16 %v2259, %v2211
        %v3748 = vpack.c.b16 %v2260, %v2212
        %v3749 = vpack.c.b16 %v2261, %v2213
        %v3750 = vpack.c.b16 %v2262, %v2214
        %v3751 = vpack.c.b16 %v2263, %v2215
        %v3752 = vpack.c.b16 %v2264, %v2216
        %v3753 = vpack.c.b16 %v2265, %v2217
        %v3754 = vpack.c.b16 %v2266, %v2218
        %v3755 = vpack.c.b16 %v2267, %v2219
        %v3756 = vpack.c.b16 %v2268, %v2220
        %v3757 = vpack.c.b16 %v2269, %v2221
        %v3758 = vpack.c.b16 %v2270, %v2222
        %v3759 = vpack.c.b16 %v2271, %v2223
        %v3760 = vpack.c.b16 %v2272, %v2224
        %v3761 = vpack.c.b16 %v2273, %v2225
        %v3762 = vpack.c.b16 %v2274, %v2226
        %v3763 = vpack.c.b16 %v2275, %v2227
        %v3764 = vpack.c.b16 %v2276, %v2228
        %v3765 = vpack.c.b16 %v2277, %v2229
        %v3766 = vpack.c.b16 %v2278, %v2230
        %v3767 = vpack.c.b16 %v2279, %v2231
        %v3768 = vpack.c.b16 %v2280, %v2232
        %v3769 = vpack.c.b16 %v2281, %v2233
        %v3770 = vpack.c.b16 %v2282, %v2234
        %v3771 = vpack.c.b16 %v2283, %v2235
        %v3772 = vpack.c.b16 %v2284, %v2236
        %v3773 = vpack.c.b16 %v2285, %v2237
        %v3774 = vpack.c.b16 %v2286, %v2238
        %v3775 = vpack.c.b16 %v2287, %v2239
        %v3776 = vpack.c.b16 %v2288, %v2240
        %v3777 = vpack.c.b16 %v2289, %v2241
        %v3778 = vpack.c.b16 %v2290, %v2242
        %v3779 = vpack.c.b16 %v2291, %v2243
        %v3780 = vpack.c.b16 %v2292, %v2244
        %v3781 = vpack.c.b16 %v2293, %v2245
        %v3782 = vpack.c.b16 %v2294, %v2246
        %v3783 = vpack.c.b16 %v2295, %v2247
        %v3784 = vpack.c.b16 %v2296, %v2248
        %v3785 = vpack.c.b16 %v2297, %v2249
        %v3786 = vpack.c.b16 %v2298, %v2250
        %v3787 = vpack.c.b16 %v2347, %v2299
        %v3788 = vpack.c.b16 %v2348, %v2300
        %v3789 = vpack.c.b16 %v2349, %v2301
        %v3790 = vpack.c.b16 %v2350, %v2302
        %v3791 = vpack.c.b16 %v2351, %v2303
        %v3792 = vpack.c.b16 %v2352, %v2304
        %v3793 = vpack.c.b16 %v2353, %v2305
        %v3794 = vpack.c.b16 %v2354, %v2306
        %v3795 = vpack.c.b16 %v2355, %v2307
        %v3796 = vpack.c.b16 %v2356, %v2308
        %v3797 = vpack.c.b16 %v2357, %v2309
        %v3798 = vpack.c.b16 %v2358, %v2310
        %v3799 = vpack.c.b16 %v2359, %v2311
        %v3800 = vpack.c.b16 %v2360, %v2312
        %v3801 = vpack.c.b16 %v2361, %v2313
        %v3802 = vpack.c.b16 %v2362, %v2314
        %v3803 = vpack.c.b16 %v2363, %v2315
        %v3804 = vpack.c.b16 %v2364, %v2316
        %v3805 = vpack.c.b16 %v2365, %v2317
        %v3806 = vpack.c.b16 %v2366, %v2318
        %v3807 = vpack.c.b16 %v2367, %v2319
        %v3808 = vpack.c.b16 %v2368, %v2320
        %v3809 = vpack.c.b16 %v2369, %v2321
        %v3810 = vpack.c.b16 %v2370, %v2322
        %v3811 = vpack.c.b16 %v2371, %v2323
        %v3812 = vpack.c.b16 %v2372, %v2324
        %v3813 = vpack.c.b16 %v2373, %v2325
        %v3814 = vpack.c.b16 %v2374, %v2326
        %v3815 = vpack.c.b16 %v2375, %v2327
        %v3816 = vpack.c.b16 %v2376, %v2328
        %v3817 = vpack.c.b16 %v2377, %v2329
        %v3818 = vpack.c.b16 %v2378, %v2330
        %v3819 = vpack.c.b16 %v2379, %v2331
        %v3820 = vpack.c.b16 %v2380, %v2332
        %v3821 = vpack.c.b16 %v2381, %v2333
        %v3822 = vpack.c.b16 %v2382, %v2334
        %v3823 = vpack.c.b16 %v2383, %v2335
        %v3824 = vpack.c.b16 %v2384, %v2336
        %v3825 = vpack.c.b16 %v2385, %v2337
        %v3826 = vpack.c.b16 %v2386, %v2338
        %v3827 = vpack.c.b16 %v2387, %v2339
        %v3828 = vpack.c.b16 %v2388, %v2340
        %v3829 = vpack.c.b16 %v2389, %v2341
        %v3830 = vpack.c.b16 %v2390, %v2342
        %v3831 = vpack.c.b16 %v2391, %v2343
        %v3832 = vpack.c.b16 %v2392, %v2344
        %v3833 = vpack.c.b16 %v2393, %v2345
        %v3834 = vpack.c.b16 %v2394, %v2346
        %v3835 = vpack.c.b16 %v2443, %v2395
        %v3836 = vpack.c.b16 %v2444, %v2396
        %v3837 = vpack.c.b16 %v2445, %v2397
        %v3838 = vpack.c.b16 %v2446, %v2398
        %v3839 = vpack.c.b16 %v2447, %v2399
        %v3840 = vpack.c.b16 %v2448, %v2400
        %v3841 = vpack.c.b16 %v2449, %v2401
        %v3842 = vpack.c.b16 %v2450, %v2402
        %v3843 = vpack.c.b16 %v2451, %v2403
        %v3844 = vpack.c.b16 %v2452, %v2404
        %v3845 = vpack.c.b16 %v2453, %v2405
        %v3846 = vpack.c.b16 %v2454, %v2406
        %v3847 = vpack.c.b16 %v2455, %v2407
        %v3848 = vpack.c.b16 %v2456, %v2408
        %v3849 = vpack.c.b16 %v2457, %v2409
        %v3850 = vpack.c.b16 %v2458, %v2410
        %v3851 = vpack.c.b16 %v2459, %v2411
        %v3852 = vpack.c.b16 %v2460, %v2412
        %v3853 = vpack.c.b16 %v2461, %v2413
        %v3854 = vpack.c.b16 %v2462, %v2414
        %v3855 = vpack.c.b16 %v2463, %v2415
        %v3856 = vpack.c.b16 %v2464, %v2416
        %v3857 = vpack.c.b16 %v2465, %v2417
        %v3858 = vpack.c.b16 %v2466, %v2418
        %v3859 = vpack.c.b16 %v2467, %v2419
        %v3860 = vpack.c.b16 %v2468, %v2420
        %v3861 = vpack.c.b16 %v2469, %v2421
        %v3862 = vpack.c.b16 %v2470, %v2422
        %v3863 = vpack.c.b16 %v2471, %v2423
        %v3864 = vpack.c.b16 %v2472, %v2424
        %v3865 = vpack.c.b16 %v2473, %v2425
        %v3866 = vpack.c.b16 %v2474, %v2426
        %v3867 = vpack.c.b16 %v2475, %v2427
        %v3868 = vpack.c.b16 %v2476, %v2428
        %v3869 = vpack.c.b16 %v2477, %v2429
        %v3870 = vpack.c.b16 %v2478, %v2430
        %v3871 = vpack.c.b16 %v2479, %v2431
        %v3872 = vpack.c.b16 %v2480, %v2432
        %v3873 = vpack.c.b16 %v2481, %v2433
        %v3874 = vpack.c.b16 %v2482, %v2434
        %v3875 = vpack.c.b16 %v2483, %v2435
        %v3876 = vpack.c.b16 %v2484, %v2436
        %v3877 = vpack.c.b16 %v2485, %v2437
        %v3878 = vpack.c.b16 %v2486, %v2438
        %v3879 = vpack.c.b16 %v2487, %v2439
        %v3880 = vpack.c.b16 %v2488, %v2440
        %v3881 = vpack.c.b16 %v2489, %v2441
        %v3882 = vpack.c.b16 %v2490, %v2442
        %v3883 = vpack.c.b16 %v2539, %v2491
        %v3884 = vpack.c.b16 %v2540, %v2492
        %v3885 = vpack.c.b16 %v2541, %v2493
        %v3886 = vpack.c.b16 %v2542, %v2494
        %v3887 = vpack.c.b16 %v2543, %v2495
        %v3888 = vpack.c.b16 %v2544, %v2496
        %v3889 = vpack.c.b16 %v2545, %v2497
        %v3890 = vpack.c.b16 %v2546, %v2498
        %v3891 = vpack.c.b16 %v2547, %v2499
        %v3892 = vpack.c.b16 %v2548, %v2500
        %v3893 = vpack.c.b16 %v2549, %v2501
        %v3894 = vpack.c.b16 %v2550, %v2502
        %v3895 = vpack.c.b16 %v2551, %v2503
        %v3896 = vpack.c.b16 %v2552, %v2504
        %v3897 = vpack.c.b16 %v2553, %v2505
        %v3898 = vpack.c.b16 %v2554, %v2506
        %v3899 = vpack.c.b16 %v2555, %v2507
        %v3900 = vpack.c.b16 %v2556, %v2508
        %v3901 = vpack.c.b16 %v2557, %v2509
        %v3902 = vpack.c.b16 %v2558, %v2510
        %v3903 = vpack.c.b16 %v2559, %v2511
        %v3904 = vpack.c.b16 %v2560, %v2512
        %v3905 = vpack.c.b16 %v2561, %v2513
        %v3906 = vpack.c.b16 %v2562, %v2514
        %v3907 = vpack.c.b16 %v2563, %v2515
        %v3908 = vpack.c.b16 %v2564, %v2516
        %v3909 = vpack.c.b16 %v2565, %v2517
        %v3910 = vpack.c.b16 %v2566, %v2518
        %v3911 = vpack.c.b16 %v2567, %v2519
        %v3912 = vpack.c.b16 %v2568, %v2520
        %v3913 = vpack.c.b16 %v2569, %v2521
        %v3914 = vpack.c.b16 %v2570, %v2522
        %v3915 = vpack.c.b16 %v2571, %v2523
        %v3916 = vpack.c.b16 %v2572, %v2524
        %v3917 = vpack.c.b16 %v2573, %v2525
        %v3918 = vpack.c.b16 %v2574, %v2526
        %v3919 = vpack.c.b16 %v2575, %v2527
        %v3920 = vpack.c.b16 %v2576, %v2528
        %v3921 = vpack.c.b16 %v2577, %v2529
        %v3922 = vpack.c.b16 %v2578, %v2530
        %v3923 = vpack.c.b16 %v2579, %v2531
        %v3924 = vpack.c.b16 %v2580, %v2532
        %v3925 = vpack.c.b16 %v2581, %v2533
        %v3926 = vpack.c.b16 %v2582, %v2534
        %v3927 = vpack.c.b16 %v2583, %v2535
        %v3928 = vpack.c.b16 %v2584, %v2536
        %v3929 = vpack.c.b16 %v2585, %v2537
        %v3930 = vpack.c.b16 %v2586, %v2538
        %v3931 = vpack.c.b16 %v2635, %v2587
        %v3932 = vpack.c.b16 %v2636, %v2588
        %v3933 = vpack.c.b16 %v2637, %v2589
        %v3934 = vpack.c.b16 %v2638, %v2590
        %v3935 = vpack.c.b16 %v2639, %v2591
        %v3936 = vpack.c.b16 %v2640, %v2592
        %v3937 = vpack.c.b16 %v2641, %v2593
        %v3938 = vpack.c.b16 %v2642, %v2594
        %v3939 = vpack.c.b16 %v2643, %v2595
        %v3940 = vpack.c.b16 %v2644, %v2596
        %v3941 = vpack.c.b16 %v2645, %v2597
        %v3942 = vpack.c.b16 %v2646, %v2598
        %v3943 = vpack.c.b16 %v2647, %v2599
        %v3944 = vpack.c.b16 %v2648, %v2600
        %v3945 = vpack.c.b16 %v2649, %v2601
        %v3946 = vpack.c.b16 %v2650, %v2602
        %v3947 = vpack.c.b16 %v2651, %v2603
        %v3948 = vpack.c.b16 %v2652, %v2604
        %v3949 = vpack.c.b16 %v2653, %v2605
        %v3950 = vpack.c.b16 %v2654, %v2606
        %v3951 = vpack.c.b16 %v2655, %v2607
        %v3952 = vpack.c.b16 %v2656, %v2608
        %v3953 = vpack.c.b16 %v2657, %v2609
        %v3954 = vpack.c.b16 %v2658, %v2610
        %v3955 = vpack.c.b16 %v2659, %v2611
        %v3956 = vpack.c.b16 %v2660, %v2612
        %v3957 = vpack.c.b16 %v2661, %v2613
        %v3958 = vpack.c.b16 %v2662, %v2614
        %v3959 = vpack.c.b16 %v2663, %v2615
        %v3960 = vpack.c.b16 %v2664, %v2616
        %v3961 = vpack.c.b16 %v2665, %v2617
        %v3962 = vpack.c.b16 %v2666, %v2618
        %v3963 = vpack.c.b16 %v2667, %v2619
        %v3964 = vpack.c.b16 %v2668, %v2620
        %v3965 = vpack.c.b16 %v2669, %v2621
        %v3966 = vpack.c.b16 %v2670, %v2622
        %v3967 = vpack.c.b16 %v2671, %v2623
        %v3968 = vpack.c.b16 %v2672, %v2624
        %v3969 = vpack.c.b16 %v2673, %v2625
        %v3970 = vpack.c.b16 %v2674, %v2626
        %v3971 = vpack.c.b16 %v2675, %v2627
        %v3972 = vpack.c.b16 %v2676, %v2628
        %v3973 = vpack.c.b16 %v2677, %v2629
        %v3974 = vpack.c.b16 %v2678, %v2630
        %v3975 = vpack.c.b16 %v2679, %v2631
        %v3976 = vpack.c.b16 %v2680, %v2632
        %v3977 = vpack.c.b16 %v2681, %v2633
        %v3978 = vpack.c.b16 %v2682, %v2634
        %v3979 = vpack.c.b16 %v2731, %v2683
        %v3980 = vpack.c.b16 %v2732, %v2684
        %v3981 = vpack.c.b16 %v2733, %v2685
        %v3982 = vpack.c.b16 %v2734, %v2686
        %v3983 = vpack.c.b16 %v2735, %v2687
        %v3984 = vpack.c.b16 %v2736, %v2688
        %v3985 = vpack.c.b16 %v2737, %v2689
        %v3986 = vpack.c.b16 %v2738, %v2690
        %v3987 = vpack.c.b16 %v2739, %v2691
        %v3988 = vpack.c.b16 %v2740, %v2692
        %v3989 = vpack.c.b16 %v2741, %v2693
        %v3990 = vpack.c.b16 %v2742, %v2694
        %v3991 = vpack.c.b16 %v2743, %v2695
        %v3992 = vpack.c.b16 %v2744, %v2696
        %v3993 = vpack.c.b16 %v2745, %v2697
        %v3994 = vpack.c.b16 %v2746, %v2698
        %v3995 = vpack.c.b16 %v2747, %v2699
        %v3996 = vpack.c.b16 %v2748, %v2700
        %v3997 = vpack.c.b16 %v2749, %v2701
        %v3998 = vpack.c.b16 %v2750, %v2702
        %v3999 = vpack.c.b16 %v2751, %v2703
        %v4000 = vpack.c.b16 %v2752, %v2704
        %v4001 = vpack.c.b16 %v2753, %v2705
        %v4002 = vpack.c.b16 %v2754, %v2706
        %v4003 = vpack.c.b16 %v2755, %v2707
        %v4004 = vpack.c.b16 %v2756, %v2708
        %v4005 = vpack.c.b16 %v2757, %v2709
        %v4006 = vpack.c.b16 %v2758, %v2710
        %v4007 = vpack.c.b16 %v2759, %v2711
        %v4008 = vpack.c.b16 %v2760, %v2712
        %v4009 = vpack.c.b16 %v2761, %v2713
        %v4010 = vpack.c.b16 %v2762, %v2714
        %v4011 = vpack.c.b16 %v2763, %v2715
        %v4012 = vpack.c.b16 %v2764, %v2716
        %v4013 = vpack.c.b16 %v2765, %v2717
        %v4014 = vpack.c.b16 %v2766, %v2718
        %v4015 = vpack.c.b16 %v2767, %v2719
        %v4016 = vpack.c.b16 %v2768, %v2720
        %v4017 = vpack.c.b16 %v2769, %v2721
        %v4018 = vpack.c.b16 %v2770, %v2722
        %v4019 = vpack.c.b16 %v2771, %v2723
        %v4020 = vpack.c.b16 %v2772, %v2724
        %v4021 = vpack.c.b16 %v2773, %v2725
        %v4022 = vpack.c.b16 %v2774, %v2726
        %v4023 = vpack.c.b16 %v2775, %v2727
        %v4024 = vpack.c.b16 %v2776, %v2728
        %v4025 = vpack.c.b16 %v2777, %v2729
        %v4026 = vpack.c.b16 %v2778, %v2730
        %v4027 = vpack.c.b16 %v2827, %v2779
        %v4028 = vpack.c.b16 %v2828, %v2780
        %v4029 = vpack.c.b16 %v2829, %v2781
        %v4030 = vpack.c.b16 %v2830, %v2782
        %v4031 = vpack.c.b16 %v2831, %v2783
        %v4032 = vpack.c.b16 %v2832, %v2784
        %v4033 = vpack.c.b16 %v2833, %v2785
        %v4034 = vpack.c.b16 %v2834, %v2786
        %v4035 = vpack.c.b16 %v2835, %v2787
        %v4036 = vpack.c.b16 %v2836, %v2788
        %v4037 = vpack.c.b16 %v2837, %v2789
        %v4038 = vpack.c.b16 %v2838, %v2790
        %v4039 = vpack.c.b16 %v2839, %v2791
        %v4040 = vpack.c.b16 %v2840, %v2792
        %v4041 = vpack.c.b16 %v2841, %v2793
        %v4042 = vpack.c.b16 %v2842, %v2794
        %v4043 = vpack.c.b16 %v2843, %v2795
        %v4044 = vpack.c.b16 %v2844, %v2796
        %v4045 = vpack.c.b16 %v2845, %v2797
        %v4046 = vpack.c.b16 %v2846, %v2798
        %v4047 = vpack.c.b16 %v2847, %v2799
        %v4048 = vpack.c.b16 %v2848, %v2800
        %v4049 = vpack.c.b16 %v2849, %v2801
        %v4050 = vpack.c.b16 %v2850, %v2802
        %v4051 = vpack.c.b16 %v2851, %v2803
        %v4052 = vpack.c.b16 %v2852, %v2804
        %v4053 = vpack.c.b16 %v2853, %v2805
        %v4054 = vpack.c.b16 %v2854, %v2806
        %v4055 = vpack.c.b16 %v2855, %v2807
        %v4056 = vpack.c.b16 %v2856, %v2808
        %v4057 = vpack.c.b16 %v2857, %v2809
        %v4058 = vpack.c.b16 %v2858, %v2810
        %v4059 = vpack.c.b16 %v2859, %v2811
        %v4060 = vpack.c.b16 %v2860, %v2812
        %v4061 = vpack.c.b16 %v2861, %v2813
        %v4062 = vpack.c.b16 %v2862, %v2814
        %v4063 = vpack.c.b16 %v2863, %v2815
        %v4064 = vpack.c.b16 %v2864, %v2816
        %v4065 = vpack.c.b16 %v2865, %v2817
        %v4066 = vpack.c.b16 %v2866, %v2818
        %v4067 = vpack.c.b16 %v2867, %v2819
        %v4068 = vpack.c.b16 %v2868, %v2820
        %v4069 = vpack.c.b16 %v2869, %v2821
        %v4070 = vpack.c.b16 %v2870, %v2822
        %v4071 = vpack.c.b16 %v2871, %v2823
        %v4072 = vpack.c.b16 %v2872, %v2824
        %v4073 = vpack.c.b16 %v2873, %v2825
        %v4074 = vpack.c.b16 %v2874, %v2826
        %v4075 = vpack.c.b16 %v2923, %v2875
        %v4076 = vpack.c.b16 %v2924, %v2876
        %v4077 = vpack.c.b16 %v2925, %v2877
        %v4078 = vpack.c.b16 %v2926, %v2878
        %v4079 = vpack.c.b16 %v2927, %v2879
        %v4080 = vpack.c.b16 %v2928, %v2880
        %v4081 = vpack.c.b16 %v2929, %v2881
        %v4082 = vpack.c.b16 %v2930, %v2882
        %v4083 = vpack.c.b16 %v2931, %v2883
        %v4084 = vpack.c.b16 %v2932, %v2884
        %v4085 = vpack.c.b16 %v2933, %v2885
        %v4086 = vpack.c.b16 %v2934, %v2886
        %v4087 = vpack.c.b16 %v2935, %v2887
        %v4088 = vpack.c.b16 %v2936, %v2888
        %v4089 = vpack.c.b16 %v2937, %v2889
        %v4090 = vpack.c.b16 %v2938, %v2890
        %v4091 = vpack.c.b16 %v2939, %v2891
        %v4092 = vpack.c.b16 %v2940, %v2892
        %v4093 = vpack.c.b16 %v2941, %v2893
        %v4094 = vpack.c.b16 %v2942, %v2894
        %v4095 = vpack.c.b16 %v2943, %v2895
        %v4096 = vpack.c.b16 %v2944, %v2896
        %v4097 = vpack.c.b16 %v2945, %v2897
        %v4098 = vpack.c.b16 %v2946, %v2898
        %v4099 = vpack.c.b16 %v2947, %v2899
        %v4100 = vpack.c.b16 %v2948, %v2900
        %v4101 = vpack.c.b16 %v2949, %v2901
        %v4102 = vpack.c.b16 %v2950, %v2902
        %v4103 = vpack.c.b16 %v2951, %v2903
        %v4104 = vpack.c.b16 %v2952, %v2904
        %v4105 = vpack.c.b16 %v2953, %v2905
        %v4106 = vpack.c.b16 %v2954, %v2906
        %v4107 = vpack.c.b16 %v2955, %v2907
        %v4108 = vpack.c.b16 %v2956, %v2908
        %v4109 = vpack.c.b16 %v2957, %v2909
        %v4110 = vpack.c.b16 %v2958, %v2910
        %v4111 = vpack.c.b16 %v2959, %v2911
        %v4112 = vpack.c.b16 %v2960, %v2912
        %v4113 = vpack.c.b16 %v2961, %v2913
        %v4114 = vpack.c.b16 %v2962, %v2914
        %v4115 = vpack.c.b16 %v2963, %v2915
        %v4116 = vpack.c.b16 %v2964, %v2916
        %v4117 = vpack.c.b16 %v2965, %v2917
        %v4118 = vpack.c.b16 %v2966, %v2918
        %v4119 = vpack.c.b16 %v2967, %v2919
        %v4120 = vpack.c.b16 %v2968, %v2920
        %v4121 = vpack.c.b16 %v2969, %v2921
        %v4122 = vpack.c.b16 %v2970, %v2922
        %v4123 = vpack.c.b16 %v3019, %v2971
        %v4124 = vpack.c.b16 %v3020, %v2972
        %v4125 = vpack.c.b16 %v3021, %v2973
        %v4126 = vpack.c.b16 %v3022, %v2974
        %v4127 = vpack.c.b16 %v3023, %v2975
        %v4128 = vpack.c.b16 %v3024, %v2976
        %v4129 = vpack.c.b16 %v3025, %v2977
        %v4130 = vpack.c.b16 %v3026, %v2978
        %v4131 = vpack.c.b16 %v3027, %v2979
        %v4132 = vpack.c.b16 %v3028, %v2980
        %v4133 = vpack.c.b16 %v3029, %v2981
        %v4134 = vpack.c.b16 %v3030, %v2982
        %v4135 = vpack.c.b16 %v3031, %v2983
        %v4136 = vpack.c.b16 %v3032, %v2984
        %v4137 = vpack.c.b16 %v3033, %v2985
        %v4138 = vpack.c.b16 %v3034, %v2986
        %v4139 = vpack.c.b16 %v3035, %v2987
        %v4140 = vpack.c.b16 %v3036, %v2988
        %v4141 = vpack.c.b16 %v3037, %v2989
        %v4142 = vpack.c.b16 %v3038, %v2990
        %v4143 = vpack.c.b16 %v3039, %v2991
        %v4144 = vpack.c.b16 %v3040, %v2992
        %v4145 = vpack.c.b16 %v3041, %v2993
        %v4146 = vpack.c.b16 %v3042, %v2994
        %v4147 = vpack.c.b16 %v3043, %v2995
        %v4148 = vpack.c.b16 %v3044, %v2996
        %v4149 = vpack.c.b16 %v3045, %v2997
        %v4150 = vpack.c.b16 %v3046, %v2998
        %v4151 = vpack.c.b16 %v3047, %v2999
        %v4152 = vpack.c.b16 %v3048, %v3000
        %v4153 = vpack.c.b16 %v3049, %v3001
        %v4154 = vpack.c.b16 %v3050, %v3002
        %v4155 = vpack.c.b16 %v3051, %v3003
        %v4156 = vpack.c.b16 %v3052, %v3004
        %v4157 = vpack.c.b16 %v3053, %v3005
        %v4158 = vpack.c.b16 %v3054, %v3006
        %v4159 = vpack.c.b16 %v3055, %v3007
        %v4160 = vpack.c.b16 %v3056, %v3008
        %v4161 = vpack.c.b16 %v3057, %v3009
        %v4162 = vpack.c.b16 %v3058, %v3010
        %v4163 = vpack.c.b16 %v3059, %v3011
        %v4164 = vpack.c.b16 %v3060, %v3012
        %v4165 = vpack.c.b16 %v3061, %v3013
        %v4166 = vpack.c.b16 %v3062, %v3014
        %v4167 = vpack.c.b16 %v3063, %v3015
        %v4168 = vpack.c.b16 %v3064, %v3016
        %v4169 = vpack.c.b16 %v3065, %v3017
        %v4170 = vpack.c.b16 %v3066, %v3018
        %v4171 = vpack.c.b16 %v3115, %v3067
        %v4172 = vpack.c.b16 %v3116, %v3068
        %v4173 = vpack.c.b16 %v3117, %v3069
        %v4174 = vpack.c.b16 %v3118, %v3070
        %v4175 = vpack.c.b16 %v3119, %v3071
        %v4176 = vpack.c.b16 %v3120, %v3072
        %v4177 = vpack.c.b16 %v3121, %v3073
        %v4178 = vpack.c.b16 %v3122, %v3074
        %v4179 = vpack.c.b16 %v3123, %v3075
        %v4180 = vpack.c.b16 %v3124, %v3076
        %v4181 = vpack.c.b16 %v3125, %v3077
        %v4182 = vpack.c.b16 %v3126, %v3078
        %v4183 = vpack.c.b16 %v3127, %v3079
        %v4184 = vpack.c.b16 %v3128, %v3080
        %v4185 = vpack.c.b16 %v3129, %v3081
        %v4186 = vpack.c.b16 %v3130, %v3082
        %v4187 = vpack.c.b16 %v3131, %v3083
        %v4188 = vpack.c.b16 %v3132, %v3084
        %v4189 = vpack.c.b16 %v3133, %v3085
        %v4190 = vpack.c.b16 %v3134, %v3086
        %v4191 = vpack.c.b16 %v3135, %v3087
        %v4192 = vpack.c.b16 %v3136, %v3088
        %v4193 = vpack.c.b16 %v3137, %v3089
        %v4194 = vpack.c.b16 %v3138, %v3090
        %v4195 = vpack.c.b16 %v3139, %v3091
        %v4196 = vpack.c.b16 %v3140, %v3092
        %v4197 = vpack.c.b16 %v3141, %v3093
        %v4198 = vpack.c.b16 %v3142, %v3094
        %v4199 = vpack.c.b16 %v3143, %v3095
        %v4200 = vpack.c.b16 %v3144, %v3096
        %v4201 = vpack.c.b16 %v3145, %v3097
        %v4202 = vpack.c.b16 %v3146, %v3098
        %v4203 = vpack.c.b16 %v3147, %v3099
        %v4204 = vpack.c.b16 %v3148, %v3100
        %v4205 = vpack.c.b16 %v3149, %v3101
        %v4206 = vpack.c.b16 %v3150, %v3102
        %v4207 = vpack.c.b16 %v3151, %v3103
        %v4208 = vpack.c.b16 %v3152, %v3104
        %v4209 = vpack.c.b16 %v3153, %v3105
        %v4210 = vpack.c.b16 %v3154, %v3106
        %v4211 = vpack.c.b16 %v3155, %v3107
        %v4212 = vpack.c.b16 %v3156, %v3108
        %v4213 = vpack.c.b16 %v3157, %v3109
        %v4214 = vpack.c.b16 %v3158, %v3110
        %v4215 = vpack.c.b16 %v3159, %v3111
        %v4216 = vpack.c.b16 %v3160, %v3112
        %v4217 = vpack.c.b16 %v3161, %v3113
        %v4218 = vpack.c.b16 %v3162, %v3114
        %v4219 = vpack.c.b16 %v3211, %v3163
        %v4220 = vpack.c.b16 %v3212, %v3164
        %v4221 = vpack.c.b16 %v3213, %v3165
        %v4222 = vpack.c.b16 %v3214, %v3166
        %v4223 = vpack.c.b16 %v3215, %v3167
        %v4224 = vpack.c.b16 %v3216, %v3168
        %v4225 = vpack.c.b16 %v3217, %v3169
        %v4226 = vpack.c.b16 %v3218, %v3170
        %v4227 = vpack.c.b16 %v3219, %v3171
        %v4228 = vpack.c.b16 %v3220, %v3172
        %v4229 = vpack.c.b16 %v3221, %v3173
        %v4230 = vpack.c.b16 %v3222, %v3174
        %v4231 = vpack.c.b16 %v3223, %v3175
        %v4232 = vpack.c.b16 %v3224, %v3176
        %v4233 = vpack.c.b16 %v3225, %v3177
        %v4234 = vpack.c.b16 %v3226, %v3178
        %v4235 = vpack.c.b16 %v3227, %v3179
        %v4236 = vpack.c.b16 %v3228, %v3180
        %v4237 = vpack.c.b16 %v3229, %v3181
        %v4238 = vpack.c.b16 %v3230, %v3182
        %v4239 = vpack.c.b16 %v3231, %v3183
        %v4240 = vpack.c.b16 %v3232, %v3184
        %v4241 = vpack.c.b16 %v3233, %v3185
        %v4242 = vpack.c.b16 %v3234, %v3186
        %v4243 = vpack.c.b16 %v3235, %v3187
        %v4244 = vpack.c.b16 %v3236, %v3188
        %v4245 = vpack.c.b16 %v3237, %v3189
        %v4246 = vpack.c.b16 %v3238, %v3190
        %v4247 = vpack.c.b16 %v3239, %v3191
        %v4248 = vpack.c.b16 %v3240, %v3192
        %v4249 = vpack.c.b16 %v3241, %v3193
        %v4250 = vpack.c.b16 %v3242, %v3194
        %v4251 = vpack.c.b16 %v3243, %v3195
        %v4252 = vpack.c.b16 %v3244, %v3196
        %v4253 = vpack.c.b16 %v3245, %v3197
        %v4254 = vpack.c.b16 %v3246, %v3198
        %v4255 = vpack.c.b16 %v3247, %v3199
        %v4256 = vpack.c.b16 %v3248, %v3200
        %v4257 = vpack.c.b16 %v3249, %v3201
        %v4258 = vpack.c.b16 %v3250, %v3202
        %v4259 = vpack.c.b16 %v3251, %v3203
        %v4260 = vpack.c.b16 %v3252, %v3204
        %v4261 = vpack.c.b16 %v3253, %v3205
        %v4262 = vpack.c.b16 %v3254, %v3206
        %v4263 = vpack.c.b16 %v3255, %v3207
        %v4264 = vpack.c.b16 %v3256, %v3208
        %v4265 = vpack.c.b16 %v3257, %v3209
        %v4266 = vpack.c.b16 %v3258, %v3210
        %v4267 = vpack.c.b16 %v3307, %v3259
        %v4268 = vpack.c.b16 %v3308, %v3260
        %v4269 = vpack.c.b16 %v3309, %v3261
        %v4270 = vpack.c.b16 %v3310, %v3262
        %v4271 = vpack.c.b16 %v3311, %v3263
        %v4272 = vpack.c.b16 %v3312, %v3264
        %v4273 = vpack.c.b16 %v3313, %v3265
        %v4274 = vpack.c.b16 %v3314, %v3266
        %v4275 = vpack.c.b16 %v3315, %v3267
        %v4276 = vpack.c.b16 %v3316, %v3268
        %v4277 = vpack.c.b16 %v3317, %v3269
        %v4278 = vpack.c.b16 %v3318, %v3270
        %v4279 = vpack.c.b16 %v3319, %v3271
        %v4280 = vpack.c.b16 %v3320, %v3272
        %v4281 = vpack.c.b16 %v3321, %v3273
        %v4282 = vpack.c.b16 %v3322, %v3274
        %v4283 = vpack.c.b16 %v3323, %v3275
        %v4284 = vpack.c.b16 %v3324, %v3276
        %v4285 = vpack.c.b16 %v3325, %v3277
        %v4286 = vpack.c.b16 %v3326, %v3278
        %v4287 = vpack.c.b16 %v3327, %v3279
        %v4288 = vpack.c.b16 %v3328, %v3280
        %v4289 = vpack.c.b16 %v3329, %v3281
        %v4290 = vpack.c.b16 %v3330, %v3282
        %v4291 = vpack.c.b16 %v3331, %v3283
        %v4292 = vpack.c.b16 %v3332, %v3284
        %v4293 = vpack.c.b16 %v3333, %v3285
        %v4294 = vpack.c.b16 %v3334, %v3286
        %v4295 = vpack.c.b16 %v3335, %v3287
        %v4296 = vpack.c.b16 %v3336, %v3288
        %v4297 = vpack.c.b16 %v3337, %v3289
        %v4298 = vpack.c.b16 %v3338, %v3290
        %v4299 = vpack.c.b16 %v3339, %v3291
        %v4300 = vpack.c.b16 %v3340, %v3292
        %v4301 = vpack.c.b16 %v3341, %v3293
        %v4302 = vpack.c.b16 %v3342, %v3294
        %v4303 = vpack.c.b16 %v3343, %v3295
        %v4304 = vpack.c.b16 %v3344, %v3296
        %v4305 = vpack.c.b16 %v3345, %v3297
        %v4306 = vpack.c.b16 %v3346, %v3298
        %v4307 = vpack.c.b16 %v3347, %v3299
        %v4308 = vpack.c.b16 %v3348, %v3300
        %v4309 = vpack.c.b16 %v3349, %v3301
        %v4310 = vpack.c.b16 %v3350, %v3302
        %v4311 = vpack.c.b16 %v3351, %v3303
        %v4312 = vpack.c.b16 %v3352, %v3304
        %v4313 = vpack.c.b16 %v3353, %v3305
        %v4314 = vpack.c.b16 %v3354, %v3306
        %v4315 = vpack.c.b16 %v3403, %v3355
        %v4316 = vpack.c.b16 %v3404, %v3356
        %v4317 = vpack.c.b16 %v3405, %v3357
        %v4318 = vpack.c.b16 %v3406, %v3358
        %v4319 = vpack.c.b16 %v3407, %v3359
        %v4320 = vpack.c.b16 %v3408, %v3360
        %v4321 = vpack.c.b16 %v3409, %v3361
        %v4322 = vpack.c.b16 %v3410, %v3362
        %v4323 = vpack.c.b16 %v3411, %v3363
        %v4324 = vpack.c.b16 %v3412, %v3364
        %v4325 = vpack.c.b16 %v3413, %v3365
        %v4326 = vpack.c.b16 %v3414, %v3366
        %v4327 = vpack.c.b16 %v3415, %v3367
        %v4328 = vpack.c.b16 %v3416, %v3368
        %v4329 = vpack.c.b16 %v3417, %v3369
        %v4330 = vpack.c.b16 %v3418, %v3370
        %v4331 = vpack.c.b16 %v3419, %v3371
        %v4332 = vpack.c.b16 %v3420, %v3372
        %v4333 = vpack.c.b16 %v3421, %v3373
        %v4334 = vpack.c.b16 %v3422, %v3374
        %v4335 = vpack.c.b16 %v3423, %v3375
        %v4336 = vpack.c.b16 %v3424, %v3376
        %v4337 = vpack.c.b16 %v3425, %v3377
        %v4338 = vpack.c.b16 %v3426, %v3378
        %v4339 = vpack.c.b16 %v3427, %v3379
        %v4340 = vpack.c.b16 %v3428, %v3380
        %v4341 = vpack.c.b16 %v3429, %v3381
        %v4342 = vpack.c.b16 %v3430, %v3382
        %v4343 = vpack.c.b16 %v3431, %v3383
        %v4344 = vpack.c.b16 %v3432, %v3384
        %v4345 = vpack.c.b16 %v3433, %v3385
        %v4346 = vpack.c.b16 %v3434, %v3386
        %v4347 = vpack.c.b16 %v3435, %v3387
        %v4348 = vpack.c.b16 %v3436, %v3388
        %v4349 = vpack.c.b16 %v3437, %v3389
        %v4350 = vpack.c.b16 %v3438, %v3390
        %v4351 = vpack.c.b16 %v3439, %v3391
        %v4352 = vpack.c.b16 %v3440, %v3392
        %v4353 = vpack.c.b16 %v3441, %v3393
        %v4354 = vpack.c.b16 %v3442, %v3394
        %v4355 = vpack.c.b16 %v3443, %v3395
        %v4356 = vpack.c.b16 %v3444, %v3396
        %v4357 = vpack.c.b16 %v3445, %v3397
        %v4358 = vpack.c.b16 %v3446, %v3398
        %v4359 = vpack.c.b16 %v3447, %v3399
        %v4360 = vpack.c.b16 %v3448, %v3400
        %v4361 = vpack.c.b16 %v3449, %v3401
        %v4362 = vpack.c.b16 %v3450, %v3402
        %v4363 = vpack.c.b16 %v3499, %v3451
        %v4364 = vpack.c.b16 %v3500, %v3452
        %v4365 = vpack.c.b16 %v3501, %v3453
        %v4366 = vpack.c.b16 %v3502, %v3454
        %v4367 = vpack.c.b16 %v3503, %v3455
        %v4368 = vpack.c.b16 %v3504, %v3456
        %v4369 = vpack.c.b16 %v3505, %v3457
        %v4370 = vpack.c.b16 %v3506, %v3458
        %v4371 = vpack.c.b16 %v3507, %v3459
        %v4372 = vpack.c.b16 %v3508, %v3460
        %v4373 = vpack.c.b16 %v3509, %v3461
        %v4374 = vpack.c.b16 %v3510, %v3462
        %v4375 = vpack.c.b16 %v3511, %v3463
        %v4376 = vpack.c.b16 %v3512, %v3464
        %v4377 = vpack.c.b16 %v3513, %v3465
        %v4378 = vpack.c.b16 %v3514, %v3466
        %v4379 = vpack.c.b16 %v3515, %v3467
        %v4380 = vpack.c.b16 %v3516, %v3468
        %v4381 = vpack.c.b16 %v3517, %v3469
        %v4382 = vpack.c.b16 %v3518, %v3470
        %v4383 = vpack.c.b16 %v3519, %v3471
        %v4384 = vpack.c.b16 %v3520, %v3472
        %v4385 = vpack.c.b16 %v3521, %v3473
        %v4386 = vpack.c.b16 %v3522, %v3474
        %v4387 = vpack.c.b16 %v3523, %v3475
        %v4388 = vpack.c.b16 %v3524, %v3476
        %v4389 = vpack.c.b16 %v3525, %v3477
        %v4390 = vpack.c.b16 %v3526, %v3478
        %v4391 = vpack.c.b16 %v3527, %v3479
        %v4392 = vpack.c.b16 %v3528, %v3480
        %v4393 = vpack.c.b16 %v3529, %v3481
        %v4394 = vpack.c.b16 %v3530, %v3482
        %v4395 = vpack.c.b16 %v3531, %v3483
        %v4396 = vpack.c.b16 %v3532, %v3484
        %v4397 = vpack.c.b16 %v3533, %v3485
        %v4398 = vpack.c.b16 %v3534, %v3486
        %v4399 = vpack.c.b16 %v3535, %v3487
        %v4400 = vpack.c.b16 %v3536, %v3488
        %v4401 = vpack.c.b16 %v3537, %v3489
        %v4402 = vpack.c.b16 %v3538, %v3490
        %v4403 = vpack.c.b16 %v3539, %v3491
        %v4404 = vpack.c.b16 %v3540, %v3492
        %v4405 = vpack.c.b16 %v3541, %v3493
        %v4406 = vpack.c.b16 %v3542, %v3494
        %v4407 = vpack.c.b16 %v3543, %v3495
        %v4408 = vpack.c.b16 %v3544, %v3496
        %v4409 = vpack.c.b16 %v3545, %v3497
        %v4410 = vpack.c.b16 %v3546, %v3498
        %v4411 = vpack.c.b16 %v3595, %v3547
        %v4412 = vpack.c.b16 %v3596, %v3548
        %v4413 = vpack.c.b16 %v3597, %v3549
        %v4414 = vpack.c.b16 %v3598, %v3550
        %v4415 = vpack.c.b16 %v3599, %v3551
        %v4416 = vpack.c.b16 %v3600, %v3552
        %v4417 = vpack.c.b16 %v3601, %v3553
        %v4418 = vpack.c.b16 %v3602, %v3554
        %v4419 = vpack.c.b16 %v3603, %v3555
        %v4420 = vpack.c.b16 %v3604, %v3556
        %v4421 = vpack.c.b16 %v3605, %v3557
        %v4422 = vpack.c.b16 %v3606, %v3558
        %v4423 = vpack.c.b16 %v3607, %v3559
        %v4424 = vpack.c.b16 %v3608, %v3560
        %v4425 = vpack.c.b16 %v3609, %v3561
        %v4426 = vpack.c.b16 %v3610, %v3562
        %v4427 = vpack.c.b16 %v3611, %v3563
        %v4428 = vpack.c.b16 %v3612, %v3564
        %v4429 = vpack.c.b16 %v3613, %v3565
        %v4430 = vpack.c.b16 %v3614, %v3566
        %v4431 = vpack.c.b16 %v3615, %v3567
        %v4432 = vpack.c.b16 %v3616, %v3568
        %v4433 = vpack.c.b16 %v3617, %v3569
        %v4434 = vpack.c.b16 %v3618, %v3570
        %v4435 = vpack.c.b16 %v3619, %v3571
        %v4436 = vpack.c.b16 %v3620, %v3572
        %v4437 = vpack.c.b16 %v3621, %v3573
        %v4438 = vpack.c.b16 %v3622, %v3574
        %v4439 = vpack.c.b16 %v3623, %v3575
        %v4440 = vpack.c.b16 %v3624, %v3576
        %v4441 = vpack.c.b16 %v3625, %v3577
        %v4442 = vpack.c.b16 %v3626, %v3578
        %v4443 = vpack.c.b16 %v3627, %v3579
        %v4444 = vpack.c.b16 %v3628, %v3580
        %v4445 = vpack.c.b16 %v3629, %v3581
        %v4446 = vpack.c.b16 %v3630, %v3582
        %v4447 = vpack.c.b16 %v3631, %v3583
        %v4448 = vpack.c.b16 %v3632, %v3584
        %v4449 = vpack.c.b16 %v3633, %v3585
        %v4450 = vpack.c.b16 %v3634, %v3586
        %v4451 = vpack.c.b16 %v3635, %v3587
        %v4452 = vpack.c.b16 %v3636, %v3588
        %v4453 = vpack.c.b16 %v3637, %v3589
        %v4454 = vpack.c.b16 %v3638, %v3590
        %v4455 = vpack.c.b16 %v3639, %v3591
        %v4456 = vpack.c.b16 %v3640, %v3592
        %v4457 = vpack.c.b16 %v3641, %v3593
        %v4458 = vpack.c.b16 %v3642, %v3594
        %v4459 = vpack.c.b16 %v3691, %v3643
        %v4460 = vpack.c.b16 %v3692, %v3644
        %v4461 = vpack.c.b16 %v3693, %v3645
        %v4462 = vpack.c.b16 %v3694, %v3646
        %v4463 = vpack.c.b16 %v3695, %v3647
        %v4464 = vpack.c.b16 %v3696, %v3648
        %v4465 = vpack.c.b16 %v3697, %v3649
        %v4466 = vpack.c.b16 %v3698, %v3650
        %v4467 = vpack.c.b16 %v3699, %v3651
        %v4468 = vpack.c.b16 %v3700, %v3652
        %v4469 = vpack.c.b16 %v3701, %v3653
        %v4470 = vpack.c.b16 %v3702, %v3654
        %v4471 = vpack.c.b16 %v3703, %v3655
        %v4472 = vpack.c.b16 %v3704, %v3656
        %v4473 = vpack.c.b16 %v3705, %v3657
        %v4474 = vpack.c.b16 %v3706, %v3658
        %v4475 = vpack.c.b16 %v3707, %v3659
        %v4476 = vpack.c.b16 %v3708, %v3660
        %v4477 = vpack.c.b16 %v3709, %v3661
        %v4478 = vpack.c.b16 %v3710, %v3662
        %v4479 = vpack.c.b16 %v3711, %v3663
        %v4480 = vpack.c.b16 %v3712, %v3664
        %v4481 = vpack.c.b16 %v3713, %v3665
        %v4482 = vpack.c.b16 %v3714, %v3666
        %v4483 = vpack.c.b16 %v3715, %v3667
        %v4484 = vpack.c.b16 %v3716, %v3668
        %v4485 = vpack.c.b16 %v3717, %v3669
        %v4486 = vpack.c.b16 %v3718, %v3670
        %v4487 = vpack.c.b16 %v3719, %v3671
        %v4488 = vpack.c.b16 %v3720, %v3672
        %v4489 = vpack.c.b16 %v3721, %v3673
        %v4490 = vpack.c.b16 %v3722, %v3674
        %v4491 = vpack.c.b16 %v3723, %v3675
        %v4492 = vpack.c.b16 %v3724, %v3676
        %v4493 = vpack.c.b16 %v3725, %v3677
        %v4494 = vpack.c.b16 %v3726, %v3678
        %v4495 = vpack.c.b16 %v3727, %v3679
        %v4496 = vpack.c.b16 %v3728, %v3680
        %v4497 = vpack.c.b16 %v3729, %v3681
        %v4498 = vpack.c.b16 %v3730, %v3682
        %v4499 = vpack.c.b16 %v3731, %v3683
        %v4500 = vpack.c.b16 %v3732, %v3684
        %v4501 = vpack.c.b16 %v3733, %v3685
        %v4502 = vpack.c.b16 %v3734, %v3686
        %v4503 = vpack.c.b16 %v3735, %v3687
        %v4504 = vpack.c.b16 %v3736, %v3688
        %v4505 = vpack.c.b16 %v3737, %v3689
        %v4506 = vpack.c.b16 %v3738, %v3690
        %5275 = vmatpush.bf16.msra.mxu0 %v4075
        %5276 = vmatpush.bf16.msra.mxu0 %v4027
        %5277 = vmatpush.bf16.msra.mxu0 %v3979
        %5278 = vmatpush.bf16.msra.mxu0 %v3931
        %5279 = vmatpush.bf16.msra.mxu0 %v3883
        %5280 = vmatpush.bf16.msra.mxu0 %v3835
        %5281 = vmatpush.bf16.msra.mxu0 %v3787
        %5282 = vmatpush.bf16.msra.mxu0 %v3739
        %5283 = vmatmul.bf16.gmra.mxu0 %v557
        %v5284 = vpop.f32.mrf.mxu0
        %v5285 = vadd.f32 %v1339, %v5284
        %v5286 = vpop.f32.mrf.mxu0
        %5287 = vdwg.mxu0
        %5288 = vmatpush.bf16.msra.mxu0 %v4459
        %5289 = vmatpush.bf16.msra.mxu0 %v4411
        %5290 = vmatpush.bf16.msra.mxu0 %v4363
        %5291 = vmatpush.bf16.msra.mxu0 %v4315
        %5292 = vmatpush.bf16.msra.mxu0 %v4267
        %5293 = vmatpush.bf16.msra.mxu0 %v4219
        %5294 = vmatpush.bf16.msra.mxu0 %v4171
        %5295 = vmatpush.bf16.msra.mxu0 %v4123
        %5296 = vmatmul.bf16.gmra.mxu0 %v558
        %v5297 = vpop.f32.mrf.mxu0
        %v5298 = vadd.f32 %v5285, %v5297
        %v5299 = vpop.f32.mrf.mxu0
        %5300 = vdwg.mxu0
        %5301 = vmatpush.bf16.msra.mxu0 %v4076
        %5302 = vmatpush.bf16.msra.mxu0 %v4028
        %5303 = vmatpush.bf16.msra.mxu0 %v3980
        %5304 = vmatpush.bf16.msra.mxu0 %v3932
        %5305 = vmatpush.bf16.msra.mxu0 %v3884
        %5306 = vmatpush.bf16.msra.mxu0 %v3836
        %5307 = vmatpush.bf16.msra.mxu0 %v3788
        %5308 = vmatpush.bf16.msra.mxu0 %v3740
        %5309 = vmatmul.bf16.gmra.mxu0 %v557
        %v5310 = vpop.f32.mrf.mxu0
        %v5311 = vadd.f32 %v1340, %v5310
        %v5312 = vpop.f32.mrf.mxu0
        %5313 = vdwg.mxu0
        %5314 = vmatpush.bf16.msra.mxu0 %v4460
        %5315 = vmatpush.bf16.msra.mxu0 %v4412
        %5316 = vmatpush.bf16.msra.mxu0 %v4364
        %5317 = vmatpush.bf16.msra.mxu0 %v4316
        %5318 = vmatpush.bf16.msra.mxu0 %v4268
        %5319 = vmatpush.bf16.msra.mxu0 %v4220
        %5320 = vmatpush.bf16.msra.mxu0 %v4172
        %5321 = vmatpush.bf16.msra.mxu0 %v4124
        %5322 = vmatmul.bf16.gmra.mxu0 %v558
        %v5323 = vpop.f32.mrf.mxu0
        %v5324 = vadd.f32 %v5311, %v5323
        %v5325 = vpop.f32.mrf.mxu0
        %5326 = vdwg.mxu0
        %5327 = vmatpush.bf16.msra.mxu0 %v4077
        %5328 = vmatpush.bf16.msra.mxu0 %v4029
        %5329 = vmatpush.bf16.msra.mxu0 %v3981
        %5330 = vmatpush.bf16.msra.mxu0 %v3933
        %5331 = vmatpush.bf16.msra.mxu0 %v3885
        %5332 = vmatpush.bf16.msra.mxu0 %v3837
        %5333 = vmatpush.bf16.msra.mxu0 %v3789
        %5334 = vmatpush.bf16.msra.mxu0 %v3741
        %5335 = vmatmul.bf16.gmra.mxu0 %v557
        %v5336 = vpop.f32.mrf.mxu0
        %v5337 = vadd.f32 %v1341, %v5336
        %v5338 = vpop.f32.mrf.mxu0
        %5339 = vdwg.mxu0
        %5340 = vmatpush.bf16.msra.mxu0 %v4461
        %5341 = vmatpush.bf16.msra.mxu0 %v4413
        %5342 = vmatpush.bf16.msra.mxu0 %v4365
        %5343 = vmatpush.bf16.msra.mxu0 %v4317
        %5344 = vmatpush.bf16.msra.mxu0 %v4269
        %5345 = vmatpush.bf16.msra.mxu0 %v4221
        %5346 = vmatpush.bf16.msra.mxu0 %v4173
        %5347 = vmatpush.bf16.msra.mxu0 %v4125
        %5348 = vmatmul.bf16.gmra.mxu0 %v558
        %v5349 = vpop.f32.mrf.mxu0
        %v5350 = vadd.f32 %v5337, %v5349
        %v5351 = vpop.f32.mrf.mxu0
        %5352 = vdwg.mxu0
        %5353 = vmatpush.bf16.msra.mxu0 %v4078
        %5354 = vmatpush.bf16.msra.mxu0 %v4030
        %5355 = vmatpush.bf16.msra.mxu0 %v3982
        %5356 = vmatpush.bf16.msra.mxu0 %v3934
        %5357 = vmatpush.bf16.msra.mxu0 %v3886
        %5358 = vmatpush.bf16.msra.mxu0 %v3838
        %5359 = vmatpush.bf16.msra.mxu0 %v3790
        %5360 = vmatpush.bf16.msra.mxu0 %v3742
        %5361 = vmatmul.bf16.gmra.mxu0 %v557
        %v5362 = vpop.f32.mrf.mxu0
        %v5363 = vadd.f32 %v1342, %v5362
        %v5364 = vpop.f32.mrf.mxu0
        %5365 = vdwg.mxu0
        %5366 = vmatpush.bf16.msra.mxu0 %v4462
        %5367 = vmatpush.bf16.msra.mxu0 %v4414
        %5368 = vmatpush.bf16.msra.mxu0 %v4366
        %5369 = vmatpush.bf16.msra.mxu0 %v4318
        %5370 = vmatpush.bf16.msra.mxu0 %v4270
        %5371 = vmatpush.bf16.msra.mxu0 %v4222
        %5372 = vmatpush.bf16.msra.mxu0 %v4174
        %5373 = vmatpush.bf16.msra.mxu0 %v4126
        %5374 = vmatmul.bf16.gmra.mxu0 %v558
        %v5375 = vpop.f32.mrf.mxu0
        %v5376 = vadd.f32 %v5363, %v5375
        %v5377 = vpop.f32.mrf.mxu0
        %5378 = vdwg.mxu0
        %5379 = vmatpush.bf16.msra.mxu0 %v4079
        %5380 = vmatpush.bf16.msra.mxu0 %v4031
        %5381 = vmatpush.bf16.msra.mxu0 %v3983
        %5382 = vmatpush.bf16.msra.mxu0 %v3935
        %5383 = vmatpush.bf16.msra.mxu0 %v3887
        %5384 = vmatpush.bf16.msra.mxu0 %v3839
        %5385 = vmatpush.bf16.msra.mxu0 %v3791
        %5386 = vmatpush.bf16.msra.mxu0 %v3743
        %5387 = vmatmul.bf16.gmra.mxu0 %v557
        %v5388 = vpop.f32.mrf.mxu0
        %v5389 = vadd.f32 %v1343, %v5388
        %v5390 = vpop.f32.mrf.mxu0
        %5391 = vdwg.mxu0
        %5392 = vmatpush.bf16.msra.mxu0 %v4463
        %5393 = vmatpush.bf16.msra.mxu0 %v4415
        %5394 = vmatpush.bf16.msra.mxu0 %v4367
        %5395 = vmatpush.bf16.msra.mxu0 %v4319
        %5396 = vmatpush.bf16.msra.mxu0 %v4271
        %5397 = vmatpush.bf16.msra.mxu0 %v4223
        %5398 = vmatpush.bf16.msra.mxu0 %v4175
        %5399 = vmatpush.bf16.msra.mxu0 %v4127
        %5400 = vmatmul.bf16.gmra.mxu0 %v558
        %v5401 = vpop.f32.mrf.mxu0
        %v5402 = vadd.f32 %v5389, %v5401
        %v5403 = vpop.f32.mrf.mxu0
        %5404 = vdwg.mxu0
        %5405 = vmatpush.bf16.msra.mxu0 %v4080
        %5406 = vmatpush.bf16.msra.mxu0 %v4032
        %5407 = vmatpush.bf16.msra.mxu0 %v3984
        %5408 = vmatpush.bf16.msra.mxu0 %v3936
        %5409 = vmatpush.bf16.msra.mxu0 %v3888
        %5410 = vmatpush.bf16.msra.mxu0 %v3840
        %5411 = vmatpush.bf16.msra.mxu0 %v3792
        %5412 = vmatpush.bf16.msra.mxu0 %v3744
        %5413 = vmatmul.bf16.gmra.mxu0 %v557
        %v5414 = vpop.f32.mrf.mxu0
        %v5415 = vadd.f32 %v1344, %v5414
        %v5416 = vpop.f32.mrf.mxu0
        %5417 = vdwg.mxu0
        %5418 = vmatpush.bf16.msra.mxu0 %v4464
        %5419 = vmatpush.bf16.msra.mxu0 %v4416
        %5420 = vmatpush.bf16.msra.mxu0 %v4368
        %5421 = vmatpush.bf16.msra.mxu0 %v4320
        %5422 = vmatpush.bf16.msra.mxu0 %v4272
        %5423 = vmatpush.bf16.msra.mxu0 %v4224
        %5424 = vmatpush.bf16.msra.mxu0 %v4176
        %5425 = vmatpush.bf16.msra.mxu0 %v4128
        %5426 = vmatmul.bf16.gmra.mxu0 %v558
        %v5427 = vpop.f32.mrf.mxu0
        %v5428 = vadd.f32 %v5415, %v5427
        %v5429 = vpop.f32.mrf.mxu0
        %5430 = vdwg.mxu0
        %5431 = vmatpush.bf16.msra.mxu0 %v4081
        %5432 = vmatpush.bf16.msra.mxu0 %v4033
        %5433 = vmatpush.bf16.msra.mxu0 %v3985
        %5434 = vmatpush.bf16.msra.mxu0 %v3937
        %5435 = vmatpush.bf16.msra.mxu0 %v3889
        %5436 = vmatpush.bf16.msra.mxu0 %v3841
        %5437 = vmatpush.bf16.msra.mxu0 %v3793
        %5438 = vmatpush.bf16.msra.mxu0 %v3745
        %5439 = vmatmul.bf16.gmra.mxu0 %v557
        %v5440 = vpop.f32.mrf.mxu0
        %v5441 = vadd.f32 %v1345, %v5440
        %v5442 = vpop.f32.mrf.mxu0
        %5443 = vdwg.mxu0
        %5444 = vmatpush.bf16.msra.mxu0 %v4465
        %5445 = vmatpush.bf16.msra.mxu0 %v4417
        %5446 = vmatpush.bf16.msra.mxu0 %v4369
        %5447 = vmatpush.bf16.msra.mxu0 %v4321
        %5448 = vmatpush.bf16.msra.mxu0 %v4273
        %5449 = vmatpush.bf16.msra.mxu0 %v4225
        %5450 = vmatpush.bf16.msra.mxu0 %v4177
        %5451 = vmatpush.bf16.msra.mxu0 %v4129
        %5452 = vmatmul.bf16.gmra.mxu0 %v558
        %v5453 = vpop.f32.mrf.mxu0
        %v5454 = vadd.f32 %v5441, %v5453
        %v5455 = vpop.f32.mrf.mxu0
        %5456 = vdwg.mxu0
        %5457 = vmatpush.bf16.msra.mxu0 %v4082
        %5458 = vmatpush.bf16.msra.mxu0 %v4034
        %5459 = vmatpush.bf16.msra.mxu0 %v3986
        %5460 = vmatpush.bf16.msra.mxu0 %v3938
        %5461 = vmatpush.bf16.msra.mxu0 %v3890
        %5462 = vmatpush.bf16.msra.mxu0 %v3842
        %5463 = vmatpush.bf16.msra.mxu0 %v3794
        %5464 = vmatpush.bf16.msra.mxu0 %v3746
        %5465 = vmatmul.bf16.gmra.mxu0 %v557
        %v5466 = vpop.f32.mrf.mxu0
        %v5467 = vadd.f32 %v1346, %v5466
        %v5468 = vpop.f32.mrf.mxu0
        %5469 = vdwg.mxu0
        %5470 = vmatpush.bf16.msra.mxu0 %v4466
        %5471 = vmatpush.bf16.msra.mxu0 %v4418
        %5472 = vmatpush.bf16.msra.mxu0 %v4370
        %5473 = vmatpush.bf16.msra.mxu0 %v4322
        %5474 = vmatpush.bf16.msra.mxu0 %v4274
        %5475 = vmatpush.bf16.msra.mxu0 %v4226
        %5476 = vmatpush.bf16.msra.mxu0 %v4178
        %5477 = vmatpush.bf16.msra.mxu0 %v4130
        %5478 = vmatmul.bf16.gmra.mxu0 %v558
        %v5479 = vpop.f32.mrf.mxu0
        %v5480 = vadd.f32 %v5467, %v5479
        %v5481 = vpop.f32.mrf.mxu0
        %5482 = vdwg.mxu0
        %5483 = vmatpush.bf16.msra.mxu0 %v4083
        %5484 = vmatpush.bf16.msra.mxu0 %v4035
        %5485 = vmatpush.bf16.msra.mxu0 %v3987
        %5486 = vmatpush.bf16.msra.mxu0 %v3939
        %5487 = vmatpush.bf16.msra.mxu0 %v3891
        %5488 = vmatpush.bf16.msra.mxu0 %v3843
        %5489 = vmatpush.bf16.msra.mxu0 %v3795
        %5490 = vmatpush.bf16.msra.mxu0 %v3747
        %5491 = vmatmul.bf16.gmra.mxu0 %v557
        %v5492 = vpop.f32.mrf.mxu0
        %v5493 = vadd.f32 %v1347, %v5492
        %v5494 = vpop.f32.mrf.mxu0
        %5495 = vdwg.mxu0
        %5496 = vmatpush.bf16.msra.mxu0 %v4467
        %5497 = vmatpush.bf16.msra.mxu0 %v4419
        %5498 = vmatpush.bf16.msra.mxu0 %v4371
        %5499 = vmatpush.bf16.msra.mxu0 %v4323
        %5500 = vmatpush.bf16.msra.mxu0 %v4275
        %5501 = vmatpush.bf16.msra.mxu0 %v4227
        %5502 = vmatpush.bf16.msra.mxu0 %v4179
        %5503 = vmatpush.bf16.msra.mxu0 %v4131
        %5504 = vmatmul.bf16.gmra.mxu0 %v558
        %v5505 = vpop.f32.mrf.mxu0
        %v5506 = vadd.f32 %v5493, %v5505
        %v5507 = vpop.f32.mrf.mxu0
        %5508 = vdwg.mxu0
        %5509 = vmatpush.bf16.msra.mxu0 %v4084
        %5510 = vmatpush.bf16.msra.mxu0 %v4036
        %5511 = vmatpush.bf16.msra.mxu0 %v3988
        %5512 = vmatpush.bf16.msra.mxu0 %v3940
        %5513 = vmatpush.bf16.msra.mxu0 %v3892
        %5514 = vmatpush.bf16.msra.mxu0 %v3844
        %5515 = vmatpush.bf16.msra.mxu0 %v3796
        %5516 = vmatpush.bf16.msra.mxu0 %v3748
        %5517 = vmatmul.bf16.gmra.mxu0 %v557
        %v5518 = vpop.f32.mrf.mxu0
        %v5519 = vadd.f32 %v1348, %v5518
        %v5520 = vpop.f32.mrf.mxu0
        %5521 = vdwg.mxu0
        %5522 = vmatpush.bf16.msra.mxu0 %v4468
        %5523 = vmatpush.bf16.msra.mxu0 %v4420
        %5524 = vmatpush.bf16.msra.mxu0 %v4372
        %5525 = vmatpush.bf16.msra.mxu0 %v4324
        %5526 = vmatpush.bf16.msra.mxu0 %v4276
        %5527 = vmatpush.bf16.msra.mxu0 %v4228
        %5528 = vmatpush.bf16.msra.mxu0 %v4180
        %5529 = vmatpush.bf16.msra.mxu0 %v4132
        %5530 = vmatmul.bf16.gmra.mxu0 %v558
        %v5531 = vpop.f32.mrf.mxu0
        %v5532 = vadd.f32 %v5519, %v5531
        %v5533 = vpop.f32.mrf.mxu0
        %5534 = vdwg.mxu0
        %5535 = vmatpush.bf16.msra.mxu0 %v4085
        %5536 = vmatpush.bf16.msra.mxu0 %v4037
        %5537 = vmatpush.bf16.msra.mxu0 %v3989
        %5538 = vmatpush.bf16.msra.mxu0 %v3941
        %5539 = vmatpush.bf16.msra.mxu0 %v3893
        %5540 = vmatpush.bf16.msra.mxu0 %v3845
        %5541 = vmatpush.bf16.msra.mxu0 %v3797
        %5542 = vmatpush.bf16.msra.mxu0 %v3749
        %5543 = vmatmul.bf16.gmra.mxu0 %v557
        %v5544 = vpop.f32.mrf.mxu0
        %v5545 = vadd.f32 %v1349, %v5544
        %v5546 = vpop.f32.mrf.mxu0
        %5547 = vdwg.mxu0
        %5548 = vmatpush.bf16.msra.mxu0 %v4469
        %5549 = vmatpush.bf16.msra.mxu0 %v4421
        %5550 = vmatpush.bf16.msra.mxu0 %v4373
        %5551 = vmatpush.bf16.msra.mxu0 %v4325
        %5552 = vmatpush.bf16.msra.mxu0 %v4277
        %5553 = vmatpush.bf16.msra.mxu0 %v4229
        %5554 = vmatpush.bf16.msra.mxu0 %v4181
        %5555 = vmatpush.bf16.msra.mxu0 %v4133
        %5556 = vmatmul.bf16.gmra.mxu0 %v558
        %v5557 = vpop.f32.mrf.mxu0
        %v5558 = vadd.f32 %v5545, %v5557
        %v5559 = vpop.f32.mrf.mxu0
        %5560 = vdwg.mxu0
        %5561 = vmatpush.bf16.msra.mxu0 %v4086
        %5562 = vmatpush.bf16.msra.mxu0 %v4038
        %5563 = vmatpush.bf16.msra.mxu0 %v3990
        %5564 = vmatpush.bf16.msra.mxu0 %v3942
        %5565 = vmatpush.bf16.msra.mxu0 %v3894
        %5566 = vmatpush.bf16.msra.mxu0 %v3846
        %5567 = vmatpush.bf16.msra.mxu0 %v3798
        %5568 = vmatpush.bf16.msra.mxu0 %v3750
        %5569 = vmatmul.bf16.gmra.mxu0 %v557
        %v5570 = vpop.f32.mrf.mxu0
        %v5571 = vadd.f32 %v1350, %v5570
        %v5572 = vpop.f32.mrf.mxu0
        %5573 = vdwg.mxu0
        %5574 = vmatpush.bf16.msra.mxu0 %v4470
        %5575 = vmatpush.bf16.msra.mxu0 %v4422
        %5576 = vmatpush.bf16.msra.mxu0 %v4374
        %5577 = vmatpush.bf16.msra.mxu0 %v4326
        %5578 = vmatpush.bf16.msra.mxu0 %v4278
        %5579 = vmatpush.bf16.msra.mxu0 %v4230
        %5580 = vmatpush.bf16.msra.mxu0 %v4182
        %5581 = vmatpush.bf16.msra.mxu0 %v4134
        %5582 = vmatmul.bf16.gmra.mxu0 %v558
        %v5583 = vpop.f32.mrf.mxu0
        %v5584 = vadd.f32 %v5571, %v5583
        %v5585 = vpop.f32.mrf.mxu0
        %5586 = vdwg.mxu0
        %5587 = vmatpush.bf16.msra.mxu0 %v4087
        %5588 = vmatpush.bf16.msra.mxu0 %v4039
        %5589 = vmatpush.bf16.msra.mxu0 %v3991
        %5590 = vmatpush.bf16.msra.mxu0 %v3943
        %5591 = vmatpush.bf16.msra.mxu0 %v3895
        %5592 = vmatpush.bf16.msra.mxu0 %v3847
        %5593 = vmatpush.bf16.msra.mxu0 %v3799
        %5594 = vmatpush.bf16.msra.mxu0 %v3751
        %5595 = vmatmul.bf16.gmra.mxu0 %v557
        %v5596 = vpop.f32.mrf.mxu0
        %v5597 = vadd.f32 %v1351, %v5596
        %v5598 = vpop.f32.mrf.mxu0
        %5599 = vdwg.mxu0
        %5600 = vmatpush.bf16.msra.mxu0 %v4471
        %5601 = vmatpush.bf16.msra.mxu0 %v4423
        %5602 = vmatpush.bf16.msra.mxu0 %v4375
        %5603 = vmatpush.bf16.msra.mxu0 %v4327
        %5604 = vmatpush.bf16.msra.mxu0 %v4279
        %5605 = vmatpush.bf16.msra.mxu0 %v4231
        %5606 = vmatpush.bf16.msra.mxu0 %v4183
        %5607 = vmatpush.bf16.msra.mxu0 %v4135
        %5608 = vmatmul.bf16.gmra.mxu0 %v558
        %v5609 = vpop.f32.mrf.mxu0
        %v5610 = vadd.f32 %v5597, %v5609
        %v5611 = vpop.f32.mrf.mxu0
        %5612 = vdwg.mxu0
        %5613 = vmatpush.bf16.msra.mxu0 %v4088
        %5614 = vmatpush.bf16.msra.mxu0 %v4040
        %5615 = vmatpush.bf16.msra.mxu0 %v3992
        %5616 = vmatpush.bf16.msra.mxu0 %v3944
        %5617 = vmatpush.bf16.msra.mxu0 %v3896
        %5618 = vmatpush.bf16.msra.mxu0 %v3848
        %5619 = vmatpush.bf16.msra.mxu0 %v3800
        %5620 = vmatpush.bf16.msra.mxu0 %v3752
        %5621 = vmatmul.bf16.gmra.mxu0 %v557
        %v5622 = vpop.f32.mrf.mxu0
        %v5623 = vadd.f32 %v1352, %v5622
        %v5624 = vpop.f32.mrf.mxu0
        %5625 = vdwg.mxu0
        %5626 = vmatpush.bf16.msra.mxu0 %v4472
        %5627 = vmatpush.bf16.msra.mxu0 %v4424
        %5628 = vmatpush.bf16.msra.mxu0 %v4376
        %5629 = vmatpush.bf16.msra.mxu0 %v4328
        %5630 = vmatpush.bf16.msra.mxu0 %v4280
        %5631 = vmatpush.bf16.msra.mxu0 %v4232
        %5632 = vmatpush.bf16.msra.mxu0 %v4184
        %5633 = vmatpush.bf16.msra.mxu0 %v4136
        %5634 = vmatmul.bf16.gmra.mxu0 %v558
        %v5635 = vpop.f32.mrf.mxu0
        %v5636 = vadd.f32 %v5623, %v5635
        %v5637 = vpop.f32.mrf.mxu0
        %5638 = vdwg.mxu0
        %5639 = vmatpush.bf16.msra.mxu0 %v4089
        %5640 = vmatpush.bf16.msra.mxu0 %v4041
        %5641 = vmatpush.bf16.msra.mxu0 %v3993
        %5642 = vmatpush.bf16.msra.mxu0 %v3945
        %5643 = vmatpush.bf16.msra.mxu0 %v3897
        %5644 = vmatpush.bf16.msra.mxu0 %v3849
        %5645 = vmatpush.bf16.msra.mxu0 %v3801
        %5646 = vmatpush.bf16.msra.mxu0 %v3753
        %5647 = vmatmul.bf16.gmra.mxu0 %v557
        %v5648 = vpop.f32.mrf.mxu0
        %v5649 = vadd.f32 %v1353, %v5648
        %v5650 = vpop.f32.mrf.mxu0
        %5651 = vdwg.mxu0
        %5652 = vmatpush.bf16.msra.mxu0 %v4473
        %5653 = vmatpush.bf16.msra.mxu0 %v4425
        %5654 = vmatpush.bf16.msra.mxu0 %v4377
        %5655 = vmatpush.bf16.msra.mxu0 %v4329
        %5656 = vmatpush.bf16.msra.mxu0 %v4281
        %5657 = vmatpush.bf16.msra.mxu0 %v4233
        %5658 = vmatpush.bf16.msra.mxu0 %v4185
        %5659 = vmatpush.bf16.msra.mxu0 %v4137
        %5660 = vmatmul.bf16.gmra.mxu0 %v558
        %v5661 = vpop.f32.mrf.mxu0
        %v5662 = vadd.f32 %v5649, %v5661
        %v5663 = vpop.f32.mrf.mxu0
        %5664 = vdwg.mxu0
        %5665 = vmatpush.bf16.msra.mxu0 %v4090
        %5666 = vmatpush.bf16.msra.mxu0 %v4042
        %5667 = vmatpush.bf16.msra.mxu0 %v3994
        %5668 = vmatpush.bf16.msra.mxu0 %v3946
        %5669 = vmatpush.bf16.msra.mxu0 %v3898
        %5670 = vmatpush.bf16.msra.mxu0 %v3850
        %5671 = vmatpush.bf16.msra.mxu0 %v3802
        %5672 = vmatpush.bf16.msra.mxu0 %v3754
        %5673 = vmatmul.bf16.gmra.mxu0 %v557
        %v5674 = vpop.f32.mrf.mxu0
        %v5675 = vadd.f32 %v1354, %v5674
        %v5676 = vpop.f32.mrf.mxu0
        %5677 = vdwg.mxu0
        %5678 = vmatpush.bf16.msra.mxu0 %v4474
        %5679 = vmatpush.bf16.msra.mxu0 %v4426
        %5680 = vmatpush.bf16.msra.mxu0 %v4378
        %5681 = vmatpush.bf16.msra.mxu0 %v4330
        %5682 = vmatpush.bf16.msra.mxu0 %v4282
        %5683 = vmatpush.bf16.msra.mxu0 %v4234
        %5684 = vmatpush.bf16.msra.mxu0 %v4186
        %5685 = vmatpush.bf16.msra.mxu0 %v4138
        %5686 = vmatmul.bf16.gmra.mxu0 %v558
        %v5687 = vpop.f32.mrf.mxu0
        %v5688 = vadd.f32 %v5675, %v5687
        %v5689 = vpop.f32.mrf.mxu0
        %5690 = vdwg.mxu0
        %5691 = vmatpush.bf16.msra.mxu0 %v4091
        %5692 = vmatpush.bf16.msra.mxu0 %v4043
        %5693 = vmatpush.bf16.msra.mxu0 %v3995
        %5694 = vmatpush.bf16.msra.mxu0 %v3947
        %5695 = vmatpush.bf16.msra.mxu0 %v3899
        %5696 = vmatpush.bf16.msra.mxu0 %v3851
        %5697 = vmatpush.bf16.msra.mxu0 %v3803
        %5698 = vmatpush.bf16.msra.mxu0 %v3755
        %5699 = vmatmul.bf16.gmra.mxu0 %v557
        %v5700 = vpop.f32.mrf.mxu0
        %v5701 = vadd.f32 %v1355, %v5700
        %v5702 = vpop.f32.mrf.mxu0
        %5703 = vdwg.mxu0
        %5704 = vmatpush.bf16.msra.mxu0 %v4475
        %5705 = vmatpush.bf16.msra.mxu0 %v4427
        %5706 = vmatpush.bf16.msra.mxu0 %v4379
        %5707 = vmatpush.bf16.msra.mxu0 %v4331
        %5708 = vmatpush.bf16.msra.mxu0 %v4283
        %5709 = vmatpush.bf16.msra.mxu0 %v4235
        %5710 = vmatpush.bf16.msra.mxu0 %v4187
        %5711 = vmatpush.bf16.msra.mxu0 %v4139
        %5712 = vmatmul.bf16.gmra.mxu0 %v558
        %v5713 = vpop.f32.mrf.mxu0
        %v5714 = vadd.f32 %v5701, %v5713
        %v5715 = vpop.f32.mrf.mxu0
        %5716 = vdwg.mxu0
        %5717 = vmatpush.bf16.msra.mxu0 %v4092
        %5718 = vmatpush.bf16.msra.mxu0 %v4044
        %5719 = vmatpush.bf16.msra.mxu0 %v3996
        %5720 = vmatpush.bf16.msra.mxu0 %v3948
        %5721 = vmatpush.bf16.msra.mxu0 %v3900
        %5722 = vmatpush.bf16.msra.mxu0 %v3852
        %5723 = vmatpush.bf16.msra.mxu0 %v3804
        %5724 = vmatpush.bf16.msra.mxu0 %v3756
        %5725 = vmatmul.bf16.gmra.mxu0 %v557
        %v5726 = vpop.f32.mrf.mxu0
        %v5727 = vadd.f32 %v1356, %v5726
        %v5728 = vpop.f32.mrf.mxu0
        %5729 = vdwg.mxu0
        %5730 = vmatpush.bf16.msra.mxu0 %v4476
        %5731 = vmatpush.bf16.msra.mxu0 %v4428
        %5732 = vmatpush.bf16.msra.mxu0 %v4380
        %5733 = vmatpush.bf16.msra.mxu0 %v4332
        %5734 = vmatpush.bf16.msra.mxu0 %v4284
        %5735 = vmatpush.bf16.msra.mxu0 %v4236
        %5736 = vmatpush.bf16.msra.mxu0 %v4188
        %5737 = vmatpush.bf16.msra.mxu0 %v4140
        %5738 = vmatmul.bf16.gmra.mxu0 %v558
        %v5739 = vpop.f32.mrf.mxu0
        %v5740 = vadd.f32 %v5727, %v5739
        %v5741 = vpop.f32.mrf.mxu0
        %5742 = vdwg.mxu0
        %5743 = vmatpush.bf16.msra.mxu0 %v4093
        %5744 = vmatpush.bf16.msra.mxu0 %v4045
        %5745 = vmatpush.bf16.msra.mxu0 %v3997
        %5746 = vmatpush.bf16.msra.mxu0 %v3949
        %5747 = vmatpush.bf16.msra.mxu0 %v3901
        %5748 = vmatpush.bf16.msra.mxu0 %v3853
        %5749 = vmatpush.bf16.msra.mxu0 %v3805
        %5750 = vmatpush.bf16.msra.mxu0 %v3757
        %5751 = vmatmul.bf16.gmra.mxu0 %v557
        %v5752 = vpop.f32.mrf.mxu0
        %v5753 = vadd.f32 %v1357, %v5752
        %v5754 = vpop.f32.mrf.mxu0
        %5755 = vdwg.mxu0
        %5756 = vmatpush.bf16.msra.mxu0 %v4477
        %5757 = vmatpush.bf16.msra.mxu0 %v4429
        %5758 = vmatpush.bf16.msra.mxu0 %v4381
        %5759 = vmatpush.bf16.msra.mxu0 %v4333
        %5760 = vmatpush.bf16.msra.mxu0 %v4285
        %5761 = vmatpush.bf16.msra.mxu0 %v4237
        %5762 = vmatpush.bf16.msra.mxu0 %v4189
        %5763 = vmatpush.bf16.msra.mxu0 %v4141
        %5764 = vmatmul.bf16.gmra.mxu0 %v558
        %v5765 = vpop.f32.mrf.mxu0
        %v5766 = vadd.f32 %v5753, %v5765
        %v5767 = vpop.f32.mrf.mxu0
        %5768 = vdwg.mxu0
        %5769 = vmatpush.bf16.msra.mxu0 %v4094
        %5770 = vmatpush.bf16.msra.mxu0 %v4046
        %5771 = vmatpush.bf16.msra.mxu0 %v3998
        %5772 = vmatpush.bf16.msra.mxu0 %v3950
        %5773 = vmatpush.bf16.msra.mxu0 %v3902
        %5774 = vmatpush.bf16.msra.mxu0 %v3854
        %5775 = vmatpush.bf16.msra.mxu0 %v3806
        %5776 = vmatpush.bf16.msra.mxu0 %v3758
        %5777 = vmatmul.bf16.gmra.mxu0 %v557
        %v5778 = vpop.f32.mrf.mxu0
        %v5779 = vadd.f32 %v1358, %v5778
        %v5780 = vpop.f32.mrf.mxu0
        %5781 = vdwg.mxu0
        %5782 = vmatpush.bf16.msra.mxu0 %v4478
        %5783 = vmatpush.bf16.msra.mxu0 %v4430
        %5784 = vmatpush.bf16.msra.mxu0 %v4382
        %5785 = vmatpush.bf16.msra.mxu0 %v4334
        %5786 = vmatpush.bf16.msra.mxu0 %v4286
        %5787 = vmatpush.bf16.msra.mxu0 %v4238
        %5788 = vmatpush.bf16.msra.mxu0 %v4190
        %5789 = vmatpush.bf16.msra.mxu0 %v4142
        %5790 = vmatmul.bf16.gmra.mxu0 %v558
        %v5791 = vpop.f32.mrf.mxu0
        %v5792 = vadd.f32 %v5779, %v5791
        %v5793 = vpop.f32.mrf.mxu0
        %5794 = vdwg.mxu0
        %5795 = vmatpush.bf16.msra.mxu0 %v4095
        %5796 = vmatpush.bf16.msra.mxu0 %v4047
        %5797 = vmatpush.bf16.msra.mxu0 %v3999
        %5798 = vmatpush.bf16.msra.mxu0 %v3951
        %5799 = vmatpush.bf16.msra.mxu0 %v3903
        %5800 = vmatpush.bf16.msra.mxu0 %v3855
        %5801 = vmatpush.bf16.msra.mxu0 %v3807
        %5802 = vmatpush.bf16.msra.mxu0 %v3759
        %5803 = vmatmul.bf16.gmra.mxu0 %v557
        %v5804 = vpop.f32.mrf.mxu0
        %v5805 = vadd.f32 %v1359, %v5804
        %v5806 = vpop.f32.mrf.mxu0
        %5807 = vdwg.mxu0
        %5808 = vmatpush.bf16.msra.mxu0 %v4479
        %5809 = vmatpush.bf16.msra.mxu0 %v4431
        %5810 = vmatpush.bf16.msra.mxu0 %v4383
        %5811 = vmatpush.bf16.msra.mxu0 %v4335
        %5812 = vmatpush.bf16.msra.mxu0 %v4287
        %5813 = vmatpush.bf16.msra.mxu0 %v4239
        %5814 = vmatpush.bf16.msra.mxu0 %v4191
        %5815 = vmatpush.bf16.msra.mxu0 %v4143
        %5816 = vmatmul.bf16.gmra.mxu0 %v558
        %v5817 = vpop.f32.mrf.mxu0
        %v5818 = vadd.f32 %v5805, %v5817
        %v5819 = vpop.f32.mrf.mxu0
        %5820 = vdwg.mxu0
        %5821 = vmatpush.bf16.msra.mxu0 %v4096
        %5822 = vmatpush.bf16.msra.mxu0 %v4048
        %5823 = vmatpush.bf16.msra.mxu0 %v4000
        %5824 = vmatpush.bf16.msra.mxu0 %v3952
        %5825 = vmatpush.bf16.msra.mxu0 %v3904
        %5826 = vmatpush.bf16.msra.mxu0 %v3856
        %5827 = vmatpush.bf16.msra.mxu0 %v3808
        %5828 = vmatpush.bf16.msra.mxu0 %v3760
        %5829 = vmatmul.bf16.gmra.mxu0 %v557
        %v5830 = vpop.f32.mrf.mxu0
        %v5831 = vadd.f32 %v1360, %v5830
        %v5832 = vpop.f32.mrf.mxu0
        %5833 = vdwg.mxu0
        %5834 = vmatpush.bf16.msra.mxu0 %v4480
        %5835 = vmatpush.bf16.msra.mxu0 %v4432
        %5836 = vmatpush.bf16.msra.mxu0 %v4384
        %5837 = vmatpush.bf16.msra.mxu0 %v4336
        %5838 = vmatpush.bf16.msra.mxu0 %v4288
        %5839 = vmatpush.bf16.msra.mxu0 %v4240
        %5840 = vmatpush.bf16.msra.mxu0 %v4192
        %5841 = vmatpush.bf16.msra.mxu0 %v4144
        %5842 = vmatmul.bf16.gmra.mxu0 %v558
        %v5843 = vpop.f32.mrf.mxu0
        %v5844 = vadd.f32 %v5831, %v5843
        %v5845 = vpop.f32.mrf.mxu0
        %5846 = vdwg.mxu0
        %5847 = vmatpush.bf16.msra.mxu0 %v4097
        %5848 = vmatpush.bf16.msra.mxu0 %v4049
        %5849 = vmatpush.bf16.msra.mxu0 %v4001
        %5850 = vmatpush.bf16.msra.mxu0 %v3953
        %5851 = vmatpush.bf16.msra.mxu0 %v3905
        %5852 = vmatpush.bf16.msra.mxu0 %v3857
        %5853 = vmatpush.bf16.msra.mxu0 %v3809
        %5854 = vmatpush.bf16.msra.mxu0 %v3761
        %5855 = vmatmul.bf16.gmra.mxu0 %v557
        %v5856 = vpop.f32.mrf.mxu0
        %v5857 = vadd.f32 %v1361, %v5856
        %v5858 = vpop.f32.mrf.mxu0
        %5859 = vdwg.mxu0
        %5860 = vmatpush.bf16.msra.mxu0 %v4481
        %5861 = vmatpush.bf16.msra.mxu0 %v4433
        %5862 = vmatpush.bf16.msra.mxu0 %v4385
        %5863 = vmatpush.bf16.msra.mxu0 %v4337
        %5864 = vmatpush.bf16.msra.mxu0 %v4289
        %5865 = vmatpush.bf16.msra.mxu0 %v4241
        %5866 = vmatpush.bf16.msra.mxu0 %v4193
        %5867 = vmatpush.bf16.msra.mxu0 %v4145
        %5868 = vmatmul.bf16.gmra.mxu0 %v558
        %v5869 = vpop.f32.mrf.mxu0
        %v5870 = vadd.f32 %v5857, %v5869
        %v5871 = vpop.f32.mrf.mxu0
        %5872 = vdwg.mxu0
        %5873 = vmatpush.bf16.msra.mxu0 %v4098
        %5874 = vmatpush.bf16.msra.mxu0 %v4050
        %5875 = vmatpush.bf16.msra.mxu0 %v4002
        %5876 = vmatpush.bf16.msra.mxu0 %v3954
        %5877 = vmatpush.bf16.msra.mxu0 %v3906
        %5878 = vmatpush.bf16.msra.mxu0 %v3858
        %5879 = vmatpush.bf16.msra.mxu0 %v3810
        %5880 = vmatpush.bf16.msra.mxu0 %v3762
        %5881 = vmatmul.bf16.gmra.mxu0 %v557
        %v5882 = vpop.f32.mrf.mxu0
        %v5883 = vadd.f32 %v1362, %v5882
        %v5884 = vpop.f32.mrf.mxu0
        %5885 = vdwg.mxu0
        %5886 = vmatpush.bf16.msra.mxu0 %v4482
        %5887 = vmatpush.bf16.msra.mxu0 %v4434
        %5888 = vmatpush.bf16.msra.mxu0 %v4386
        %5889 = vmatpush.bf16.msra.mxu0 %v4338
        %5890 = vmatpush.bf16.msra.mxu0 %v4290
        %5891 = vmatpush.bf16.msra.mxu0 %v4242
        %5892 = vmatpush.bf16.msra.mxu0 %v4194
        %5893 = vmatpush.bf16.msra.mxu0 %v4146
        %5894 = vmatmul.bf16.gmra.mxu0 %v558
        %v5895 = vpop.f32.mrf.mxu0
        %v5896 = vadd.f32 %v5883, %v5895
        %v5897 = vpop.f32.mrf.mxu0
        %5898 = vdwg.mxu0
        %5899 = vmatpush.bf16.msra.mxu0 %v4099
        %5900 = vmatpush.bf16.msra.mxu0 %v4051
        %5901 = vmatpush.bf16.msra.mxu0 %v4003
        %5902 = vmatpush.bf16.msra.mxu0 %v3955
        %5903 = vmatpush.bf16.msra.mxu0 %v3907
        %5904 = vmatpush.bf16.msra.mxu0 %v3859
        %5905 = vmatpush.bf16.msra.mxu0 %v3811
        %5906 = vmatpush.bf16.msra.mxu0 %v3763
        %5907 = vmatmul.bf16.gmra.mxu0 %v557
        %v5908 = vpop.f32.mrf.mxu0
        %v5909 = vadd.f32 %v1363, %v5908
        %v5910 = vpop.f32.mrf.mxu0
        %5911 = vdwg.mxu0
        %5912 = vmatpush.bf16.msra.mxu0 %v4483
        %5913 = vmatpush.bf16.msra.mxu0 %v4435
        %5914 = vmatpush.bf16.msra.mxu0 %v4387
        %5915 = vmatpush.bf16.msra.mxu0 %v4339
        %5916 = vmatpush.bf16.msra.mxu0 %v4291
        %5917 = vmatpush.bf16.msra.mxu0 %v4243
        %5918 = vmatpush.bf16.msra.mxu0 %v4195
        %5919 = vmatpush.bf16.msra.mxu0 %v4147
        %5920 = vmatmul.bf16.gmra.mxu0 %v558
        %v5921 = vpop.f32.mrf.mxu0
        %v5922 = vadd.f32 %v5909, %v5921
        %v5923 = vpop.f32.mrf.mxu0
        %5924 = vdwg.mxu0
        %5925 = vmatpush.bf16.msra.mxu0 %v4100
        %5926 = vmatpush.bf16.msra.mxu0 %v4052
        %5927 = vmatpush.bf16.msra.mxu0 %v4004
        %5928 = vmatpush.bf16.msra.mxu0 %v3956
        %5929 = vmatpush.bf16.msra.mxu0 %v3908
        %5930 = vmatpush.bf16.msra.mxu0 %v3860
        %5931 = vmatpush.bf16.msra.mxu0 %v3812
        %5932 = vmatpush.bf16.msra.mxu0 %v3764
        %5933 = vmatmul.bf16.gmra.mxu0 %v557
        %v5934 = vpop.f32.mrf.mxu0
        %v5935 = vadd.f32 %v1364, %v5934
        %v5936 = vpop.f32.mrf.mxu0
        %5937 = vdwg.mxu0
        %5938 = vmatpush.bf16.msra.mxu0 %v4484
        %5939 = vmatpush.bf16.msra.mxu0 %v4436
        %5940 = vmatpush.bf16.msra.mxu0 %v4388
        %5941 = vmatpush.bf16.msra.mxu0 %v4340
        %5942 = vmatpush.bf16.msra.mxu0 %v4292
        %5943 = vmatpush.bf16.msra.mxu0 %v4244
        %5944 = vmatpush.bf16.msra.mxu0 %v4196
        %5945 = vmatpush.bf16.msra.mxu0 %v4148
        %5946 = vmatmul.bf16.gmra.mxu0 %v558
        %v5947 = vpop.f32.mrf.mxu0
        %v5948 = vadd.f32 %v5935, %v5947
        %v5949 = vpop.f32.mrf.mxu0
        %5950 = vdwg.mxu0
        %5951 = vmatpush.bf16.msra.mxu0 %v4101
        %5952 = vmatpush.bf16.msra.mxu0 %v4053
        %5953 = vmatpush.bf16.msra.mxu0 %v4005
        %5954 = vmatpush.bf16.msra.mxu0 %v3957
        %5955 = vmatpush.bf16.msra.mxu0 %v3909
        %5956 = vmatpush.bf16.msra.mxu0 %v3861
        %5957 = vmatpush.bf16.msra.mxu0 %v3813
        %5958 = vmatpush.bf16.msra.mxu0 %v3765
        %5959 = vmatmul.bf16.gmra.mxu0 %v557
        %v5960 = vpop.f32.mrf.mxu0
        %v5961 = vadd.f32 %v1365, %v5960
        %v5962 = vpop.f32.mrf.mxu0
        %5963 = vdwg.mxu0
        %5964 = vmatpush.bf16.msra.mxu0 %v4485
        %5965 = vmatpush.bf16.msra.mxu0 %v4437
        %5966 = vmatpush.bf16.msra.mxu0 %v4389
        %5967 = vmatpush.bf16.msra.mxu0 %v4341
        %5968 = vmatpush.bf16.msra.mxu0 %v4293
        %5969 = vmatpush.bf16.msra.mxu0 %v4245
        %5970 = vmatpush.bf16.msra.mxu0 %v4197
        %5971 = vmatpush.bf16.msra.mxu0 %v4149
        %5972 = vmatmul.bf16.gmra.mxu0 %v558
        %v5973 = vpop.f32.mrf.mxu0
        %v5974 = vadd.f32 %v5961, %v5973
        %v5975 = vpop.f32.mrf.mxu0
        %5976 = vdwg.mxu0
        %5977 = vmatpush.bf16.msra.mxu0 %v4102
        %5978 = vmatpush.bf16.msra.mxu0 %v4054
        %5979 = vmatpush.bf16.msra.mxu0 %v4006
        %5980 = vmatpush.bf16.msra.mxu0 %v3958
        %5981 = vmatpush.bf16.msra.mxu0 %v3910
        %5982 = vmatpush.bf16.msra.mxu0 %v3862
        %5983 = vmatpush.bf16.msra.mxu0 %v3814
        %5984 = vmatpush.bf16.msra.mxu0 %v3766
        %5985 = vmatmul.bf16.gmra.mxu0 %v557
        %v5986 = vpop.f32.mrf.mxu0
        %v5987 = vadd.f32 %v1366, %v5986
        %v5988 = vpop.f32.mrf.mxu0
        %5989 = vdwg.mxu0
        %5990 = vmatpush.bf16.msra.mxu0 %v4486
        %5991 = vmatpush.bf16.msra.mxu0 %v4438
        %5992 = vmatpush.bf16.msra.mxu0 %v4390
        %5993 = vmatpush.bf16.msra.mxu0 %v4342
        %5994 = vmatpush.bf16.msra.mxu0 %v4294
        %5995 = vmatpush.bf16.msra.mxu0 %v4246
        %5996 = vmatpush.bf16.msra.mxu0 %v4198
        %5997 = vmatpush.bf16.msra.mxu0 %v4150
        %5998 = vmatmul.bf16.gmra.mxu0 %v558
        %v5999 = vpop.f32.mrf.mxu0
        %v6000 = vadd.f32 %v5987, %v5999
        %v6001 = vpop.f32.mrf.mxu0
        %6002 = vdwg.mxu0
        %6003 = vmatpush.bf16.msra.mxu0 %v4103
        %6004 = vmatpush.bf16.msra.mxu0 %v4055
        %6005 = vmatpush.bf16.msra.mxu0 %v4007
        %6006 = vmatpush.bf16.msra.mxu0 %v3959
        %6007 = vmatpush.bf16.msra.mxu0 %v3911
        %6008 = vmatpush.bf16.msra.mxu0 %v3863
        %6009 = vmatpush.bf16.msra.mxu0 %v3815
        %6010 = vmatpush.bf16.msra.mxu0 %v3767
        %6011 = vmatmul.bf16.gmra.mxu0 %v557
        %v6012 = vpop.f32.mrf.mxu0
        %v6013 = vadd.f32 %v1367, %v6012
        %v6014 = vpop.f32.mrf.mxu0
        %6015 = vdwg.mxu0
        %6016 = vmatpush.bf16.msra.mxu0 %v4487
        %6017 = vmatpush.bf16.msra.mxu0 %v4439
        %6018 = vmatpush.bf16.msra.mxu0 %v4391
        %6019 = vmatpush.bf16.msra.mxu0 %v4343
        %6020 = vmatpush.bf16.msra.mxu0 %v4295
        %6021 = vmatpush.bf16.msra.mxu0 %v4247
        %6022 = vmatpush.bf16.msra.mxu0 %v4199
        %6023 = vmatpush.bf16.msra.mxu0 %v4151
        %6024 = vmatmul.bf16.gmra.mxu0 %v558
        %v6025 = vpop.f32.mrf.mxu0
        %v6026 = vadd.f32 %v6013, %v6025
        %v6027 = vpop.f32.mrf.mxu0
        %6028 = vdwg.mxu0
        %6029 = vmatpush.bf16.msra.mxu0 %v4104
        %6030 = vmatpush.bf16.msra.mxu0 %v4056
        %6031 = vmatpush.bf16.msra.mxu0 %v4008
        %6032 = vmatpush.bf16.msra.mxu0 %v3960
        %6033 = vmatpush.bf16.msra.mxu0 %v3912
        %6034 = vmatpush.bf16.msra.mxu0 %v3864
        %6035 = vmatpush.bf16.msra.mxu0 %v3816
        %6036 = vmatpush.bf16.msra.mxu0 %v3768
        %6037 = vmatmul.bf16.gmra.mxu0 %v557
        %v6038 = vpop.f32.mrf.mxu0
        %v6039 = vadd.f32 %v1368, %v6038
        %v6040 = vpop.f32.mrf.mxu0
        %6041 = vdwg.mxu0
        %6042 = vmatpush.bf16.msra.mxu0 %v4488
        %6043 = vmatpush.bf16.msra.mxu0 %v4440
        %6044 = vmatpush.bf16.msra.mxu0 %v4392
        %6045 = vmatpush.bf16.msra.mxu0 %v4344
        %6046 = vmatpush.bf16.msra.mxu0 %v4296
        %6047 = vmatpush.bf16.msra.mxu0 %v4248
        %6048 = vmatpush.bf16.msra.mxu0 %v4200
        %6049 = vmatpush.bf16.msra.mxu0 %v4152
        %6050 = vmatmul.bf16.gmra.mxu0 %v558
        %v6051 = vpop.f32.mrf.mxu0
        %v6052 = vadd.f32 %v6039, %v6051
        %v6053 = vpop.f32.mrf.mxu0
        %6054 = vdwg.mxu0
        %6055 = vmatpush.bf16.msra.mxu0 %v4105
        %6056 = vmatpush.bf16.msra.mxu0 %v4057
        %6057 = vmatpush.bf16.msra.mxu0 %v4009
        %6058 = vmatpush.bf16.msra.mxu0 %v3961
        %6059 = vmatpush.bf16.msra.mxu0 %v3913
        %6060 = vmatpush.bf16.msra.mxu0 %v3865
        %6061 = vmatpush.bf16.msra.mxu0 %v3817
        %6062 = vmatpush.bf16.msra.mxu0 %v3769
        %6063 = vmatmul.bf16.gmra.mxu0 %v557
        %v6064 = vpop.f32.mrf.mxu0
        %v6065 = vadd.f32 %v1369, %v6064
        %v6066 = vpop.f32.mrf.mxu0
        %6067 = vdwg.mxu0
        %6068 = vmatpush.bf16.msra.mxu0 %v4489
        %6069 = vmatpush.bf16.msra.mxu0 %v4441
        %6070 = vmatpush.bf16.msra.mxu0 %v4393
        %6071 = vmatpush.bf16.msra.mxu0 %v4345
        %6072 = vmatpush.bf16.msra.mxu0 %v4297
        %6073 = vmatpush.bf16.msra.mxu0 %v4249
        %6074 = vmatpush.bf16.msra.mxu0 %v4201
        %6075 = vmatpush.bf16.msra.mxu0 %v4153
        %6076 = vmatmul.bf16.gmra.mxu0 %v558
        %v6077 = vpop.f32.mrf.mxu0
        %v6078 = vadd.f32 %v6065, %v6077
        %v6079 = vpop.f32.mrf.mxu0
        %6080 = vdwg.mxu0
        %6081 = vmatpush.bf16.msra.mxu0 %v4106
        %6082 = vmatpush.bf16.msra.mxu0 %v4058
        %6083 = vmatpush.bf16.msra.mxu0 %v4010
        %6084 = vmatpush.bf16.msra.mxu0 %v3962
        %6085 = vmatpush.bf16.msra.mxu0 %v3914
        %6086 = vmatpush.bf16.msra.mxu0 %v3866
        %6087 = vmatpush.bf16.msra.mxu0 %v3818
        %6088 = vmatpush.bf16.msra.mxu0 %v3770
        %6089 = vmatmul.bf16.gmra.mxu0 %v557
        %v6090 = vpop.f32.mrf.mxu0
        %v6091 = vadd.f32 %v1370, %v6090
        %v6092 = vpop.f32.mrf.mxu0
        %6093 = vdwg.mxu0
        %6094 = vmatpush.bf16.msra.mxu0 %v4490
        %6095 = vmatpush.bf16.msra.mxu0 %v4442
        %6096 = vmatpush.bf16.msra.mxu0 %v4394
        %6097 = vmatpush.bf16.msra.mxu0 %v4346
        %6098 = vmatpush.bf16.msra.mxu0 %v4298
        %6099 = vmatpush.bf16.msra.mxu0 %v4250
        %6100 = vmatpush.bf16.msra.mxu0 %v4202
        %6101 = vmatpush.bf16.msra.mxu0 %v4154
        %6102 = vmatmul.bf16.gmra.mxu0 %v558
        %v6103 = vpop.f32.mrf.mxu0
        %v6104 = vadd.f32 %v6091, %v6103
        %v6105 = vpop.f32.mrf.mxu0
        %6106 = vdwg.mxu0
        %6107 = vmatpush.bf16.msra.mxu0 %v4107
        %6108 = vmatpush.bf16.msra.mxu0 %v4059
        %6109 = vmatpush.bf16.msra.mxu0 %v4011
        %6110 = vmatpush.bf16.msra.mxu0 %v3963
        %6111 = vmatpush.bf16.msra.mxu0 %v3915
        %6112 = vmatpush.bf16.msra.mxu0 %v3867
        %6113 = vmatpush.bf16.msra.mxu0 %v3819
        %6114 = vmatpush.bf16.msra.mxu0 %v3771
        %6115 = vmatmul.bf16.gmra.mxu0 %v557
        %v6116 = vpop.f32.mrf.mxu0
        %v6117 = vadd.f32 %v1371, %v6116
        %v6118 = vpop.f32.mrf.mxu0
        %6119 = vdwg.mxu0
        %6120 = vmatpush.bf16.msra.mxu0 %v4491
        %6121 = vmatpush.bf16.msra.mxu0 %v4443
        %6122 = vmatpush.bf16.msra.mxu0 %v4395
        %6123 = vmatpush.bf16.msra.mxu0 %v4347
        %6124 = vmatpush.bf16.msra.mxu0 %v4299
        %6125 = vmatpush.bf16.msra.mxu0 %v4251
        %6126 = vmatpush.bf16.msra.mxu0 %v4203
        %6127 = vmatpush.bf16.msra.mxu0 %v4155
        %6128 = vmatmul.bf16.gmra.mxu0 %v558
        %v6129 = vpop.f32.mrf.mxu0
        %v6130 = vadd.f32 %v6117, %v6129
        %v6131 = vpop.f32.mrf.mxu0
        %6132 = vdwg.mxu0
        %6133 = vmatpush.bf16.msra.mxu0 %v4108
        %6134 = vmatpush.bf16.msra.mxu0 %v4060
        %6135 = vmatpush.bf16.msra.mxu0 %v4012
        %6136 = vmatpush.bf16.msra.mxu0 %v3964
        %6137 = vmatpush.bf16.msra.mxu0 %v3916
        %6138 = vmatpush.bf16.msra.mxu0 %v3868
        %6139 = vmatpush.bf16.msra.mxu0 %v3820
        %6140 = vmatpush.bf16.msra.mxu0 %v3772
        %6141 = vmatmul.bf16.gmra.mxu0 %v557
        %v6142 = vpop.f32.mrf.mxu0
        %v6143 = vadd.f32 %v1372, %v6142
        %v6144 = vpop.f32.mrf.mxu0
        %6145 = vdwg.mxu0
        %6146 = vmatpush.bf16.msra.mxu0 %v4492
        %6147 = vmatpush.bf16.msra.mxu0 %v4444
        %6148 = vmatpush.bf16.msra.mxu0 %v4396
        %6149 = vmatpush.bf16.msra.mxu0 %v4348
        %6150 = vmatpush.bf16.msra.mxu0 %v4300
        %6151 = vmatpush.bf16.msra.mxu0 %v4252
        %6152 = vmatpush.bf16.msra.mxu0 %v4204
        %6153 = vmatpush.bf16.msra.mxu0 %v4156
        %6154 = vmatmul.bf16.gmra.mxu0 %v558
        %v6155 = vpop.f32.mrf.mxu0
        %v6156 = vadd.f32 %v6143, %v6155
        %v6157 = vpop.f32.mrf.mxu0
        %6158 = vdwg.mxu0
        %6159 = vmatpush.bf16.msra.mxu0 %v4109
        %6160 = vmatpush.bf16.msra.mxu0 %v4061
        %6161 = vmatpush.bf16.msra.mxu0 %v4013
        %6162 = vmatpush.bf16.msra.mxu0 %v3965
        %6163 = vmatpush.bf16.msra.mxu0 %v3917
        %6164 = vmatpush.bf16.msra.mxu0 %v3869
        %6165 = vmatpush.bf16.msra.mxu0 %v3821
        %6166 = vmatpush.bf16.msra.mxu0 %v3773
        %6167 = vmatmul.bf16.gmra.mxu0 %v557
        %v6168 = vpop.f32.mrf.mxu0
        %v6169 = vadd.f32 %v1373, %v6168
        %v6170 = vpop.f32.mrf.mxu0
        %6171 = vdwg.mxu0
        %6172 = vmatpush.bf16.msra.mxu0 %v4493
        %6173 = vmatpush.bf16.msra.mxu0 %v4445
        %6174 = vmatpush.bf16.msra.mxu0 %v4397
        %6175 = vmatpush.bf16.msra.mxu0 %v4349
        %6176 = vmatpush.bf16.msra.mxu0 %v4301
        %6177 = vmatpush.bf16.msra.mxu0 %v4253
        %6178 = vmatpush.bf16.msra.mxu0 %v4205
        %6179 = vmatpush.bf16.msra.mxu0 %v4157
        %6180 = vmatmul.bf16.gmra.mxu0 %v558
        %v6181 = vpop.f32.mrf.mxu0
        %v6182 = vadd.f32 %v6169, %v6181
        %v6183 = vpop.f32.mrf.mxu0
        %6184 = vdwg.mxu0
        %6185 = vmatpush.bf16.msra.mxu0 %v4110
        %6186 = vmatpush.bf16.msra.mxu0 %v4062
        %6187 = vmatpush.bf16.msra.mxu0 %v4014
        %6188 = vmatpush.bf16.msra.mxu0 %v3966
        %6189 = vmatpush.bf16.msra.mxu0 %v3918
        %6190 = vmatpush.bf16.msra.mxu0 %v3870
        %6191 = vmatpush.bf16.msra.mxu0 %v3822
        %6192 = vmatpush.bf16.msra.mxu0 %v3774
        %6193 = vmatmul.bf16.gmra.mxu0 %v557
        %v6194 = vpop.f32.mrf.mxu0
        %v6195 = vadd.f32 %v1374, %v6194
        %v6196 = vpop.f32.mrf.mxu0
        %6197 = vdwg.mxu0
        %6198 = vmatpush.bf16.msra.mxu0 %v4494
        %6199 = vmatpush.bf16.msra.mxu0 %v4446
        %6200 = vmatpush.bf16.msra.mxu0 %v4398
        %6201 = vmatpush.bf16.msra.mxu0 %v4350
        %6202 = vmatpush.bf16.msra.mxu0 %v4302
        %6203 = vmatpush.bf16.msra.mxu0 %v4254
        %6204 = vmatpush.bf16.msra.mxu0 %v4206
        %6205 = vmatpush.bf16.msra.mxu0 %v4158
        %6206 = vmatmul.bf16.gmra.mxu0 %v558
        %v6207 = vpop.f32.mrf.mxu0
        %v6208 = vadd.f32 %v6195, %v6207
        %v6209 = vpop.f32.mrf.mxu0
        %6210 = vdwg.mxu0
        %6211 = vmatpush.bf16.msra.mxu0 %v4111
        %6212 = vmatpush.bf16.msra.mxu0 %v4063
        %6213 = vmatpush.bf16.msra.mxu0 %v4015
        %6214 = vmatpush.bf16.msra.mxu0 %v3967
        %6215 = vmatpush.bf16.msra.mxu0 %v3919
        %6216 = vmatpush.bf16.msra.mxu0 %v3871
        %6217 = vmatpush.bf16.msra.mxu0 %v3823
        %6218 = vmatpush.bf16.msra.mxu0 %v3775
        %6219 = vmatmul.bf16.gmra.mxu0 %v557
        %v6220 = vpop.f32.mrf.mxu0
        %v6221 = vadd.f32 %v1375, %v6220
        %v6222 = vpop.f32.mrf.mxu0
        %6223 = vdwg.mxu0
        %6224 = vmatpush.bf16.msra.mxu0 %v4495
        %6225 = vmatpush.bf16.msra.mxu0 %v4447
        %6226 = vmatpush.bf16.msra.mxu0 %v4399
        %6227 = vmatpush.bf16.msra.mxu0 %v4351
        %6228 = vmatpush.bf16.msra.mxu0 %v4303
        %6229 = vmatpush.bf16.msra.mxu0 %v4255
        %6230 = vmatpush.bf16.msra.mxu0 %v4207
        %6231 = vmatpush.bf16.msra.mxu0 %v4159
        %6232 = vmatmul.bf16.gmra.mxu0 %v558
        %v6233 = vpop.f32.mrf.mxu0
        %v6234 = vadd.f32 %v6221, %v6233
        %v6235 = vpop.f32.mrf.mxu0
        %6236 = vdwg.mxu0
        %6237 = vmatpush.bf16.msra.mxu0 %v4112
        %6238 = vmatpush.bf16.msra.mxu0 %v4064
        %6239 = vmatpush.bf16.msra.mxu0 %v4016
        %6240 = vmatpush.bf16.msra.mxu0 %v3968
        %6241 = vmatpush.bf16.msra.mxu0 %v3920
        %6242 = vmatpush.bf16.msra.mxu0 %v3872
        %6243 = vmatpush.bf16.msra.mxu0 %v3824
        %6244 = vmatpush.bf16.msra.mxu0 %v3776
        %6245 = vmatmul.bf16.gmra.mxu0 %v557
        %v6246 = vpop.f32.mrf.mxu0
        %v6247 = vadd.f32 %v1376, %v6246
        %v6248 = vpop.f32.mrf.mxu0
        %6249 = vdwg.mxu0
        %6250 = vmatpush.bf16.msra.mxu0 %v4496
        %6251 = vmatpush.bf16.msra.mxu0 %v4448
        %6252 = vmatpush.bf16.msra.mxu0 %v4400
        %6253 = vmatpush.bf16.msra.mxu0 %v4352
        %6254 = vmatpush.bf16.msra.mxu0 %v4304
        %6255 = vmatpush.bf16.msra.mxu0 %v4256
        %6256 = vmatpush.bf16.msra.mxu0 %v4208
        %6257 = vmatpush.bf16.msra.mxu0 %v4160
        %6258 = vmatmul.bf16.gmra.mxu0 %v558
        %v6259 = vpop.f32.mrf.mxu0
        %v6260 = vadd.f32 %v6247, %v6259
        %v6261 = vpop.f32.mrf.mxu0
        %6262 = vdwg.mxu0
        %6263 = vmatpush.bf16.msra.mxu0 %v4113
        %6264 = vmatpush.bf16.msra.mxu0 %v4065
        %6265 = vmatpush.bf16.msra.mxu0 %v4017
        %6266 = vmatpush.bf16.msra.mxu0 %v3969
        %6267 = vmatpush.bf16.msra.mxu0 %v3921
        %6268 = vmatpush.bf16.msra.mxu0 %v3873
        %6269 = vmatpush.bf16.msra.mxu0 %v3825
        %6270 = vmatpush.bf16.msra.mxu0 %v3777
        %6271 = vmatmul.bf16.gmra.mxu0 %v557
        %v6272 = vpop.f32.mrf.mxu0
        %v6273 = vadd.f32 %v1377, %v6272
        %v6274 = vpop.f32.mrf.mxu0
        %6275 = vdwg.mxu0
        %6276 = vmatpush.bf16.msra.mxu0 %v4497
        %6277 = vmatpush.bf16.msra.mxu0 %v4449
        %6278 = vmatpush.bf16.msra.mxu0 %v4401
        %6279 = vmatpush.bf16.msra.mxu0 %v4353
        %6280 = vmatpush.bf16.msra.mxu0 %v4305
        %6281 = vmatpush.bf16.msra.mxu0 %v4257
        %6282 = vmatpush.bf16.msra.mxu0 %v4209
        %6283 = vmatpush.bf16.msra.mxu0 %v4161
        %6284 = vmatmul.bf16.gmra.mxu0 %v558
        %v6285 = vpop.f32.mrf.mxu0
        %v6286 = vadd.f32 %v6273, %v6285
        %v6287 = vpop.f32.mrf.mxu0
        %6288 = vdwg.mxu0
        %6289 = vmatpush.bf16.msra.mxu0 %v4114
        %6290 = vmatpush.bf16.msra.mxu0 %v4066
        %6291 = vmatpush.bf16.msra.mxu0 %v4018
        %6292 = vmatpush.bf16.msra.mxu0 %v3970
        %6293 = vmatpush.bf16.msra.mxu0 %v3922
        %6294 = vmatpush.bf16.msra.mxu0 %v3874
        %6295 = vmatpush.bf16.msra.mxu0 %v3826
        %6296 = vmatpush.bf16.msra.mxu0 %v3778
        %6297 = vmatmul.bf16.gmra.mxu0 %v557
        %v6298 = vpop.f32.mrf.mxu0
        %v6299 = vadd.f32 %v1378, %v6298
        %v6300 = vpop.f32.mrf.mxu0
        %6301 = vdwg.mxu0
        %6302 = vmatpush.bf16.msra.mxu0 %v4498
        %6303 = vmatpush.bf16.msra.mxu0 %v4450
        %6304 = vmatpush.bf16.msra.mxu0 %v4402
        %6305 = vmatpush.bf16.msra.mxu0 %v4354
        %6306 = vmatpush.bf16.msra.mxu0 %v4306
        %6307 = vmatpush.bf16.msra.mxu0 %v4258
        %6308 = vmatpush.bf16.msra.mxu0 %v4210
        %6309 = vmatpush.bf16.msra.mxu0 %v4162
        %6310 = vmatmul.bf16.gmra.mxu0 %v558
        %v6311 = vpop.f32.mrf.mxu0
        %v6312 = vadd.f32 %v6299, %v6311
        %v6313 = vpop.f32.mrf.mxu0
        %6314 = vdwg.mxu0
        %6315 = vmatpush.bf16.msra.mxu0 %v4115
        %6316 = vmatpush.bf16.msra.mxu0 %v4067
        %6317 = vmatpush.bf16.msra.mxu0 %v4019
        %6318 = vmatpush.bf16.msra.mxu0 %v3971
        %6319 = vmatpush.bf16.msra.mxu0 %v3923
        %6320 = vmatpush.bf16.msra.mxu0 %v3875
        %6321 = vmatpush.bf16.msra.mxu0 %v3827
        %6322 = vmatpush.bf16.msra.mxu0 %v3779
        %6323 = vmatmul.bf16.gmra.mxu0 %v557
        %v6324 = vpop.f32.mrf.mxu0
        %v6325 = vadd.f32 %v1379, %v6324
        %v6326 = vpop.f32.mrf.mxu0
        %6327 = vdwg.mxu0
        %6328 = vmatpush.bf16.msra.mxu0 %v4499
        %6329 = vmatpush.bf16.msra.mxu0 %v4451
        %6330 = vmatpush.bf16.msra.mxu0 %v4403
        %6331 = vmatpush.bf16.msra.mxu0 %v4355
        %6332 = vmatpush.bf16.msra.mxu0 %v4307
        %6333 = vmatpush.bf16.msra.mxu0 %v4259
        %6334 = vmatpush.bf16.msra.mxu0 %v4211
        %6335 = vmatpush.bf16.msra.mxu0 %v4163
        %6336 = vmatmul.bf16.gmra.mxu0 %v558
        %v6337 = vpop.f32.mrf.mxu0
        %v6338 = vadd.f32 %v6325, %v6337
        %v6339 = vpop.f32.mrf.mxu0
        %6340 = vdwg.mxu0
        %6341 = vmatpush.bf16.msra.mxu0 %v4116
        %6342 = vmatpush.bf16.msra.mxu0 %v4068
        %6343 = vmatpush.bf16.msra.mxu0 %v4020
        %6344 = vmatpush.bf16.msra.mxu0 %v3972
        %6345 = vmatpush.bf16.msra.mxu0 %v3924
        %6346 = vmatpush.bf16.msra.mxu0 %v3876
        %6347 = vmatpush.bf16.msra.mxu0 %v3828
        %6348 = vmatpush.bf16.msra.mxu0 %v3780
        %6349 = vmatmul.bf16.gmra.mxu0 %v557
        %v6350 = vpop.f32.mrf.mxu0
        %v6351 = vadd.f32 %v1380, %v6350
        %v6352 = vpop.f32.mrf.mxu0
        %6353 = vdwg.mxu0
        %6354 = vmatpush.bf16.msra.mxu0 %v4500
        %6355 = vmatpush.bf16.msra.mxu0 %v4452
        %6356 = vmatpush.bf16.msra.mxu0 %v4404
        %6357 = vmatpush.bf16.msra.mxu0 %v4356
        %6358 = vmatpush.bf16.msra.mxu0 %v4308
        %6359 = vmatpush.bf16.msra.mxu0 %v4260
        %6360 = vmatpush.bf16.msra.mxu0 %v4212
        %6361 = vmatpush.bf16.msra.mxu0 %v4164
        %6362 = vmatmul.bf16.gmra.mxu0 %v558
        %v6363 = vpop.f32.mrf.mxu0
        %v6364 = vadd.f32 %v6351, %v6363
        %v6365 = vpop.f32.mrf.mxu0
        %6366 = vdwg.mxu0
        %6367 = vmatpush.bf16.msra.mxu0 %v4117
        %6368 = vmatpush.bf16.msra.mxu0 %v4069
        %6369 = vmatpush.bf16.msra.mxu0 %v4021
        %6370 = vmatpush.bf16.msra.mxu0 %v3973
        %6371 = vmatpush.bf16.msra.mxu0 %v3925
        %6372 = vmatpush.bf16.msra.mxu0 %v3877
        %6373 = vmatpush.bf16.msra.mxu0 %v3829
        %6374 = vmatpush.bf16.msra.mxu0 %v3781
        %6375 = vmatmul.bf16.gmra.mxu0 %v557
        %v6376 = vpop.f32.mrf.mxu0
        %v6377 = vadd.f32 %v1381, %v6376
        %v6378 = vpop.f32.mrf.mxu0
        %6379 = vdwg.mxu0
        %6380 = vmatpush.bf16.msra.mxu0 %v4501
        %6381 = vmatpush.bf16.msra.mxu0 %v4453
        %6382 = vmatpush.bf16.msra.mxu0 %v4405
        %6383 = vmatpush.bf16.msra.mxu0 %v4357
        %6384 = vmatpush.bf16.msra.mxu0 %v4309
        %6385 = vmatpush.bf16.msra.mxu0 %v4261
        %6386 = vmatpush.bf16.msra.mxu0 %v4213
        %6387 = vmatpush.bf16.msra.mxu0 %v4165
        %6388 = vmatmul.bf16.gmra.mxu0 %v558
        %v6389 = vpop.f32.mrf.mxu0
        %v6390 = vadd.f32 %v6377, %v6389
        %v6391 = vpop.f32.mrf.mxu0
        %6392 = vdwg.mxu0
        %6393 = vmatpush.bf16.msra.mxu0 %v4118
        %6394 = vmatpush.bf16.msra.mxu0 %v4070
        %6395 = vmatpush.bf16.msra.mxu0 %v4022
        %6396 = vmatpush.bf16.msra.mxu0 %v3974
        %6397 = vmatpush.bf16.msra.mxu0 %v3926
        %6398 = vmatpush.bf16.msra.mxu0 %v3878
        %6399 = vmatpush.bf16.msra.mxu0 %v3830
        %6400 = vmatpush.bf16.msra.mxu0 %v3782
        %6401 = vmatmul.bf16.gmra.mxu0 %v557
        %v6402 = vpop.f32.mrf.mxu0
        %v6403 = vadd.f32 %v1382, %v6402
        %v6404 = vpop.f32.mrf.mxu0
        %6405 = vdwg.mxu0
        %6406 = vmatpush.bf16.msra.mxu0 %v4502
        %6407 = vmatpush.bf16.msra.mxu0 %v4454
        %6408 = vmatpush.bf16.msra.mxu0 %v4406
        %6409 = vmatpush.bf16.msra.mxu0 %v4358
        %6410 = vmatpush.bf16.msra.mxu0 %v4310
        %6411 = vmatpush.bf16.msra.mxu0 %v4262
        %6412 = vmatpush.bf16.msra.mxu0 %v4214
        %6413 = vmatpush.bf16.msra.mxu0 %v4166
        %6414 = vmatmul.bf16.gmra.mxu0 %v558
        %v6415 = vpop.f32.mrf.mxu0
        %v6416 = vadd.f32 %v6403, %v6415
        %v6417 = vpop.f32.mrf.mxu0
        %6418 = vdwg.mxu0
        %6419 = vmatpush.bf16.msra.mxu0 %v4119
        %6420 = vmatpush.bf16.msra.mxu0 %v4071
        %6421 = vmatpush.bf16.msra.mxu0 %v4023
        %6422 = vmatpush.bf16.msra.mxu0 %v3975
        %6423 = vmatpush.bf16.msra.mxu0 %v3927
        %6424 = vmatpush.bf16.msra.mxu0 %v3879
        %6425 = vmatpush.bf16.msra.mxu0 %v3831
        %6426 = vmatpush.bf16.msra.mxu0 %v3783
        %6427 = vmatmul.bf16.gmra.mxu0 %v557
        %v6428 = vpop.f32.mrf.mxu0
        %v6429 = vadd.f32 %v1383, %v6428
        %v6430 = vpop.f32.mrf.mxu0
        %6431 = vdwg.mxu0
        %6432 = vmatpush.bf16.msra.mxu0 %v4503
        %6433 = vmatpush.bf16.msra.mxu0 %v4455
        %6434 = vmatpush.bf16.msra.mxu0 %v4407
        %6435 = vmatpush.bf16.msra.mxu0 %v4359
        %6436 = vmatpush.bf16.msra.mxu0 %v4311
        %6437 = vmatpush.bf16.msra.mxu0 %v4263
        %6438 = vmatpush.bf16.msra.mxu0 %v4215
        %6439 = vmatpush.bf16.msra.mxu0 %v4167
        %6440 = vmatmul.bf16.gmra.mxu0 %v558
        %v6441 = vpop.f32.mrf.mxu0
        %v6442 = vadd.f32 %v6429, %v6441
        %v6443 = vpop.f32.mrf.mxu0
        %6444 = vdwg.mxu0
        %6445 = vmatpush.bf16.msra.mxu0 %v4120
        %6446 = vmatpush.bf16.msra.mxu0 %v4072
        %6447 = vmatpush.bf16.msra.mxu0 %v4024
        %6448 = vmatpush.bf16.msra.mxu0 %v3976
        %6449 = vmatpush.bf16.msra.mxu0 %v3928
        %6450 = vmatpush.bf16.msra.mxu0 %v3880
        %6451 = vmatpush.bf16.msra.mxu0 %v3832
        %6452 = vmatpush.bf16.msra.mxu0 %v3784
        %6453 = vmatmul.bf16.gmra.mxu0 %v557
        %v6454 = vpop.f32.mrf.mxu0
        %v6455 = vadd.f32 %v1384, %v6454
        %v6456 = vpop.f32.mrf.mxu0
        %6457 = vdwg.mxu0
        %6458 = vmatpush.bf16.msra.mxu0 %v4504
        %6459 = vmatpush.bf16.msra.mxu0 %v4456
        %6460 = vmatpush.bf16.msra.mxu0 %v4408
        %6461 = vmatpush.bf16.msra.mxu0 %v4360
        %6462 = vmatpush.bf16.msra.mxu0 %v4312
        %6463 = vmatpush.bf16.msra.mxu0 %v4264
        %6464 = vmatpush.bf16.msra.mxu0 %v4216
        %6465 = vmatpush.bf16.msra.mxu0 %v4168
        %6466 = vmatmul.bf16.gmra.mxu0 %v558
        %v6467 = vpop.f32.mrf.mxu0
        %v6468 = vadd.f32 %v6455, %v6467
        %v6469 = vpop.f32.mrf.mxu0
        %6470 = vdwg.mxu0
        %6471 = vmatpush.bf16.msra.mxu0 %v4121
        %6472 = vmatpush.bf16.msra.mxu0 %v4073
        %6473 = vmatpush.bf16.msra.mxu0 %v4025
        %6474 = vmatpush.bf16.msra.mxu0 %v3977
        %6475 = vmatpush.bf16.msra.mxu0 %v3929
        %6476 = vmatpush.bf16.msra.mxu0 %v3881
        %6477 = vmatpush.bf16.msra.mxu0 %v3833
        %6478 = vmatpush.bf16.msra.mxu0 %v3785
        %6479 = vmatmul.bf16.gmra.mxu0 %v557
        %v6480 = vpop.f32.mrf.mxu0
        %v6481 = vadd.f32 %v1385, %v6480
        %v6482 = vpop.f32.mrf.mxu0
        %6483 = vdwg.mxu0
        %6484 = vmatpush.bf16.msra.mxu0 %v4505
        %6485 = vmatpush.bf16.msra.mxu0 %v4457
        %6486 = vmatpush.bf16.msra.mxu0 %v4409
        %6487 = vmatpush.bf16.msra.mxu0 %v4361
        %6488 = vmatpush.bf16.msra.mxu0 %v4313
        %6489 = vmatpush.bf16.msra.mxu0 %v4265
        %6490 = vmatpush.bf16.msra.mxu0 %v4217
        %6491 = vmatpush.bf16.msra.mxu0 %v4169
        %6492 = vmatmul.bf16.gmra.mxu0 %v558
        %v6493 = vpop.f32.mrf.mxu0
        %v6494 = vadd.f32 %v6481, %v6493
        %v6495 = vpop.f32.mrf.mxu0
        %6496 = vdwg.mxu0
        %6497 = vmatpush.bf16.msra.mxu0 %v4122
        %6498 = vmatpush.bf16.msra.mxu0 %v4074
        %6499 = vmatpush.bf16.msra.mxu0 %v4026
        %6500 = vmatpush.bf16.msra.mxu0 %v3978
        %6501 = vmatpush.bf16.msra.mxu0 %v3930
        %6502 = vmatpush.bf16.msra.mxu0 %v3882
        %6503 = vmatpush.bf16.msra.mxu0 %v3834
        %6504 = vmatpush.bf16.msra.mxu0 %v3786
        %6505 = vmatmul.bf16.gmra.mxu0 %v557
        %v6506 = vpop.f32.mrf.mxu0
        %v6507 = vadd.f32 %v1386, %v6506
        %v6508 = vpop.f32.mrf.mxu0
        %6509 = vdwg.mxu0
        %6510 = vmatpush.bf16.msra.mxu0 %v4506
        %6511 = vmatpush.bf16.msra.mxu0 %v4458
        %6512 = vmatpush.bf16.msra.mxu0 %v4410
        %6513 = vmatpush.bf16.msra.mxu0 %v4362
        %6514 = vmatpush.bf16.msra.mxu0 %v4314
        %6515 = vmatpush.bf16.msra.mxu0 %v4266
        %6516 = vmatpush.bf16.msra.mxu0 %v4218
        %6517 = vmatpush.bf16.msra.mxu0 %v4170
        %6518 = vmatmul.bf16.gmra.mxu0 %v558
        %v6519 = vpop.f32.mrf.mxu0
        %v6520 = vadd.f32 %v6507, %v6519
        %v6521 = vpop.f32.mrf.mxu0
        %6522 = vdwg.mxu0
        %v6523 = vtanh.pop %v5298
        %v6524 = vtanh.pop %v5324
        %v6525 = vtanh.pop %v5350
        %v6526 = vtanh.pop %v5376
        %v6527 = vtanh.pop %v5402
        %v6528 = vtanh.pop %v5428
        %v6529 = vtanh.pop %v5454
        %v6530 = vtanh.pop %v5480
        %v6531 = vtanh.pop %v5506
        %v6532 = vtanh.pop %v5532
        %v6533 = vtanh.pop %v5558
        %v6534 = vtanh.pop %v5584
        %v6535 = vtanh.pop %v5610
        %v6536 = vtanh.pop %v5636
        %v6537 = vtanh.pop %v5662
        %v6538 = vtanh.pop %v5688
        %v6539 = vtanh.pop %v5714
        %v6540 = vtanh.pop %v5740
        %v6541 = vtanh.pop %v5766
        %v6542 = vtanh.pop %v5792
        %v6543 = vtanh.pop %v5818
        %v6544 = vtanh.pop %v5844
        %v6545 = vtanh.pop %v5870
        %v6546 = vtanh.pop %v5896
        %v6547 = vtanh.pop %v5922
        %v6548 = vtanh.pop %v5948
        %v6549 = vtanh.pop %v5974
        %v6550 = vtanh.pop %v6000
        %v6551 = vtanh.pop %v6026
        %v6552 = vtanh.pop %v6052
        %v6553 = vtanh.pop %v6078
        %v6554 = vtanh.pop %v6104
        %v6555 = vtanh.pop %v6130
        %v6556 = vtanh.pop %v6156
        %v6557 = vtanh.pop %v6182
        %v6558 = vtanh.pop %v6208
        %v6559 = vtanh.pop %v6234
        %v6560 = vtanh.pop %v6260
        %v6561 = vtanh.pop %v6286
        %v6562 = vtanh.pop %v6312
        %v6563 = vtanh.pop %v6338
        %v6564 = vtanh.pop %v6364
        %v6565 = vtanh.pop %v6390
        %v6566 = vtanh.pop %v6416
        %v6567 = vtanh.pop %v6442
        %v6568 = vtanh.pop %v6468
        %v6569 = vtanh.pop %v6494
        %v6570 = vtanh.pop %v6520
        %6571 = vst [vmem:[%s432] sm:$0xff] %v6523
        %6572 = vst [vmem:[%s432 + $0x8] sm:$0xff] %v6524
        %6573 = vst [vmem:[%s432 + $0x10] sm:$0xff] %v6525
        %6574 = vst [vmem:[%s432 + $0x18] sm:$0xff] %v6526
        %6575 = vst [vmem:[%s432 + $0x20] sm:$0xff] %v6527
        %6576 = vst [vmem:[%s432 + $0x28] sm:$0xff] %v6528
        %6577 = vst [vmem:[%s432 + $0x30] sm:$0xff] %v6529
        %6578 = vst [vmem:[%s432 + $0x38] sm:$0xff] %v6530
        %6579 = vst [vmem:[%s432 + $0x40] sm:$0xff] %v6531
        %6580 = vst [vmem:[%s432 + $0x48] sm:$0xff] %v6532
        %6581 = vst [vmem:[%s432 + $0x50] sm:$0xff] %v6533
        %6582 = vst [vmem:[%s432 + $0x58] sm:$0xff] %v6534
        %6583 = vst [vmem:[%s432 + $0x60] sm:$0xff] %v6535
        %6584 = vst [vmem:[%s432 + $0x68] sm:$0xff] %v6536
        %6585 = vst [vmem:[%s432 + $0x70] sm:$0xff] %v6537
        %6586 = vst [vmem:[%s432 + $0x78] sm:$0xff] %v6538
        %6587 = vst [vmem:[%s432 + $0x80] sm:$0xff] %v6539
        %6588 = vst [vmem:[%s432 + $0x88] sm:$0xff] %v6540
        %6589 = vst [vmem:[%s432 + $0x90] sm:$0xff] %v6541
        %6590 = vst [vmem:[%s432 + $0x98] sm:$0xff] %v6542
        %6591 = vst [vmem:[%s432 + $0xa0] sm:$0xff] %v6543
        %6592 = vst [vmem:[%s432 + $0xa8] sm:$0xff] %v6544
        %6593 = vst [vmem:[%s432 + $0xb0] sm:$0xff] %v6545
        %6594 = vst [vmem:[%s432 + $0xb8] sm:$0xff] %v6546
        %6595 = vst [vmem:[%s432 + $0xc0] sm:$0xff] %v6547
        %6596 = vst [vmem:[%s432 + $0xc8] sm:$0xff] %v6548
        %6597 = vst [vmem:[%s432 + $0xd0] sm:$0xff] %v6549
        %6598 = vst [vmem:[%s432 + $0xd8] sm:$0xff] %v6550
        %6599 = vst [vmem:[%s432 + $0xe0] sm:$0xff] %v6551
        %6600 = vst [vmem:[%s432 + $0xe8] sm:$0xff] %v6552
        %6601 = vst [vmem:[%s432 + $0xf0] sm:$0xff] %v6553
        %6602 = vst [vmem:[%s432 + $0xf8] sm:$0xff] %v6554
        %6603 = vst [vmem:[%s432 + $0x100] sm:$0xff] %v6555
        %6604 = vst [vmem:[%s432 + $0x108] sm:$0xff] %v6556
        %6605 = vst [vmem:[%s432 + $0x110] sm:$0xff] %v6557
        %6606 = vst [vmem:[%s432 + $0x118] sm:$0xff] %v6558
        %6607 = vst [vmem:[%s432 + $0x120] sm:$0xff] %v6559
        %6608 = vst [vmem:[%s432 + $0x128] sm:$0xff] %v6560
        %6609 = vst [vmem:[%s432 + $0x130] sm:$0xff] %v6561
        %6610 = vst [vmem:[%s432 + $0x138] sm:$0xff] %v6562
        %6611 = vst [vmem:[%s432 + $0x140] sm:$0xff] %v6563
        %6612 = vst [vmem:[%s432 + $0x148] sm:$0xff] %v6564
        %6613 = vst [vmem:[%s432 + $0x150] sm:$0xff] %v6565
        %6614 = vst [vmem:[%s432 + $0x158] sm:$0xff] %v6566
        %6615 = vst [vmem:[%s432 + $0x160] sm:$0xff] %v6567
        %6616 = vst [vmem:[%s432 + $0x168] sm:$0xff] %v6568
        %6617 = vst [vmem:[%s432 + $0x170] sm:$0xff] %v6569
        %6618 = vst [vmem:[%s432 + $0x178] sm:$0xff] %v6570
        %s6619 = sand.u32 %s211, 1
        %s6620 = scalar_lea.sflag [#allocation4], %s6619
        %s6621 = sand.u32 %s211, 1
        %s6622 = smul.addr %s6621, 384
        %s6623 = scalar_lea.vmem [#allocation14], %s6622
        // Predicated region
        $region77: #{tpu_custom_call.1} parent=47 // pred_check
          %p6624 = pneg %p221
        $region78: #{tpu_custom_call.1} parent=47 // pred_check_branch
          %6626 = sbr.rel (%p6624) target = $region80
        $region79: #{tpu_custom_call.1} parent=47 // pred_region
          %s6627 = smul.u32 48, %s31
          %6629 = vsyncadd %s6620, 0
          %s6630 = smul.addr %s32, 96
          %s6631 = sadd.s32 %s6627, %s6630
          %s6632 = smul.addr %s6631, 8
          %s6633 = scalar_lea.hbm %s7, %s6632
          %s6635 = sshll.u32 %s6623, 4
          %s6636 = int_to_ptr.vmem [resolvable:$true] %s6635
          %s6637 = sshll.u32 %s6633, 4
          %s6638 = int_to_ptr.hbm [resolvable:$true] %s6637
          %6640 = dma.vmem_to_hbm [thread:$0]  %s6636, 6144, %s6638, %s6620
        $region80: #{tpu_custom_call.1} parent=47 // pred_fallthru
          _
      $region48: #{tpu_custom_call.1} parent=5 // pred_fallthru
        _
      %p6641 = scmp.le.s32.totalorder 2, %s22
      // Predicated region
      $region81: #{tpu_custom_call.1} parent=5 // pred_check
        %p6642 = pneg %p6641
      $region82: #{tpu_custom_call.1} parent=5 // pred_check_branch
        %6644 = sbr.rel (%p6642) target = $region84
      $region83: #{tpu_custom_call.1} parent=5 // pred_region
        %s6645 = ssub.s32 %s22, 2
        // Predicated region
        $region85: #{tpu_custom_call.1} parent=83 // pred_check
          %p6646 = pneg %p227
        $region86: #{tpu_custom_call.1} parent=83 // pred_check_branch
          %6648 = sbr.rel (%p6646) target = $region88
        $region87: #{tpu_custom_call.1} parent=83 // pred_region
          %s6649 = sand.u32 %s212, 1
          %s6650 = scalar_lea.sflag [#allocation4], %s6649
          %s6651 = sand.u32 %s212, 1
          %s6652 = smul.addr %s6651, 384
          %s6653 = scalar_lea.vmem [#allocation14], %s6652
          %6655 = dma.done %s6650, 6144
        $region88: #{tpu_custom_call.1} parent=83 // pred_fallthru
          _
      $region84: #{tpu_custom_call.1} parent=5 // pred_fallthru
        _
    $region6: #{tpu_custom_call.1} parent=1 // loop_footer
      %s26 = sadd.s32 1, %s22
    $region7: #{tpu_custom_call.1} parent=1 // loop_footer_branch
      %21 = sbr.rel target = $region3
    $region8: #{tpu_custom_call.1} parent=1 // loop_exit
      _
    %6656 = vsyncpa [#allocation3], 1
    %s6657 = scalar_lea.sflag [#allocation3], 1
    %6658 = vsyncpa %s6657, 1
    %6659 = vsyncpa [#allocation6], 1
    %6660 = vsyncpa [#allocation9], 1
    %6661 = vsyncpa [#allocation12], 1
    %s6662 = scalar_lea.sflag [#allocation12], 1
    %6663 = vsyncpa %s6662, 1
    %6664 = vsyncpa [#allocation4], 1
    %s6665 = scalar_lea.sflag [#allocation4], 1
    %6666 = vsyncpa %s6665, 1

</llo_original>
